<compile_context>
chip_gen: v6e
topology: v6e:2x2x1
jax: 0.10.0
libtpu: 0.0.40
codegen_flags: <defaults>
</compile_context>

<pallas_src>
import functools

import jax
import jax.numpy as jnp
from jax.experimental import pallas as pl
from jax.experimental.pallas import tpu as pltpu

_OUT_PAD = 128    # lane-dense width for the final 2-wide output
_HID3_PAD = 128   # lane-dense width for the 32-wide hidden layer


def _round_up(x, m):
    return ((x + m - 1) // m) * m


def _detect_num_tensorcores():
    """Best-effort TensorCore count per chip (v7x has 2; v5e/v6e have 1)."""
    try:
        kind = getattr(jax.devices()[0], "device_kind", "") or ""
        if "v7" in kind.lower():
            return 2
    except Exception:
        pass
    return 1


_NUM_CORES = _detect_num_tensorcores()


# ----------------------------------------------------------------------------
# Kernel: whole MLP for one batch tile, entirely in VMEM.
# Matmuls on the MXU with f32 accumulation; bias add + ReLU on the VPU.
# x arrives already in the compute dtype (bf16) -- no in-kernel input cast.
# ----------------------------------------------------------------------------
def _mlp_kernel(x_ref,
                w1_ref, b1_ref,
                w2_ref, b2_ref,
                w3_ref, b3_ref,
                w4_ref, b4_ref,
                o_ref):
    h = jnp.dot(x_ref[...], w1_ref[...],
                preferred_element_type=jnp.float32) + b1_ref[...]
    h = jnp.maximum(h, 0.0)

    h = jnp.dot(h.astype(w2_ref.dtype), w2_ref[...],
                preferred_element_type=jnp.float32) + b2_ref[...]
    h = jnp.maximum(h, 0.0)

    h = jnp.dot(h.astype(w3_ref.dtype), w3_ref[...],
                preferred_element_type=jnp.float32) + b3_ref[...]
    h = jnp.maximum(h, 0.0)

    out = jnp.dot(h.astype(w4_ref.dtype), w4_ref[...],
                  preferred_element_type=jnp.float32) + b4_ref[...]
    o_ref[...] = out.astype(o_ref.dtype)


# ----------------------------------------------------------------------------
# One-time parameter prep (hoisted out of the per-call jitted path).
# ----------------------------------------------------------------------------
def prepare_params(params, compute_dtype=jnp.bfloat16):
    """Cast weights to the MXU compute dtype and zero-pad to lane-dense shapes.

    params = ((w1,b1),(w2,b2),(w3,b3),(w4,b4)) with W stored (in, out) and
    b stored (1, out).  Returns a flat tuple ready for classifier_forward.
    """
    (w1, b1), (w2, b2), (w3, b3), (w4, b4) = params
    w1c = jnp.asarray(w1, compute_dtype)                            # (2048, 512)
    w2c = jnp.asarray(w2, compute_dtype)                            # (512, 128)
    w3c = jnp.pad(w3, ((0, 0), (0, _HID3_PAD - w3.shape[1]))
                  ).astype(compute_dtype)                           # (128, 128)
    b3c = jnp.pad(b3, ((0, 0), (0, _HID3_PAD - b3.shape[1]))
                  ).astype(jnp.float32)                             # (1, 128)
    w4c = jnp.pad(w4, ((0, _HID3_PAD - w4.shape[0]),
                       (0, _OUT_PAD - w4.shape[1]))
                  ).astype(compute_dtype)                           # (128, 128)
    b4c = jnp.pad(b4, ((0, 0), (0, _OUT_PAD - b4.shape[1]))
                  ).astype(jnp.float32)                             # (1, 128)
    return (w1c, jnp.asarray(b1, jnp.float32),
            w2c, jnp.asarray(b2, jnp.float32),
            w3c, b3c,
            w4c, b4c)


def _vmem_limit_bytes(tb, cd_itemsize):
    """Actual VMEM footprint (double-buffered tiles + resident weights) + 30%."""
    x_tile = tb * 2048 * cd_itemsize * 2                  # 2 pipeline buffers
    out_tile = tb * _OUT_PAD * 4 * 2
    w_bytes = (2048 * 512 + 512 * 128
               + _HID3_PAD * _HID3_PAD + _HID3_PAD * _OUT_PAD) * cd_itemsize * 2
    b_bytes = (512 + 128 + _HID3_PAD + _OUT_PAD) * 4 * 2
    inter = tb * (512 + 128 + _HID3_PAD) * (4 + cd_itemsize)  # f32 + bf16 copies
    total = int((x_tile + out_tile + w_bytes + b_bytes + inter) * 1.3)
    return min(max(total, 32 * 1024 * 1024), 100 * 1024 * 1024)


# ----------------------------------------------------------------------------
# Wrapper
# ----------------------------------------------------------------------------
@functools.partial(jax.jit, static_argnames=("batch_tile", "compute_dtype"))
def classifier_forward(x, prepped_params, *, batch_tile=512,
                       compute_dtype=jnp.bfloat16):
    """Run the Classifier MLP via a single pallas_call tiled over the batch."""
    (w1c, b1, w2c, b2, w3c, b3, w4c, b4) = prepped_params
    B, D_in = x.shape
    assert D_in == 2048, D_in

    # ---- Cast the input once (bf16 halves the dominant HBM traffic).
    if x.dtype != compute_dtype:
        x = x.astype(compute_dtype)
    cd_itemsize = jnp.dtype(compute_dtype).itemsize

    # ---- Batch tiling: one big tile on single-core chips; split into >=2 grid
    #      steps only on multi-TensorCore chips (v7x) so both cores get work.
    tb = min(batch_tile, _round_up(B, 16))
    if _NUM_CORES >= 2 and B >= 32:
        tb = min(tb, _round_up(-(-B // _NUM_CORES), 16))
    tb = max(16, (tb // 16) * 16)
    Bp = _round_up(B, tb)
    if Bp != B:
        x = jnp.pad(x, ((0, Bp - B), (0, 0)))
    grid = (Bp // tb,)

    # ---- BlockSpecs.  Weight/bias blocks are constant across the grid.
    def const_spec(shape):
        return pl.BlockSpec(shape, lambda i: (0, 0))

    in_specs = [
        pl.BlockSpec((tb, 2048), lambda i: (i, 0)),              # x tile (bf16)
        const_spec((2048, 512)), const_spec((1, 512)),           # layer 1
        const_spec((512, 128)),  const_spec((1, 128)),           # layer 2
        const_spec((128, _HID3_PAD)), const_spec((1, _HID3_PAD)),  # layer 3 (padded)
        const_spec((_HID3_PAD, _OUT_PAD)), const_spec((1, _OUT_PAD)),  # layer 4 (padded)
    ]
    out_specs = pl.BlockSpec((tb, _OUT_PAD), lambda i: (i, 0))

    # ---- Cost estimate for XLA scheduling.
    flops = 2 * Bp * (2048 * 512 + 512 * 128
                      + 128 * _HID3_PAD + _HID3_PAD * _OUT_PAD)
    weight_bytes = sum(int(a.size) * a.dtype.itemsize
                       for a in (w1c, b1, w2c, b2, w3c, b3, w4c, b4))
    bytes_accessed = (Bp * 2048 * cd_itemsize
                      + weight_bytes
                      + Bp * _OUT_PAD * 4)
    cost = pl.CostEstimate(flops=flops, transcendentals=0,
                           bytes_accessed=bytes_accessed)

    out = pl.pallas_call(
        _mlp_kernel,
        out_shape=jax.ShapeDtypeStruct((Bp, _OUT_PAD), jnp.float32),
        grid_spec=pltpu.PrefetchScalarGridSpec(
            num_scalar_prefetch=0,
            grid=grid,
            in_specs=in_specs,
            out_specs=out_specs,
        ),
        compiler_params=pltpu.CompilerParams(
            dimension_semantics=("parallel",),
            vmem_limit_bytes=_vmem_limit_bytes(tb, cd_itemsize),
        ),
        cost_estimate=cost,
    )(x, w1c, b1, w2c, b2, w3c, b3, w4c, b4)

    return out[:B, :2]


# ----------------------------------------------------------------------------
# Parameters + reference
# ----------------------------------------------------------------------------
def init_params(key):
    """Deterministic synthetic parameters matching nn.Linear shapes.

    PyTorch nn.Linear(in, out) has W:(out,in), b:(out,).  We store W transposed
    as (in,out) and b as (1,out), uniform(-1/sqrt(in), 1/sqrt(in)) like the
    PyTorch default init.
    """
    dims = [(2048, 512), (512, 128), (128, 32), (32, 2)]
    params = []
    for (fan_in, fan_out) in dims:
        key, kw, kb = jax.random.split(key, 3)
        bound = 1.0 / (fan_in ** 0.5)
        w = jax.random.uniform(kw, (fan_in, fan_out), jnp.float32, -bound, bound)
        b = jax.random.uniform(kb, (1, fan_out), jnp.float32, -bound, bound)
        params.append((w, b))
    return params


def classifier_reference(x, params, compute_dtype=jnp.bfloat16):
    """Pure-JAX reference with the same bf16-input / f32-accumulate matmuls."""
    h = x
    n = len(params)
    for i, (w, b) in enumerate(params):
        h = jnp.dot(h.astype(compute_dtype), w.astype(compute_dtype),
                    preferred_element_type=jnp.float32) + b
        if i < n - 1:
            h = jnp.maximum(h, 0.0)
    return h


if __name__ == "__main__":
    key = jax.random.PRNGKey(0)
    kx, kp = jax.random.split(key)

    B = 16  # small demo batch; feature dim 2048 is fixed by the module
    x = jax.random.normal(kx, (B, 2048), dtype=jnp.float32)
    params = init_params(kp)
    prepped = prepare_params(params)           # one-time bf16 cast + padding

    out = classifier_forward(x, prepped)
    out = jax.block_until_ready(out)

    ref = classifier_reference(x, params)
    assert out.shape == (B, 2), out.shape
    assert jnp.allclose(out, ref, atol=2e-3, rtol=2e-3), (
        float(jnp.max(jnp.abs(out - ref)))
    )

    print("KERNEL_OK")
</pallas_src>

<mosaic_0001>
module attributes {stable_mosaic.version = 11 : i64} {
  func.func @_mlp_kernel(%arg0: i32, %arg1: memref<16x2048xbf16, #tpu.memory_space<vmem>>, %arg2: memref<2048x512xbf16, #tpu.memory_space<vmem>>, %arg3: memref<1x512xf32, #tpu.memory_space<vmem>>, %arg4: memref<512x128xbf16, #tpu.memory_space<vmem>>, %arg5: memref<1x128xf32, #tpu.memory_space<vmem>>, %arg6: memref<128x128xbf16, #tpu.memory_space<vmem>>, %arg7: memref<1x128xf32, #tpu.memory_space<vmem>>, %arg8: memref<128x128xbf16, #tpu.memory_space<vmem>>, %arg9: memref<1x128xf32, #tpu.memory_space<vmem>>, %arg10: memref<16x128xf32, #tpu.memory_space<vmem>>) attributes {dimension_semantics = [#tpu.dimension_semantics<parallel>], iteration_bounds = array<i64: 1>, scalar_prefetch = 0 : i64, scratch_operands = 0 : i64, tpu.core_type = #tpu.core_type<tc>, window_params = [{transform_indices = @transform_0, window_bounds = array<i64: 16, 2048>}, {pipeline_mode = #tpu.pipeline_mode<synchronous>, transform_indices = @transform_1, window_bounds = array<i64: 2048, 512>}, {pipeline_mode = #tpu.pipeline_mode<synchronous>, transform_indices = @transform_2, window_bounds = array<i64: 1, 512>}, {pipeline_mode = #tpu.pipeline_mode<synchronous>, transform_indices = @transform_3, window_bounds = array<i64: 512, 128>}, {pipeline_mode = #tpu.pipeline_mode<synchronous>, transform_indices = @transform_4, window_bounds = array<i64: 1, 128>}, {pipeline_mode = #tpu.pipeline_mode<synchronous>, transform_indices = @transform_5, window_bounds = array<i64: 128, 128>}, {pipeline_mode = #tpu.pipeline_mode<synchronous>, transform_indices = @transform_6, window_bounds = array<i64: 1, 128>}, {pipeline_mode = #tpu.pipeline_mode<synchronous>, transform_indices = @transform_7, window_bounds = array<i64: 128, 128>}, {pipeline_mode = #tpu.pipeline_mode<synchronous>, transform_indices = @transform_8, window_bounds = array<i64: 1, 128>}, {transform_indices = @transform_9, window_bounds = array<i64: 16, 128>}]} {
    %c0 = arith.constant 0 : index
    %c0_0 = arith.constant 0 : index
    %0 = vector.load %arg1[%c0, %c0_0] : memref<16x2048xbf16, #tpu.memory_space<vmem>>, vector<16x2048xbf16>
    %c0_1 = arith.constant 0 : index
    %c0_2 = arith.constant 0 : index
    %1 = vector.load %arg2[%c0_1, %c0_2] : memref<2048x512xbf16, #tpu.memory_space<vmem>>, vector<2048x512xbf16>
    %cst = arith.constant dense<0.000000e+00> : vector<16x512xf32>
    %2 = tpu.matmul %0, %1, %cst {dimension_numbers = #tpu.dot_dimension_numbers<[1], [0], [0], [1], [0, 0, 1, 1], [], []>} : vector<16x2048xbf16>, vector<2048x512xbf16>, vector<16x512xf32> -> vector<16x512xf32>
    %c0_3 = arith.constant 0 : index
    %c0_4 = arith.constant 0 : index
    %3 = vector.load %arg3[%c0_3, %c0_4] : memref<1x512xf32, #tpu.memory_space<vmem>>, vector<1x512xf32>
    %4 = vector.broadcast %3 : vector<1x512xf32> to vector<16x512xf32>
    %5 = arith.addf %2, %4 : vector<16x512xf32>
    %cst_5 = arith.constant 0.000000e+00 : f32
    %6 = vector.broadcast %cst_5 : f32 to vector<16x512xf32>
    %7 = arith.maximumf %5, %6 : vector<16x512xf32>
    %8 = arith.truncf %7 : vector<16x512xf32> to vector<16x512xbf16>
    %c0_6 = arith.constant 0 : index
    %c0_7 = arith.constant 0 : index
    %9 = vector.load %arg4[%c0_6, %c0_7] : memref<512x128xbf16, #tpu.memory_space<vmem>>, vector<512x128xbf16>
    %cst_8 = arith.constant dense<0.000000e+00> : vector<16x128xf32>
    %10 = tpu.matmul %8, %9, %cst_8 {dimension_numbers = #tpu.dot_dimension_numbers<[1], [0], [0], [1], [0, 0, 1, 1], [], []>} : vector<16x512xbf16>, vector<512x128xbf16>, vector<16x128xf32> -> vector<16x128xf32>
    %c0_9 = arith.constant 0 : index
    %c0_10 = arith.constant 0 : index
    %11 = vector.load %arg5[%c0_9, %c0_10] : memref<1x128xf32, #tpu.memory_space<vmem>>, vector<1x128xf32>
    %12 = vector.broadcast %11 : vector<1x128xf32> to vector<16x128xf32>
    %13 = arith.addf %10, %12 : vector<16x128xf32>
    %cst_11 = arith.constant 0.000000e+00 : f32
    %14 = vector.broadcast %cst_11 : f32 to vector<16x128xf32>
    %15 = arith.maximumf %13, %14 : vector<16x128xf32>
    %16 = arith.truncf %15 : vector<16x128xf32> to vector<16x128xbf16>
    %c0_12 = arith.constant 0 : index
    %c0_13 = arith.constant 0 : index
    %17 = vector.load %arg6[%c0_12, %c0_13] : memref<128x128xbf16, #tpu.memory_space<vmem>>, vector<128x128xbf16>
    %cst_14 = arith.constant dense<0.000000e+00> : vector<16x128xf32>
    %18 = tpu.matmul %16, %17, %cst_14 {dimension_numbers = #tpu.dot_dimension_numbers<[1], [0], [0], [1], [0, 0, 1, 1], [], []>} : vector<16x128xbf16>, vector<128x128xbf16>, vector<16x128xf32> -> vector<16x128xf32>
    %c0_15 = arith.constant 0 : index
    %c0_16 = arith.constant 0 : index
    %19 = vector.load %arg7[%c0_15, %c0_16] : memref<1x128xf32, #tpu.memory_space<vmem>>, vector<1x128xf32>
    %20 = vector.broadcast %19 : vector<1x128xf32> to vector<16x128xf32>
    %21 = arith.addf %18, %20 : vector<16x128xf32>
    %cst_17 = arith.constant 0.000000e+00 : f32
    %22 = vector.broadcast %cst_17 : f32 to vector<16x128xf32>
    %23 = arith.maximumf %21, %22 : vector<16x128xf32>
    %24 = arith.truncf %23 : vector<16x128xf32> to vector<16x128xbf16>
    %c0_18 = arith.constant 0 : index
    %c0_19 = arith.constant 0 : index
    %25 = vector.load %arg8[%c0_18, %c0_19] : memref<128x128xbf16, #tpu.memory_space<vmem>>, vector<128x128xbf16>
    %cst_20 = arith.constant dense<0.000000e+00> : vector<16x128xf32>
    %26 = tpu.matmul %24, %25, %cst_20 {dimension_numbers = #tpu.dot_dimension_numbers<[1], [0], [0], [1], [0, 0, 1, 1], [], []>} : vector<16x128xbf16>, vector<128x128xbf16>, vector<16x128xf32> -> vector<16x128xf32>
    %c0_21 = arith.constant 0 : index
    %c0_22 = arith.constant 0 : index
    %27 = vector.load %arg9[%c0_21, %c0_22] : memref<1x128xf32, #tpu.memory_space<vmem>>, vector<1x128xf32>
    %28 = vector.broadcast %27 : vector<1x128xf32> to vector<16x128xf32>
    %29 = arith.addf %26, %28 : vector<16x128xf32>
    %c0_23 = arith.constant 0 : index
    %c0_24 = arith.constant 0 : index
    %30 = vector.load %arg10[%c0_23, %c0_24] : memref<16x128xf32, #tpu.memory_space<vmem>>, vector<16x128xf32>
    tpu.vector_store %arg10[%c0_23, %c0_24], %29 {strides = array<i32>} : memref<16x128xf32, #tpu.memory_space<vmem>>, vector<16x128xf32>,
    return
  }
  func.func @transform_0(%arg0: i32) -> (i32, i32) {
    %c0_i32 = arith.constant 0 : i32
    %c0_i32_0 = arith.constant 0 : i32
    return %arg0, %c0_i32 : i32, i32
  }
  func.func @transform_1(%arg0: i32) -> (i32, i32) {
    %c0_i32 = arith.constant 0 : i32
    %c0_i32_0 = arith.constant 0 : i32
    %c0_i32_1 = arith.constant 0 : i32
    return %c0_i32, %c0_i32_0 : i32, i32
  }
  func.func @transform_2(%arg0: i32) -> (i32, i32) {
    %c0_i32 = arith.constant 0 : i32
    %c0_i32_0 = arith.constant 0 : i32
    %c0_i32_1 = arith.constant 0 : i32
    return %c0_i32, %c0_i32_0 : i32, i32
  }
  func.func @transform_3(%arg0: i32) -> (i32, i32) {
    %c0_i32 = arith.constant 0 : i32
    %c0_i32_0 = arith.constant 0 : i32
    %c0_i32_1 = arith.constant 0 : i32
    return %c0_i32, %c0_i32_0 : i32, i32
  }
  func.func @transform_4(%arg0: i32) -> (i32, i32) {
    %c0_i32 = arith.constant 0 : i32
    %c0_i32_0 = arith.constant 0 : i32
    %c0_i32_1 = arith.constant 0 : i32
    return %c0_i32, %c0_i32_0 : i32, i32
  }
  func.func @transform_5(%arg0: i32) -> (i32, i32) {
    %c0_i32 = arith.constant 0 : i32
    %c0_i32_0 = arith.constant 0 : i32
    %c0_i32_1 = arith.constant 0 : i32
    return %c0_i32, %c0_i32_0 : i32, i32
  }
  func.func @transform_6(%arg0: i32) -> (i32, i32) {
    %c0_i32 = arith.constant 0 : i32
    %c0_i32_0 = arith.constant 0 : i32
    %c0_i32_1 = arith.constant 0 : i32
    return %c0_i32, %c0_i32_0 : i32, i32
  }
  func.func @transform_7(%arg0: i32) -> (i32, i32) {
    %c0_i32 = arith.constant 0 : i32
    %c0_i32_0 = arith.constant 0 : i32
    %c0_i32_1 = arith.constant 0 : i32
    return %c0_i32, %c0_i32_0 : i32, i32
  }
  func.func @transform_8(%arg0: i32) -> (i32, i32) {
    %c0_i32 = arith.constant 0 : i32
    %c0_i32_0 = arith.constant 0 : i32
    %c0_i32_1 = arith.constant 0 : i32
    return %c0_i32, %c0_i32_0 : i32, i32
  }
  func.func @transform_9(%arg0: i32) -> (i32, i32) {
    %c0_i32 = arith.constant 0 : i32
    %c0_i32_0 = arith.constant 0 : i32
    return %arg0, %c0_i32 : i32, i32
  }
}

</mosaic_0001>

<llo_original>
// kernel: classifier_forward.1
$region0: #{classifier_forward.1}
  #allocation0 [shape = 'u32[]', space=smem, size = 0x4, offset = 0x4, fixed_abs, tag = 'smem constant byte address 0x4 - core index']
  #allocation1 [shape = 'u32[144,128]{1,0:T(1,128)}', space=vmem, size = 0x12000, scoped, tag = 'internal scratch']
  %s0 = inlined_call_operand.vmem [shape: bf16[16,2048], index: 0, kind: input, shape index: {}]
  %s1 = inlined_call_operand.hbm [shape: bf16[2048,512], index: 1, kind: input, shape index: {}]
  %s2 = inlined_call_operand.hbm [shape: f32[1,512], index: 2, kind: input, shape index: {}]
  %s3 = inlined_call_operand.hbm [shape: bf16[512,128], index: 3, kind: input, shape index: {}]
  %s4 = inlined_call_operand.hbm [shape: f32[1,128], index: 4, kind: input, shape index: {}]
  %s5 = inlined_call_operand.hbm [shape: bf16[128,128], index: 5, kind: input, shape index: {}]
  %s6 = inlined_call_operand.hbm [shape: f32[1,128], index: 6, kind: input, shape index: {}]
  %s7 = inlined_call_operand.hbm [shape: bf16[128,128], index: 7, kind: input, shape index: {}]
  %s8 = inlined_call_operand.hbm [shape: f32[1,128], index: 8, kind: input, shape index: {}]
  %s9 = inlined_call_operand.vmem [shape: f32[16,128], index: 9, kind: output, shape index: {}]
  %s10 = sld [smem:[#allocation0]]
  $region78: #{classifier_forward.1} parent=0
    _
  %s12 = ssub.s32 1, %s10
  %s13 = scalar_select 0, %s12, %s10
  $region1: #{classifier_forward.1} parent=0
    #allocation2 [shape = 'u8[2097152]{0}', space=vmem, size = 0x200000, scoped, tag = 'input window, operand 1, single buffered']
    #allocation3 [shape = 's32[1]{0}', space=sflag, size = 0x4, scoped, tag = 'scoped memory for classifier_forward.1']
    #allocation4 [shape = 'u8[2048]{0}', space=vmem, size = 0x800, scoped, tag = 'input window, operand 2, single buffered']
    #allocation5 [shape = 's32[1]{0}', space=sflag, size = 0x4, scoped, tag = 'scoped memory for classifier_forward.1']
    #allocation6 [shape = 'u8[131072]{0}', space=vmem, size = 0x20000, scoped, tag = 'input window, operand 3, single buffered']
    #allocation7 [shape = 'u8[512]{0}', space=vmem, size = 0x400, scoped, tag = 'input window, operand 4, single buffered']
    #allocation8 [shape = 's32[1]{0}', space=sflag, size = 0x4, scoped, tag = 'scoped memory for classifier_forward.1']
    #allocation9 [shape = 'u8[32768]{0}', space=vmem, size = 0x8000, scoped, tag = 'input window, operand 5, single buffered']
    #allocation10 [shape = 'u8[512]{0}', space=vmem, size = 0x400, scoped, tag = 'input window, operand 6, single buffered']
    #allocation11 [shape = 's32[1]{0}', space=sflag, size = 0x4, scoped, tag = 'scoped memory for classifier_forward.1']
    #allocation12 [shape = 'u8[32768]{0}', space=vmem, size = 0x8000, scoped, tag = 'input window, operand 7, single buffered']
    #allocation13 [shape = 'u8[512]{0}', space=vmem, size = 0x400, scoped, tag = 'input window, operand 8, single buffered']
    #allocation14 [shape = 's32[1]{0}', space=sflag, size = 0x4, scoped, tag = 'scoped memory for classifier_forward.1']
    %14 = vsyncpa [#allocation3], 0
    %15 = vsyncpa [#allocation5], 0
    %16 = vsyncpa [#allocation8], 0
    %17 = vsyncpa [#allocation11], 0
    %18 = vsyncpa [#allocation14], 0
    // Predicated region
    $region2: #{classifier_forward.1} parent=1 // pred_check
      _
    $region3: #{classifier_forward.1} parent=1 // pred_check_branch
      %20 = sbr.rel (0) target = $region5
    $region4: #{classifier_forward.1} parent=1 // pred_region
      _
    $region5: #{classifier_forward.1} parent=1 // pred_fallthru
      _
    // Predicated region
    $region6: #{classifier_forward.1} parent=1 // pred_check
      _
    $region7: #{classifier_forward.1} parent=1 // pred_check_branch
      %22 = sbr.rel (0) target = $region9
    $region8: #{classifier_forward.1} parent=1 // pred_region
      %s24 = ssub.s32 65536, 65536
      %25 = vsyncadd [#allocation3], %s24
      %s26 = sshll.u32 [#allocation2], 4
      %s27 = int_to_ptr.vmem [resolvable:$true] %s26
      %32 = dma.hbm_to_vmem [thread:$0]  %s1, 65536, %s27, [#allocation3], 256, 256, 16
    $region9: #{classifier_forward.1} parent=1 // pred_fallthru
      _
    // Predicated region
    $region10: #{classifier_forward.1} parent=1 // pred_check
      _
    $region11: #{classifier_forward.1} parent=1 // pred_check_branch
      %34 = sbr.rel (0) target = $region13
    $region12: #{classifier_forward.1} parent=1 // pred_region
      %s36 = ssub.s32 64, 64
      %37 = vsyncadd [#allocation5], %s36
      %s39 = sshll.u32 [#allocation4], 4
      %s40 = int_to_ptr.vmem [resolvable:$true] %s39
      %42 = dma.hbm_to_vmem [thread:$0]  %s2, 64, %s40, [#allocation5]
    $region13: #{classifier_forward.1} parent=1 // pred_fallthru
      _
    // Predicated region
    $region14: #{classifier_forward.1} parent=1 // pred_check
      _
    $region15: #{classifier_forward.1} parent=1 // pred_check_branch
      %44 = sbr.rel (0) target = $region17
    $region16: #{classifier_forward.1} parent=1 // pred_region
      %s46 = ssub.s32 4096, 4096
      %47 = vsyncadd [#allocation5], %s46
      %s48 = sshll.u32 [#allocation6], 4
      %s49 = int_to_ptr.vmem [resolvable:$true] %s48
      %54 = dma.hbm_to_vmem [thread:$0]  %s3, 4096, %s49, [#allocation5], 64, 64, 4
    $region17: #{classifier_forward.1} parent=1 // pred_fallthru
      _
    // Predicated region
    $region18: #{classifier_forward.1} parent=1 // pred_check
      _
    $region19: #{classifier_forward.1} parent=1 // pred_check_branch
      %56 = sbr.rel (0) target = $region21
    $region20: #{classifier_forward.1} parent=1 // pred_region
      %s58 = ssub.s32 16, 16
      %59 = vsyncadd [#allocation8], %s58
      %s61 = sshll.u32 [#allocation7], 4
      %s62 = int_to_ptr.vmem [resolvable:$true] %s61
      %64 = dma.hbm_to_vmem [thread:$0]  %s4, 16, %s62, [#allocation8]
    $region21: #{classifier_forward.1} parent=1 // pred_fallthru
      _
    // Predicated region
    $region22: #{classifier_forward.1} parent=1 // pred_check
      _
    $region23: #{classifier_forward.1} parent=1 // pred_check_branch
      %66 = sbr.rel (0) target = $region25
    $region24: #{classifier_forward.1} parent=1 // pred_region
      %s68 = ssub.s32 1024, 1024
      %69 = vsyncadd [#allocation8], %s68
      %s70 = sshll.u32 [#allocation9], 4
      %s71 = int_to_ptr.vmem [resolvable:$true] %s70
      %76 = dma.hbm_to_vmem [thread:$0]  %s5, 1024, %s71, [#allocation8], 64, 64, 4
    $region25: #{classifier_forward.1} parent=1 // pred_fallthru
      _
    // Predicated region
    $region26: #{classifier_forward.1} parent=1 // pred_check
      _
    $region27: #{classifier_forward.1} parent=1 // pred_check_branch
      %78 = sbr.rel (0) target = $region29
    $region28: #{classifier_forward.1} parent=1 // pred_region
      %s80 = ssub.s32 16, 16
      %81 = vsyncadd [#allocation11], %s80
      %s83 = sshll.u32 [#allocation10], 4
      %s84 = int_to_ptr.vmem [resolvable:$true] %s83
      %86 = dma.hbm_to_vmem [thread:$0]  %s6, 16, %s84, [#allocation11]
    $region29: #{classifier_forward.1} parent=1 // pred_fallthru
      _
    // Predicated region
    $region30: #{classifier_forward.1} parent=1 // pred_check
      _
    $region31: #{classifier_forward.1} parent=1 // pred_check_branch
      %88 = sbr.rel (0) target = $region33
    $region32: #{classifier_forward.1} parent=1 // pred_region
      %s90 = ssub.s32 1024, 1024
      %91 = vsyncadd [#allocation11], %s90
      %s92 = sshll.u32 [#allocation12], 4
      %s93 = int_to_ptr.vmem [resolvable:$true] %s92
      %98 = dma.hbm_to_vmem [thread:$0]  %s7, 1024, %s93, [#allocation11], 64, 64, 4
    $region33: #{classifier_forward.1} parent=1 // pred_fallthru
      _
    // Predicated region
    $region34: #{classifier_forward.1} parent=1 // pred_check
      _
    $region35: #{classifier_forward.1} parent=1 // pred_check_branch
      %100 = sbr.rel (0) target = $region37
    $region36: #{classifier_forward.1} parent=1 // pred_region
      %s102 = ssub.s32 16, 16
      %103 = vsyncadd [#allocation14], %s102
      %s105 = sshll.u32 [#allocation13], 4
      %s106 = int_to_ptr.vmem [resolvable:$true] %s105
      %108 = dma.hbm_to_vmem [thread:$0]  %s8, 16, %s106, [#allocation14]
    $region37: #{classifier_forward.1} parent=1 // pred_fallthru
      _
    // Predicated region
    $region38: #{classifier_forward.1} parent=1 // pred_check
      _
    $region39: #{classifier_forward.1} parent=1 // pred_check_branch
      %110 = sbr.rel (0) target = $region41
    $region40: #{classifier_forward.1} parent=1 // pred_region
      %111 = dma.done [#allocation3], 65536
    $region41: #{classifier_forward.1} parent=1 // pred_fallthru
      _
    // Predicated region
    $region42: #{classifier_forward.1} parent=1 // pred_check
      _
    $region43: #{classifier_forward.1} parent=1 // pred_check_branch
      %113 = sbr.rel (0) target = $region45
    $region44: #{classifier_forward.1} parent=1 // pred_region
      %114 = dma.done [#allocation5], 64
    $region45: #{classifier_forward.1} parent=1 // pred_fallthru
      _
    // Predicated region
    $region46: #{classifier_forward.1} parent=1 // pred_check
      _
    $region47: #{classifier_forward.1} parent=1 // pred_check_branch
      %116 = sbr.rel (0) target = $region49
    $region48: #{classifier_forward.1} parent=1 // pred_region
      %117 = dma.done [#allocation5], 4096
    $region49: #{classifier_forward.1} parent=1 // pred_fallthru
      _
    // Predicated region
    $region50: #{classifier_forward.1} parent=1 // pred_check
      _
    $region51: #{classifier_forward.1} parent=1 // pred_check_branch
      %119 = sbr.rel (0) target = $region53
    $region52: #{classifier_forward.1} parent=1 // pred_region
      %120 = dma.done [#allocation8], 16
    $region53: #{classifier_forward.1} parent=1 // pred_fallthru
      _
    // Predicated region
    $region54: #{classifier_forward.1} parent=1 // pred_check
      _
    $region55: #{classifier_forward.1} parent=1 // pred_check_branch
      %122 = sbr.rel (0) target = $region57
    $region56: #{classifier_forward.1} parent=1 // pred_region
      %123 = dma.done [#allocation8], 1024
    $region57: #{classifier_forward.1} parent=1 // pred_fallthru
      _
    // Predicated region
    $region58: #{classifier_forward.1} parent=1 // pred_check
      _
    $region59: #{classifier_forward.1} parent=1 // pred_check_branch
      %125 = sbr.rel (0) target = $region61
    $region60: #{classifier_forward.1} parent=1 // pred_region
      %126 = dma.done [#allocation11], 16
    $region61: #{classifier_forward.1} parent=1 // pred_fallthru
      _
    // Predicated region
    $region62: #{classifier_forward.1} parent=1 // pred_check
      _
    $region63: #{classifier_forward.1} parent=1 // pred_check_branch
      %128 = sbr.rel (0) target = $region65
    $region64: #{classifier_forward.1} parent=1 // pred_region
      %129 = dma.done [#allocation11], 1024
    $region65: #{classifier_forward.1} parent=1 // pred_fallthru
      _
    // Predicated region
    $region66: #{classifier_forward.1} parent=1 // pred_check
      _
    $region67: #{classifier_forward.1} parent=1 // pred_check_branch
      %131 = sbr.rel (0) target = $region69
    $region68: #{classifier_forward.1} parent=1 // pred_region
      %132 = dma.done [#allocation14], 16
    $region69: #{classifier_forward.1} parent=1 // pred_fallthru
      _
    %v134 = vld [vmem:[%s0] sm:$0xff]
    %v135 = vld [vmem:[%s0 + $0x8] sm:$0xff]
    %v136 = vld [vmem:[%s0 + $0x10] sm:$0xff]
    %v137 = vld [vmem:[%s0 + $0x18] sm:$0xff]
    %v138 = vld [vmem:[%s0 + $0x20] sm:$0xff]
    %v139 = vld [vmem:[%s0 + $0x28] sm:$0xff]
    %v140 = vld [vmem:[%s0 + $0x30] sm:$0xff]
    %v141 = vld [vmem:[%s0 + $0x38] sm:$0xff]
    %v142 = vld [vmem:[%s0 + $0x40] sm:$0xff]
    %v143 = vld [vmem:[%s0 + $0x48] sm:$0xff]
    %v144 = vld [vmem:[%s0 + $0x50] sm:$0xff]
    %v145 = vld [vmem:[%s0 + $0x58] sm:$0xff]
    %v146 = vld [vmem:[%s0 + $0x60] sm:$0xff]
    %v147 = vld [vmem:[%s0 + $0x68] sm:$0xff]
    %v148 = vld [vmem:[%s0 + $0x70] sm:$0xff]
    %v149 = vld [vmem:[%s0 + $0x78] sm:$0xff]
    %v150 = vld [vmem:[#allocation2] sm:$0xff]
    %v151 = vld [vmem:[#allocation2 + $0x8] sm:$0xff]
    %v152 = vld [vmem:[#allocation2 + $0x10] sm:$0xff]
    %v153 = vld [vmem:[#allocation2 + $0x18] sm:$0xff]
    %v154 = vld [vmem:[#allocation2 + $0x20] sm:$0xff]
    %v155 = vld [vmem:[#allocation2 + $0x28] sm:$0xff]
    %v156 = vld [vmem:[#allocation2 + $0x30] sm:$0xff]
    %v157 = vld [vmem:[#allocation2 + $0x38] sm:$0xff]
    %v158 = vld [vmem:[#allocation2 + $0x40] sm:$0xff]
    %v159 = vld [vmem:[#allocation2 + $0x48] sm:$0xff]
    %v160 = vld [vmem:[#allocation2 + $0x50] sm:$0xff]
    %v161 = vld [vmem:[#allocation2 + $0x58] sm:$0xff]
    %v162 = vld [vmem:[#allocation2 + $0x60] sm:$0xff]
    %v163 = vld [vmem:[#allocation2 + $0x68] sm:$0xff]
    %v164 = vld [vmem:[#allocation2 + $0x70] sm:$0xff]
    %v165 = vld [vmem:[#allocation2 + $0x78] sm:$0xff]
    %v166 = vld [vmem:[#allocation2 + $0x80] sm:$0xff]
    %v167 = vld [vmem:[#allocation2 + $0x88] sm:$0xff]
    %v168 = vld [vmem:[#allocation2 + $0x90] sm:$0xff]
    %v169 = vld [vmem:[#allocation2 + $0x98] sm:$0xff]
    %v170 = vld [vmem:[#allocation2 + $0xa0] sm:$0xff]
    %v171 = vld [vmem:[#allocation2 + $0xa8] sm:$0xff]
    %v172 = vld [vmem:[#allocation2 + $0xb0] sm:$0xff]
    %v173 = vld [vmem:[#allocation2 + $0xb8] sm:$0xff]
    %v174 = vld [vmem:[#allocation2 + $0xc0] sm:$0xff]
    %v175 = vld [vmem:[#allocation2 + $0xc8] sm:$0xff]
    %v176 = vld [vmem:[#allocation2 + $0xd0] sm:$0xff]
    %v177 = vld [vmem:[#allocation2 + $0xd8] sm:$0xff]
    %v178 = vld [vmem:[#allocation2 + $0xe0] sm:$0xff]
    %v179 = vld [vmem:[#allocation2 + $0xe8] sm:$0xff]
    %v180 = vld [vmem:[#allocation2 + $0xf0] sm:$0xff]
    %v181 = vld [vmem:[#allocation2 + $0xf8] sm:$0xff]
    %v182 = vld [vmem:[#allocation2 + $0x100] sm:$0xff]
    %v183 = vld [vmem:[#allocation2 + $0x108] sm:$0xff]
    %v184 = vld [vmem:[#allocation2 + $0x110] sm:$0xff]
    %v185 = vld [vmem:[#allocation2 + $0x118] sm:$0xff]
    %v186 = vld [vmem:[#allocation2 + $0x120] sm:$0xff]
    %v187 = vld [vmem:[#allocation2 + $0x128] sm:$0xff]
    %v188 = vld [vmem:[#allocation2 + $0x130] sm:$0xff]
    %v189 = vld [vmem:[#allocation2 + $0x138] sm:$0xff]
    %v190 = vld [vmem:[#allocation2 + $0x140] sm:$0xff]
    %v191 = vld [vmem:[#allocation2 + $0x148] sm:$0xff]
    %v192 = vld [vmem:[#allocation2 + $0x150] sm:$0xff]
    %v193 = vld [vmem:[#allocation2 + $0x158] sm:$0xff]
    %v194 = vld [vmem:[#allocation2 + $0x160] sm:$0xff]
    %v195 = vld [vmem:[#allocation2 + $0x168] sm:$0xff]
    %v196 = vld [vmem:[#allocation2 + $0x170] sm:$0xff]
    %v197 = vld [vmem:[#allocation2 + $0x178] sm:$0xff]
    %v198 = vld [vmem:[#allocation2 + $0x180] sm:$0xff]
    %v199 = vld [vmem:[#allocation2 + $0x188] sm:$0xff]
    %v200 = vld [vmem:[#allocation2 + $0x190] sm:$0xff]
    %v201 = vld [vmem:[#allocation2 + $0x198] sm:$0xff]
    %v202 = vld [vmem:[#allocation2 + $0x1a0] sm:$0xff]
    %v203 = vld [vmem:[#allocation2 + $0x1a8] sm:$0xff]
    %v204 = vld [vmem:[#allocation2 + $0x1b0] sm:$0xff]
    %v205 = vld [vmem:[#allocation2 + $0x1b8] sm:$0xff]
    %v206 = vld [vmem:[#allocation2 + $0x1c0] sm:$0xff]
    %v207 = vld [vmem:[#allocation2 + $0x1c8] sm:$0xff]
    %v208 = vld [vmem:[#allocation2 + $0x1d0] sm:$0xff]
    %v209 = vld [vmem:[#allocation2 + $0x1d8] sm:$0xff]
    %v210 = vld [vmem:[#allocation2 + $0x1e0] sm:$0xff]
    %v211 = vld [vmem:[#allocation2 + $0x1e8] sm:$0xff]
    %v212 = vld [vmem:[#allocation2 + $0x1f0] sm:$0xff]
    %v213 = vld [vmem:[#allocation2 + $0x1f8] sm:$0xff]
    %v214 = vld [vmem:[#allocation2 + $0x200] sm:$0xff]
    %v215 = vld [vmem:[#allocation2 + $0x208] sm:$0xff]
    %v216 = vld [vmem:[#allocation2 + $0x210] sm:$0xff]
    %v217 = vld [vmem:[#allocation2 + $0x218] sm:$0xff]
    %v218 = vld [vmem:[#allocation2 + $0x220] sm:$0xff]
    %v219 = vld [vmem:[#allocation2 + $0x228] sm:$0xff]
    %v220 = vld [vmem:[#allocation2 + $0x230] sm:$0xff]
    %v221 = vld [vmem:[#allocation2 + $0x238] sm:$0xff]
    %v222 = vld [vmem:[#allocation2 + $0x240] sm:$0xff]
    %v223 = vld [vmem:[#allocation2 + $0x248] sm:$0xff]
    %v224 = vld [vmem:[#allocation2 + $0x250] sm:$0xff]
    %v225 = vld [vmem:[#allocation2 + $0x258] sm:$0xff]
    %v226 = vld [vmem:[#allocation2 + $0x260] sm:$0xff]
    %v227 = vld [vmem:[#allocation2 + $0x268] sm:$0xff]
    %v228 = vld [vmem:[#allocation2 + $0x270] sm:$0xff]
    %v229 = vld [vmem:[#allocation2 + $0x278] sm:$0xff]
    %v230 = vld [vmem:[#allocation2 + $0x280] sm:$0xff]
    %v231 = vld [vmem:[#allocation2 + $0x288] sm:$0xff]
    %v232 = vld [vmem:[#allocation2 + $0x290] sm:$0xff]
    %v233 = vld [vmem:[#allocation2 + $0x298] sm:$0xff]
    %v234 = vld [vmem:[#allocation2 + $0x2a0] sm:$0xff]
    %v235 = vld [vmem:[#allocation2 + $0x2a8] sm:$0xff]
    %v236 = vld [vmem:[#allocation2 + $0x2b0] sm:$0xff]
    %v237 = vld [vmem:[#allocation2 + $0x2b8] sm:$0xff]
    %v238 = vld [vmem:[#allocation2 + $0x2c0] sm:$0xff]
    %v239 = vld [vmem:[#allocation2 + $0x2c8] sm:$0xff]
    %v240 = vld [vmem:[#allocation2 + $0x2d0] sm:$0xff]
    %v241 = vld [vmem:[#allocation2 + $0x2d8] sm:$0xff]
    %v242 = vld [vmem:[#allocation2 + $0x2e0] sm:$0xff]
    %v243 = vld [vmem:[#allocation2 + $0x2e8] sm:$0xff]
    %v244 = vld [vmem:[#allocation2 + $0x2f0] sm:$0xff]
    %v245 = vld [vmem:[#allocation2 + $0x2f8] sm:$0xff]
    %v246 = vld [vmem:[#allocation2 + $0x300] sm:$0xff]
    %v247 = vld [vmem:[#allocation2 + $0x308] sm:$0xff]
    %v248 = vld [vmem:[#allocation2 + $0x310] sm:$0xff]
    %v249 = vld [vmem:[#allocation2 + $0x318] sm:$0xff]
    %v250 = vld [vmem:[#allocation2 + $0x320] sm:$0xff]
    %v251 = vld [vmem:[#allocation2 + $0x328] sm:$0xff]
    %v252 = vld [vmem:[#allocation2 + $0x330] sm:$0xff]
    %v253 = vld [vmem:[#allocation2 + $0x338] sm:$0xff]
    %v254 = vld [vmem:[#allocation2 + $0x340] sm:$0xff]
    %v255 = vld [vmem:[#allocation2 + $0x348] sm:$0xff]
    %v256 = vld [vmem:[#allocation2 + $0x350] sm:$0xff]
    %v257 = vld [vmem:[#allocation2 + $0x358] sm:$0xff]
    %v258 = vld [vmem:[#allocation2 + $0x360] sm:$0xff]
    %v259 = vld [vmem:[#allocation2 + $0x368] sm:$0xff]
    %v260 = vld [vmem:[#allocation2 + $0x370] sm:$0xff]
    %v261 = vld [vmem:[#allocation2 + $0x378] sm:$0xff]
    %v262 = vld [vmem:[#allocation2 + $0x380] sm:$0xff]
    %v263 = vld [vmem:[#allocation2 + $0x388] sm:$0xff]
    %v264 = vld [vmem:[#allocation2 + $0x390] sm:$0xff]
    %v265 = vld [vmem:[#allocation2 + $0x398] sm:$0xff]
    %v266 = vld [vmem:[#allocation2 + $0x3a0] sm:$0xff]
    %v267 = vld [vmem:[#allocation2 + $0x3a8] sm:$0xff]
    %v268 = vld [vmem:[#allocation2 + $0x3b0] sm:$0xff]
    %v269 = vld [vmem:[#allocation2 + $0x3b8] sm:$0xff]
    %v270 = vld [vmem:[#allocation2 + $0x3c0] sm:$0xff]
    %v271 = vld [vmem:[#allocation2 + $0x3c8] sm:$0xff]
    %v272 = vld [vmem:[#allocation2 + $0x3d0] sm:$0xff]
    %v273 = vld [vmem:[#allocation2 + $0x3d8] sm:$0xff]
    %v274 = vld [vmem:[#allocation2 + $0x3e0] sm:$0xff]
    %v275 = vld [vmem:[#allocation2 + $0x3e8] sm:$0xff]
    %v276 = vld [vmem:[#allocation2 + $0x3f0] sm:$0xff]
    %v277 = vld [vmem:[#allocation2 + $0x3f8] sm:$0xff]
    %v278 = vld [vmem:[#allocation2 + $0x400] sm:$0xff]
    %v279 = vld [vmem:[#allocation2 + $0x408] sm:$0xff]
    %v280 = vld [vmem:[#allocation2 + $0x410] sm:$0xff]
    %v281 = vld [vmem:[#allocation2 + $0x418] sm:$0xff]
    %v282 = vld [vmem:[#allocation2 + $0x420] sm:$0xff]
    %v283 = vld [vmem:[#allocation2 + $0x428] sm:$0xff]
    %v284 = vld [vmem:[#allocation2 + $0x430] sm:$0xff]
    %v285 = vld [vmem:[#allocation2 + $0x438] sm:$0xff]
    %v286 = vld [vmem:[#allocation2 + $0x440] sm:$0xff]
    %v287 = vld [vmem:[#allocation2 + $0x448] sm:$0xff]
    %v288 = vld [vmem:[#allocation2 + $0x450] sm:$0xff]
    %v289 = vld [vmem:[#allocation2 + $0x458] sm:$0xff]
    %v290 = vld [vmem:[#allocation2 + $0x460] sm:$0xff]
    %v291 = vld [vmem:[#allocation2 + $0x468] sm:$0xff]
    %v292 = vld [vmem:[#allocation2 + $0x470] sm:$0xff]
    %v293 = vld [vmem:[#allocation2 + $0x478] sm:$0xff]
    %v294 = vld [vmem:[#allocation2 + $0x480] sm:$0xff]
    %v295 = vld [vmem:[#allocation2 + $0x488] sm:$0xff]
    %v296 = vld [vmem:[#allocation2 + $0x490] sm:$0xff]
    %v297 = vld [vmem:[#allocation2 + $0x498] sm:$0xff]
    %v298 = vld [vmem:[#allocation2 + $0x4a0] sm:$0xff]
    %v299 = vld [vmem:[#allocation2 + $0x4a8] sm:$0xff]
    %v300 = vld [vmem:[#allocation2 + $0x4b0] sm:$0xff]
    %v301 = vld [vmem:[#allocation2 + $0x4b8] sm:$0xff]
    %v302 = vld [vmem:[#allocation2 + $0x4c0] sm:$0xff]
    %v303 = vld [vmem:[#allocation2 + $0x4c8] sm:$0xff]
    %v304 = vld [vmem:[#allocation2 + $0x4d0] sm:$0xff]
    %v305 = vld [vmem:[#allocation2 + $0x4d8] sm:$0xff]
    %v306 = vld [vmem:[#allocation2 + $0x4e0] sm:$0xff]
    %v307 = vld [vmem:[#allocation2 + $0x4e8] sm:$0xff]
    %v308 = vld [vmem:[#allocation2 + $0x4f0] sm:$0xff]
    %v309 = vld [vmem:[#allocation2 + $0x4f8] sm:$0xff]
    %v310 = vld [vmem:[#allocation2 + $0x500] sm:$0xff]
    %v311 = vld [vmem:[#allocation2 + $0x508] sm:$0xff]
    %v312 = vld [vmem:[#allocation2 + $0x510] sm:$0xff]
    %v313 = vld [vmem:[#allocation2 + $0x518] sm:$0xff]
    %v314 = vld [vmem:[#allocation2 + $0x520] sm:$0xff]
    %v315 = vld [vmem:[#allocation2 + $0x528] sm:$0xff]
    %v316 = vld [vmem:[#allocation2 + $0x530] sm:$0xff]
    %v317 = vld [vmem:[#allocation2 + $0x538] sm:$0xff]
    %v318 = vld [vmem:[#allocation2 + $0x540] sm:$0xff]
    %v319 = vld [vmem:[#allocation2 + $0x548] sm:$0xff]
    %v320 = vld [vmem:[#allocation2 + $0x550] sm:$0xff]
    %v321 = vld [vmem:[#allocation2 + $0x558] sm:$0xff]
    %v322 = vld [vmem:[#allocation2 + $0x560] sm:$0xff]
    %v323 = vld [vmem:[#allocation2 + $0x568] sm:$0xff]
    %v324 = vld [vmem:[#allocation2 + $0x570] sm:$0xff]
    %v325 = vld [vmem:[#allocation2 + $0x578] sm:$0xff]
    %v326 = vld [vmem:[#allocation2 + $0x580] sm:$0xff]
    %v327 = vld [vmem:[#allocation2 + $0x588] sm:$0xff]
    %v328 = vld [vmem:[#allocation2 + $0x590] sm:$0xff]
    %v329 = vld [vmem:[#allocation2 + $0x598] sm:$0xff]
    %v330 = vld [vmem:[#allocation2 + $0x5a0] sm:$0xff]
    %v331 = vld [vmem:[#allocation2 + $0x5a8] sm:$0xff]
    %v332 = vld [vmem:[#allocation2 + $0x5b0] sm:$0xff]
    %v333 = vld [vmem:[#allocation2 + $0x5b8] sm:$0xff]
    %v334 = vld [vmem:[#allocation2 + $0x5c0] sm:$0xff]
    %v335 = vld [vmem:[#allocation2 + $0x5c8] sm:$0xff]
    %v336 = vld [vmem:[#allocation2 + $0x5d0] sm:$0xff]
    %v337 = vld [vmem:[#allocation2 + $0x5d8] sm:$0xff]
    %v338 = vld [vmem:[#allocation2 + $0x5e0] sm:$0xff]
    %v339 = vld [vmem:[#allocation2 + $0x5e8] sm:$0xff]
    %v340 = vld [vmem:[#allocation2 + $0x5f0] sm:$0xff]
    %v341 = vld [vmem:[#allocation2 + $0x5f8] sm:$0xff]
    %v342 = vld [vmem:[#allocation2 + $0x600] sm:$0xff]
    %v343 = vld [vmem:[#allocation2 + $0x608] sm:$0xff]
    %v344 = vld [vmem:[#allocation2 + $0x610] sm:$0xff]
    %v345 = vld [vmem:[#allocation2 + $0x618] sm:$0xff]
    %v346 = vld [vmem:[#allocation2 + $0x620] sm:$0xff]
    %v347 = vld [vmem:[#allocation2 + $0x628] sm:$0xff]
    %v348 = vld [vmem:[#allocation2 + $0x630] sm:$0xff]
    %v349 = vld [vmem:[#allocation2 + $0x638] sm:$0xff]
    %v350 = vld [vmem:[#allocation2 + $0x640] sm:$0xff]
    %v351 = vld [vmem:[#allocation2 + $0x648] sm:$0xff]
    %v352 = vld [vmem:[#allocation2 + $0x650] sm:$0xff]
    %v353 = vld [vmem:[#allocation2 + $0x658] sm:$0xff]
    %v354 = vld [vmem:[#allocation2 + $0x660] sm:$0xff]
    %v355 = vld [vmem:[#allocation2 + $0x668] sm:$0xff]
    %v356 = vld [vmem:[#allocation2 + $0x670] sm:$0xff]
    %v357 = vld [vmem:[#allocation2 + $0x678] sm:$0xff]
    %v358 = vld [vmem:[#allocation2 + $0x680] sm:$0xff]
    %v359 = vld [vmem:[#allocation2 + $0x688] sm:$0xff]
    %v360 = vld [vmem:[#allocation2 + $0x690] sm:$0xff]
    %v361 = vld [vmem:[#allocation2 + $0x698] sm:$0xff]
    %v362 = vld [vmem:[#allocation2 + $0x6a0] sm:$0xff]
    %v363 = vld [vmem:[#allocation2 + $0x6a8] sm:$0xff]
    %v364 = vld [vmem:[#allocation2 + $0x6b0] sm:$0xff]
    %v365 = vld [vmem:[#allocation2 + $0x6b8] sm:$0xff]
    %v366 = vld [vmem:[#allocation2 + $0x6c0] sm:$0xff]
    %v367 = vld [vmem:[#allocation2 + $0x6c8] sm:$0xff]
    %v368 = vld [vmem:[#allocation2 + $0x6d0] sm:$0xff]
    %v369 = vld [vmem:[#allocation2 + $0x6d8] sm:$0xff]
    %v370 = vld [vmem:[#allocation2 + $0x6e0] sm:$0xff]
    %v371 = vld [vmem:[#allocation2 + $0x6e8] sm:$0xff]
    %v372 = vld [vmem:[#allocation2 + $0x6f0] sm:$0xff]
    %v373 = vld [vmem:[#allocation2 + $0x6f8] sm:$0xff]
    %v374 = vld [vmem:[#allocation2 + $0x700] sm:$0xff]
    %v375 = vld [vmem:[#allocation2 + $0x708] sm:$0xff]
    %v376 = vld [vmem:[#allocation2 + $0x710] sm:$0xff]
    %v377 = vld [vmem:[#allocation2 + $0x718] sm:$0xff]
    %v378 = vld [vmem:[#allocation2 + $0x720] sm:$0xff]
    %v379 = vld [vmem:[#allocation2 + $0x728] sm:$0xff]
    %v380 = vld [vmem:[#allocation2 + $0x730] sm:$0xff]
    %v381 = vld [vmem:[#allocation2 + $0x738] sm:$0xff]
    %v382 = vld [vmem:[#allocation2 + $0x740] sm:$0xff]
    %v383 = vld [vmem:[#allocation2 + $0x748] sm:$0xff]
    %v384 = vld [vmem:[#allocation2 + $0x750] sm:$0xff]
    %v385 = vld [vmem:[#allocation2 + $0x758] sm:$0xff]
    %v386 = vld [vmem:[#allocation2 + $0x760] sm:$0xff]
    %v387 = vld [vmem:[#allocation2 + $0x768] sm:$0xff]
    %v388 = vld [vmem:[#allocation2 + $0x770] sm:$0xff]
    %v389 = vld [vmem:[#allocation2 + $0x778] sm:$0xff]
    %v390 = vld [vmem:[#allocation2 + $0x780] sm:$0xff]
    %v391 = vld [vmem:[#allocation2 + $0x788] sm:$0xff]
    %v392 = vld [vmem:[#allocation2 + $0x790] sm:$0xff]
    %v393 = vld [vmem:[#allocation2 + $0x798] sm:$0xff]
    %v394 = vld [vmem:[#allocation2 + $0x7a0] sm:$0xff]
    %v395 = vld [vmem:[#allocation2 + $0x7a8] sm:$0xff]
    %v396 = vld [vmem:[#allocation2 + $0x7b0] sm:$0xff]
    %v397 = vld [vmem:[#allocation2 + $0x7b8] sm:$0xff]
    %v398 = vld [vmem:[#allocation2 + $0x7c0] sm:$0xff]
    %v399 = vld [vmem:[#allocation2 + $0x7c8] sm:$0xff]
    %v400 = vld [vmem:[#allocation2 + $0x7d0] sm:$0xff]
    %v401 = vld [vmem:[#allocation2 + $0x7d8] sm:$0xff]
    %v402 = vld [vmem:[#allocation2 + $0x7e0] sm:$0xff]
    %v403 = vld [vmem:[#allocation2 + $0x7e8] sm:$0xff]
    %v404 = vld [vmem:[#allocation2 + $0x7f0] sm:$0xff]
    %v405 = vld [vmem:[#allocation2 + $0x7f8] sm:$0xff]
    %v406 = vld [vmem:[#allocation2 + $0x800] sm:$0xff]
    %v407 = vld [vmem:[#allocation2 + $0x808] sm:$0xff]
    %v408 = vld [vmem:[#allocation2 + $0x810] sm:$0xff]
    %v409 = vld [vmem:[#allocation2 + $0x818] sm:$0xff]
    %v410 = vld [vmem:[#allocation2 + $0x820] sm:$0xff]
    %v411 = vld [vmem:[#allocation2 + $0x828] sm:$0xff]
    %v412 = vld [vmem:[#allocation2 + $0x830] sm:$0xff]
    %v413 = vld [vmem:[#allocation2 + $0x838] sm:$0xff]
    %v414 = vld [vmem:[#allocation2 + $0x840] sm:$0xff]
    %v415 = vld [vmem:[#allocation2 + $0x848] sm:$0xff]
    %v416 = vld [vmem:[#allocation2 + $0x850] sm:$0xff]
    %v417 = vld [vmem:[#allocation2 + $0x858] sm:$0xff]
    %v418 = vld [vmem:[#allocation2 + $0x860] sm:$0xff]
    %v419 = vld [vmem:[#allocation2 + $0x868] sm:$0xff]
    %v420 = vld [vmem:[#allocation2 + $0x870] sm:$0xff]
    %v421 = vld [vmem:[#allocation2 + $0x878] sm:$0xff]
    %v422 = vld [vmem:[#allocation2 + $0x880] sm:$0xff]
    %v423 = vld [vmem:[#allocation2 + $0x888] sm:$0xff]
    %v424 = vld [vmem:[#allocation2 + $0x890] sm:$0xff]
    %v425 = vld [vmem:[#allocation2 + $0x898] sm:$0xff]
    %v426 = vld [vmem:[#allocation2 + $0x8a0] sm:$0xff]
    %v427 = vld [vmem:[#allocation2 + $0x8a8] sm:$0xff]
    %v428 = vld [vmem:[#allocation2 + $0x8b0] sm:$0xff]
    %v429 = vld [vmem:[#allocation2 + $0x8b8] sm:$0xff]
    %v430 = vld [vmem:[#allocation2 + $0x8c0] sm:$0xff]
    %v431 = vld [vmem:[#allocation2 + $0x8c8] sm:$0xff]
    %v432 = vld [vmem:[#allocation2 + $0x8d0] sm:$0xff]
    %v433 = vld [vmem:[#allocation2 + $0x8d8] sm:$0xff]
    %v434 = vld [vmem:[#allocation2 + $0x8e0] sm:$0xff]
    %v435 = vld [vmem:[#allocation2 + $0x8e8] sm:$0xff]
    %v436 = vld [vmem:[#allocation2 + $0x8f0] sm:$0xff]
    %v437 = vld [vmem:[#allocation2 + $0x8f8] sm:$0xff]
    %v438 = vld [vmem:[#allocation2 + $0x900] sm:$0xff]
    %v439 = vld [vmem:[#allocation2 + $0x908] sm:$0xff]
    %v440 = vld [vmem:[#allocation2 + $0x910] sm:$0xff]
    %v441 = vld [vmem:[#allocation2 + $0x918] sm:$0xff]
    %v442 = vld [vmem:[#allocation2 + $0x920] sm:$0xff]
    %v443 = vld [vmem:[#allocation2 + $0x928] sm:$0xff]
    %v444 = vld [vmem:[#allocation2 + $0x930] sm:$0xff]
    %v445 = vld [vmem:[#allocation2 + $0x938] sm:$0xff]
    %v446 = vld [vmem:[#allocation2 + $0x940] sm:$0xff]
    %v447 = vld [vmem:[#allocation2 + $0x948] sm:$0xff]
    %v448 = vld [vmem:[#allocation2 + $0x950] sm:$0xff]
    %v449 = vld [vmem:[#allocation2 + $0x958] sm:$0xff]
    %v450 = vld [vmem:[#allocation2 + $0x960] sm:$0xff]
    %v451 = vld [vmem:[#allocation2 + $0x968] sm:$0xff]
    %v452 = vld [vmem:[#allocation2 + $0x970] sm:$0xff]
    %v453 = vld [vmem:[#allocation2 + $0x978] sm:$0xff]
    %v454 = vld [vmem:[#allocation2 + $0x980] sm:$0xff]
    %v455 = vld [vmem:[#allocation2 + $0x988] sm:$0xff]
    %v456 = vld [vmem:[#allocation2 + $0x990] sm:$0xff]
    %v457 = vld [vmem:[#allocation2 + $0x998] sm:$0xff]
    %v458 = vld [vmem:[#allocation2 + $0x9a0] sm:$0xff]
    %v459 = vld [vmem:[#allocation2 + $0x9a8] sm:$0xff]
    %v460 = vld [vmem:[#allocation2 + $0x9b0] sm:$0xff]
    %v461 = vld [vmem:[#allocation2 + $0x9b8] sm:$0xff]
    %v462 = vld [vmem:[#allocation2 + $0x9c0] sm:$0xff]
    %v463 = vld [vmem:[#allocation2 + $0x9c8] sm:$0xff]
    %v464 = vld [vmem:[#allocation2 + $0x9d0] sm:$0xff]
    %v465 = vld [vmem:[#allocation2 + $0x9d8] sm:$0xff]
    %v466 = vld [vmem:[#allocation2 + $0x9e0] sm:$0xff]
    %v467 = vld [vmem:[#allocation2 + $0x9e8] sm:$0xff]
    %v468 = vld [vmem:[#allocation2 + $0x9f0] sm:$0xff]
    %v469 = vld [vmem:[#allocation2 + $0x9f8] sm:$0xff]
    %v470 = vld [vmem:[#allocation2 + $0xa00] sm:$0xff]
    %v471 = vld [vmem:[#allocation2 + $0xa08] sm:$0xff]
    %v472 = vld [vmem:[#allocation2 + $0xa10] sm:$0xff]
    %v473 = vld [vmem:[#allocation2 + $0xa18] sm:$0xff]
    %v474 = vld [vmem:[#allocation2 + $0xa20] sm:$0xff]
    %v475 = vld [vmem:[#allocation2 + $0xa28] sm:$0xff]
    %v476 = vld [vmem:[#allocation2 + $0xa30] sm:$0xff]
    %v477 = vld [vmem:[#allocation2 + $0xa38] sm:$0xff]
    %v478 = vld [vmem:[#allocation2 + $0xa40] sm:$0xff]
    %v479 = vld [vmem:[#allocation2 + $0xa48] sm:$0xff]
    %v480 = vld [vmem:[#allocation2 + $0xa50] sm:$0xff]
    %v481 = vld [vmem:[#allocation2 + $0xa58] sm:$0xff]
    %v482 = vld [vmem:[#allocation2 + $0xa60] sm:$0xff]
    %v483 = vld [vmem:[#allocation2 + $0xa68] sm:$0xff]
    %v484 = vld [vmem:[#allocation2 + $0xa70] sm:$0xff]
    %v485 = vld [vmem:[#allocation2 + $0xa78] sm:$0xff]
    %v486 = vld [vmem:[#allocation2 + $0xa80] sm:$0xff]
    %v487 = vld [vmem:[#allocation2 + $0xa88] sm:$0xff]
    %v488 = vld [vmem:[#allocation2 + $0xa90] sm:$0xff]
    %v489 = vld [vmem:[#allocation2 + $0xa98] sm:$0xff]
    %v490 = vld [vmem:[#allocation2 + $0xaa0] sm:$0xff]
    %v491 = vld [vmem:[#allocation2 + $0xaa8] sm:$0xff]
    %v492 = vld [vmem:[#allocation2 + $0xab0] sm:$0xff]
    %v493 = vld [vmem:[#allocation2 + $0xab8] sm:$0xff]
    %v494 = vld [vmem:[#allocation2 + $0xac0] sm:$0xff]
    %v495 = vld [vmem:[#allocation2 + $0xac8] sm:$0xff]
    %v496 = vld [vmem:[#allocation2 + $0xad0] sm:$0xff]
    %v497 = vld [vmem:[#allocation2 + $0xad8] sm:$0xff]
    %v498 = vld [vmem:[#allocation2 + $0xae0] sm:$0xff]
    %v499 = vld [vmem:[#allocation2 + $0xae8] sm:$0xff]
    %v500 = vld [vmem:[#allocation2 + $0xaf0] sm:$0xff]
    %v501 = vld [vmem:[#allocation2 + $0xaf8] sm:$0xff]
    %v502 = vld [vmem:[#allocation2 + $0xb00] sm:$0xff]
    %v503 = vld [vmem:[#allocation2 + $0xb08] sm:$0xff]
    %v504 = vld [vmem:[#allocation2 + $0xb10] sm:$0xff]
    %v505 = vld [vmem:[#allocation2 + $0xb18] sm:$0xff]
    %v506 = vld [vmem:[#allocation2 + $0xb20] sm:$0xff]
    %v507 = vld [vmem:[#allocation2 + $0xb28] sm:$0xff]
    %v508 = vld [vmem:[#allocation2 + $0xb30] sm:$0xff]
    %v509 = vld [vmem:[#allocation2 + $0xb38] sm:$0xff]
    %v510 = vld [vmem:[#allocation2 + $0xb40] sm:$0xff]
    %v511 = vld [vmem:[#allocation2 + $0xb48] sm:$0xff]
    %v512 = vld [vmem:[#allocation2 + $0xb50] sm:$0xff]
    %v513 = vld [vmem:[#allocation2 + $0xb58] sm:$0xff]
    %v514 = vld [vmem:[#allocation2 + $0xb60] sm:$0xff]
    %v515 = vld [vmem:[#allocation2 + $0xb68] sm:$0xff]
    %v516 = vld [vmem:[#allocation2 + $0xb70] sm:$0xff]
    %v517 = vld [vmem:[#allocation2 + $0xb78] sm:$0xff]
    %v518 = vld [vmem:[#allocation2 + $0xb80] sm:$0xff]
    %v519 = vld [vmem:[#allocation2 + $0xb88] sm:$0xff]
    %v520 = vld [vmem:[#allocation2 + $0xb90] sm:$0xff]
    %v521 = vld [vmem:[#allocation2 + $0xb98] sm:$0xff]
    %v522 = vld [vmem:[#allocation2 + $0xba0] sm:$0xff]
    %v523 = vld [vmem:[#allocation2 + $0xba8] sm:$0xff]
    %v524 = vld [vmem:[#allocation2 + $0xbb0] sm:$0xff]
    %v525 = vld [vmem:[#allocation2 + $0xbb8] sm:$0xff]
    %v526 = vld [vmem:[#allocation2 + $0xbc0] sm:$0xff]
    %v527 = vld [vmem:[#allocation2 + $0xbc8] sm:$0xff]
    %v528 = vld [vmem:[#allocation2 + $0xbd0] sm:$0xff]
    %v529 = vld [vmem:[#allocation2 + $0xbd8] sm:$0xff]
    %v530 = vld [vmem:[#allocation2 + $0xbe0] sm:$0xff]
    %v531 = vld [vmem:[#allocation2 + $0xbe8] sm:$0xff]
    %v532 = vld [vmem:[#allocation2 + $0xbf0] sm:$0xff]
    %v533 = vld [vmem:[#allocation2 + $0xbf8] sm:$0xff]
    %v534 = vld [vmem:[#allocation2 + $0xc00] sm:$0xff]
    %v535 = vld [vmem:[#allocation2 + $0xc08] sm:$0xff]
    %v536 = vld [vmem:[#allocation2 + $0xc10] sm:$0xff]
    %v537 = vld [vmem:[#allocation2 + $0xc18] sm:$0xff]
    %v538 = vld [vmem:[#allocation2 + $0xc20] sm:$0xff]
    %v539 = vld [vmem:[#allocation2 + $0xc28] sm:$0xff]
    %v540 = vld [vmem:[#allocation2 + $0xc30] sm:$0xff]
    %v541 = vld [vmem:[#allocation2 + $0xc38] sm:$0xff]
    %v542 = vld [vmem:[#allocation2 + $0xc40] sm:$0xff]
    %v543 = vld [vmem:[#allocation2 + $0xc48] sm:$0xff]
    %v544 = vld [vmem:[#allocation2 + $0xc50] sm:$0xff]
    %v545 = vld [vmem:[#allocation2 + $0xc58] sm:$0xff]
    %v546 = vld [vmem:[#allocation2 + $0xc60] sm:$0xff]
    %v547 = vld [vmem:[#allocation2 + $0xc68] sm:$0xff]
    %v548 = vld [vmem:[#allocation2 + $0xc70] sm:$0xff]
    %v549 = vld [vmem:[#allocation2 + $0xc78] sm:$0xff]
    %v550 = vld [vmem:[#allocation2 + $0xc80] sm:$0xff]
    %v551 = vld [vmem:[#allocation2 + $0xc88] sm:$0xff]
    %v552 = vld [vmem:[#allocation2 + $0xc90] sm:$0xff]
    %v553 = vld [vmem:[#allocation2 + $0xc98] sm:$0xff]
    %v554 = vld [vmem:[#allocation2 + $0xca0] sm:$0xff]
    %v555 = vld [vmem:[#allocation2 + $0xca8] sm:$0xff]
    %v556 = vld [vmem:[#allocation2 + $0xcb0] sm:$0xff]
    %v557 = vld [vmem:[#allocation2 + $0xcb8] sm:$0xff]
    %v558 = vld [vmem:[#allocation2 + $0xcc0] sm:$0xff]
    %v559 = vld [vmem:[#allocation2 + $0xcc8] sm:$0xff]
    %v560 = vld [vmem:[#allocation2 + $0xcd0] sm:$0xff]
    %v561 = vld [vmem:[#allocation2 + $0xcd8] sm:$0xff]
    %v562 = vld [vmem:[#allocation2 + $0xce0] sm:$0xff]
    %v563 = vld [vmem:[#allocation2 + $0xce8] sm:$0xff]
    %v564 = vld [vmem:[#allocation2 + $0xcf0] sm:$0xff]
    %v565 = vld [vmem:[#allocation2 + $0xcf8] sm:$0xff]
    %v566 = vld [vmem:[#allocation2 + $0xd00] sm:$0xff]
    %v567 = vld [vmem:[#allocation2 + $0xd08] sm:$0xff]
    %v568 = vld [vmem:[#allocation2 + $0xd10] sm:$0xff]
    %v569 = vld [vmem:[#allocation2 + $0xd18] sm:$0xff]
    %v570 = vld [vmem:[#allocation2 + $0xd20] sm:$0xff]
    %v571 = vld [vmem:[#allocation2 + $0xd28] sm:$0xff]
    %v572 = vld [vmem:[#allocation2 + $0xd30] sm:$0xff]
    %v573 = vld [vmem:[#allocation2 + $0xd38] sm:$0xff]
    %v574 = vld [vmem:[#allocation2 + $0xd40] sm:$0xff]
    %v575 = vld [vmem:[#allocation2 + $0xd48] sm:$0xff]
    %v576 = vld [vmem:[#allocation2 + $0xd50] sm:$0xff]
    %v577 = vld [vmem:[#allocation2 + $0xd58] sm:$0xff]
    %v578 = vld [vmem:[#allocation2 + $0xd60] sm:$0xff]
    %v579 = vld [vmem:[#allocation2 + $0xd68] sm:$0xff]
    %v580 = vld [vmem:[#allocation2 + $0xd70] sm:$0xff]
    %v581 = vld [vmem:[#allocation2 + $0xd78] sm:$0xff]
    %v582 = vld [vmem:[#allocation2 + $0xd80] sm:$0xff]
    %v583 = vld [vmem:[#allocation2 + $0xd88] sm:$0xff]
    %v584 = vld [vmem:[#allocation2 + $0xd90] sm:$0xff]
    %v585 = vld [vmem:[#allocation2 + $0xd98] sm:$0xff]
    %v586 = vld [vmem:[#allocation2 + $0xda0] sm:$0xff]
    %v587 = vld [vmem:[#allocation2 + $0xda8] sm:$0xff]
    %v588 = vld [vmem:[#allocation2 + $0xdb0] sm:$0xff]
    %v589 = vld [vmem:[#allocation2 + $0xdb8] sm:$0xff]
    %v590 = vld [vmem:[#allocation2 + $0xdc0] sm:$0xff]
    %v591 = vld [vmem:[#allocation2 + $0xdc8] sm:$0xff]
    %v592 = vld [vmem:[#allocation2 + $0xdd0] sm:$0xff]
    %v593 = vld [vmem:[#allocation2 + $0xdd8] sm:$0xff]
    %v594 = vld [vmem:[#allocation2 + $0xde0] sm:$0xff]
    %v595 = vld [vmem:[#allocation2 + $0xde8] sm:$0xff]
    %v596 = vld [vmem:[#allocation2 + $0xdf0] sm:$0xff]
    %v597 = vld [vmem:[#allocation2 + $0xdf8] sm:$0xff]
    %v598 = vld [vmem:[#allocation2 + $0xe00] sm:$0xff]
    %v599 = vld [vmem:[#allocation2 + $0xe08] sm:$0xff]
    %v600 = vld [vmem:[#allocation2 + $0xe10] sm:$0xff]
    %v601 = vld [vmem:[#allocation2 + $0xe18] sm:$0xff]
    %v602 = vld [vmem:[#allocation2 + $0xe20] sm:$0xff]
    %v603 = vld [vmem:[#allocation2 + $0xe28] sm:$0xff]
    %v604 = vld [vmem:[#allocation2 + $0xe30] sm:$0xff]
    %v605 = vld [vmem:[#allocation2 + $0xe38] sm:$0xff]
    %v606 = vld [vmem:[#allocation2 + $0xe40] sm:$0xff]
    %v607 = vld [vmem:[#allocation2 + $0xe48] sm:$0xff]
    %v608 = vld [vmem:[#allocation2 + $0xe50] sm:$0xff]
    %v609 = vld [vmem:[#allocation2 + $0xe58] sm:$0xff]
    %v610 = vld [vmem:[#allocation2 + $0xe60] sm:$0xff]
    %v611 = vld [vmem:[#allocation2 + $0xe68] sm:$0xff]
    %v612 = vld [vmem:[#allocation2 + $0xe70] sm:$0xff]
    %v613 = vld [vmem:[#allocation2 + $0xe78] sm:$0xff]
    %v614 = vld [vmem:[#allocation2 + $0xe80] sm:$0xff]
    %v615 = vld [vmem:[#allocation2 + $0xe88] sm:$0xff]
    %v616 = vld [vmem:[#allocation2 + $0xe90] sm:$0xff]
    %v617 = vld [vmem:[#allocation2 + $0xe98] sm:$0xff]
    %v618 = vld [vmem:[#allocation2 + $0xea0] sm:$0xff]
    %v619 = vld [vmem:[#allocation2 + $0xea8] sm:$0xff]
    %v620 = vld [vmem:[#allocation2 + $0xeb0] sm:$0xff]
    %v621 = vld [vmem:[#allocation2 + $0xeb8] sm:$0xff]
    %v622 = vld [vmem:[#allocation2 + $0xec0] sm:$0xff]
    %v623 = vld [vmem:[#allocation2 + $0xec8] sm:$0xff]
    %v624 = vld [vmem:[#allocation2 + $0xed0] sm:$0xff]
    %v625 = vld [vmem:[#allocation2 + $0xed8] sm:$0xff]
    %v626 = vld [vmem:[#allocation2 + $0xee0] sm:$0xff]
    %v627 = vld [vmem:[#allocation2 + $0xee8] sm:$0xff]
    %v628 = vld [vmem:[#allocation2 + $0xef0] sm:$0xff]
    %v629 = vld [vmem:[#allocation2 + $0xef8] sm:$0xff]
    %v630 = vld [vmem:[#allocation2 + $0xf00] sm:$0xff]
    %v631 = vld [vmem:[#allocation2 + $0xf08] sm:$0xff]
    %v632 = vld [vmem:[#allocation2 + $0xf10] sm:$0xff]
    %v633 = vld [vmem:[#allocation2 + $0xf18] sm:$0xff]
    %v634 = vld [vmem:[#allocation2 + $0xf20] sm:$0xff]
    %v635 = vld [vmem:[#allocation2 + $0xf28] sm:$0xff]
    %v636 = vld [vmem:[#allocation2 + $0xf30] sm:$0xff]
    %v637 = vld [vmem:[#allocation2 + $0xf38] sm:$0xff]
    %v638 = vld [vmem:[#allocation2 + $0xf40] sm:$0xff]
    %v639 = vld [vmem:[#allocation2 + $0xf48] sm:$0xff]
    %v640 = vld [vmem:[#allocation2 + $0xf50] sm:$0xff]
    %v641 = vld [vmem:[#allocation2 + $0xf58] sm:$0xff]
    %v642 = vld [vmem:[#allocation2 + $0xf60] sm:$0xff]
    %v643 = vld [vmem:[#allocation2 + $0xf68] sm:$0xff]
    %v644 = vld [vmem:[#allocation2 + $0xf70] sm:$0xff]
    %v645 = vld [vmem:[#allocation2 + $0xf78] sm:$0xff]
    %v646 = vld [vmem:[#allocation2 + $0xf80] sm:$0xff]
    %v647 = vld [vmem:[#allocation2 + $0xf88] sm:$0xff]
    %v648 = vld [vmem:[#allocation2 + $0xf90] sm:$0xff]
    %v649 = vld [vmem:[#allocation2 + $0xf98] sm:$0xff]
    %v650 = vld [vmem:[#allocation2 + $0xfa0] sm:$0xff]
    %v651 = vld [vmem:[#allocation2 + $0xfa8] sm:$0xff]
    %v652 = vld [vmem:[#allocation2 + $0xfb0] sm:$0xff]
    %v653 = vld [vmem:[#allocation2 + $0xfb8] sm:$0xff]
    %v654 = vld [vmem:[#allocation2 + $0xfc0] sm:$0xff]
    %v655 = vld [vmem:[#allocation2 + $0xfc8] sm:$0xff]
    %v656 = vld [vmem:[#allocation2 + $0xfd0] sm:$0xff]
    %v657 = vld [vmem:[#allocation2 + $0xfd8] sm:$0xff]
    %v658 = vld [vmem:[#allocation2 + $0xfe0] sm:$0xff]
    %v659 = vld [vmem:[#allocation2 + $0xfe8] sm:$0xff]
    %v660 = vld [vmem:[#allocation2 + $0xff0] sm:$0xff]
    %v661 = vld [vmem:[#allocation2 + $0xff8] sm:$0xff]
    %v662 = vld [vmem:[#allocation4] sm:$0xf]
    %v664 = vlaneseq
    %v665 = vshrl.u32 %v664, 7
    %v666 = vsub.s32 0, %v665
    %v667 = vrot.slane %v662, %v666
    %v668 = vlaneseq
    %v669 = vshrl.u32 %v668, 7
    %v670 = vsub.s32 1, %v669
    %v671 = vrot.slane %v662, %v670
    %v672 = vlaneseq
    %v673 = vshrl.u32 %v672, 7
    %v674 = vsub.s32 2, %v673
    %v675 = vrot.slane %v662, %v674
    %v676 = vlaneseq
    %v677 = vshrl.u32 %v676, 7
    %v678 = vsub.s32 3, %v677
    %v679 = vrot.slane %v662, %v678
    %v700 = vunpack.c.l.b16 %v134
    %v701 = vunpack.c.h.b16 %v134
    %v702 = vunpack.c.l.b16 %v135
    %v703 = vunpack.c.h.b16 %v135
    %v704 = vunpack.c.l.b16 %v136
    %v705 = vunpack.c.h.b16 %v136
    %v706 = vunpack.c.l.b16 %v137
    %v707 = vunpack.c.h.b16 %v137
    %v708 = vunpack.c.l.b16 %v138
    %v709 = vunpack.c.h.b16 %v138
    %v710 = vunpack.c.l.b16 %v139
    %v711 = vunpack.c.h.b16 %v139
    %v712 = vunpack.c.l.b16 %v140
    %v713 = vunpack.c.h.b16 %v140
    %v714 = vunpack.c.l.b16 %v141
    %v715 = vunpack.c.h.b16 %v141
    %v716 = vunpack.c.l.b16 %v142
    %v717 = vunpack.c.h.b16 %v142
    %v718 = vunpack.c.l.b16 %v143
    %v719 = vunpack.c.h.b16 %v143
    %v720 = vunpack.c.l.b16 %v144
    %v721 = vunpack.c.h.b16 %v144
    %v722 = vunpack.c.l.b16 %v145
    %v723 = vunpack.c.h.b16 %v145
    %v724 = vunpack.c.l.b16 %v146
    %v725 = vunpack.c.h.b16 %v146
    %v726 = vunpack.c.l.b16 %v147
    %v727 = vunpack.c.h.b16 %v147
    %v728 = vunpack.c.l.b16 %v148
    %v729 = vunpack.c.h.b16 %v148
    %v730 = vunpack.c.l.b16 %v149
    %v731 = vunpack.c.h.b16 %v149
    %v732 = vpack.c.b16 %v716, %v700
    %v733 = vpack.c.b16 %v717, %v701
    %v734 = vpack.c.b16 %v718, %v702
    %v735 = vpack.c.b16 %v719, %v703
    %v736 = vpack.c.b16 %v720, %v704
    %v737 = vpack.c.b16 %v721, %v705
    %v738 = vpack.c.b16 %v722, %v706
    %v739 = vpack.c.b16 %v723, %v707
    %v740 = vpack.c.b16 %v724, %v708
    %v741 = vpack.c.b16 %v725, %v709
    %v742 = vpack.c.b16 %v726, %v710
    %v743 = vpack.c.b16 %v727, %v711
    %v744 = vpack.c.b16 %v728, %v712
    %v745 = vpack.c.b16 %v729, %v713
    %v746 = vpack.c.b16 %v730, %v714
    %v747 = vpack.c.b16 %v731, %v715
    %v1276 = vunpack.c.l.b16 %v150
    %v1277 = vunpack.c.h.b16 %v150
    %v1278 = vunpack.c.l.b16 %v151
    %v1279 = vunpack.c.h.b16 %v151
    %v1280 = vunpack.c.l.b16 %v152
    %v1281 = vunpack.c.h.b16 %v152
    %v1282 = vunpack.c.l.b16 %v153
    %v1283 = vunpack.c.h.b16 %v153
    %v1284 = vunpack.c.l.b16 %v154
    %v1285 = vunpack.c.h.b16 %v154
    %v1286 = vunpack.c.l.b16 %v155
    %v1287 = vunpack.c.h.b16 %v155
    %v1288 = vunpack.c.l.b16 %v156
    %v1289 = vunpack.c.h.b16 %v156
    %v1290 = vunpack.c.l.b16 %v157
    %v1291 = vunpack.c.h.b16 %v157
    %v1292 = vunpack.c.l.b16 %v158
    %v1293 = vunpack.c.h.b16 %v158
    %v1294 = vunpack.c.l.b16 %v159
    %v1295 = vunpack.c.h.b16 %v159
    %v1296 = vunpack.c.l.b16 %v160
    %v1297 = vunpack.c.h.b16 %v160
    %v1298 = vunpack.c.l.b16 %v161
    %v1299 = vunpack.c.h.b16 %v161
    %v1300 = vunpack.c.l.b16 %v162
    %v1301 = vunpack.c.h.b16 %v162
    %v1302 = vunpack.c.l.b16 %v163
    %v1303 = vunpack.c.h.b16 %v163
    %v1304 = vunpack.c.l.b16 %v164
    %v1305 = vunpack.c.h.b16 %v164
    %v1306 = vunpack.c.l.b16 %v165
    %v1307 = vunpack.c.h.b16 %v165
    %v1308 = vunpack.c.l.b16 %v166
    %v1309 = vunpack.c.h.b16 %v166
    %v1310 = vunpack.c.l.b16 %v167
    %v1311 = vunpack.c.h.b16 %v167
    %v1312 = vunpack.c.l.b16 %v168
    %v1313 = vunpack.c.h.b16 %v168
    %v1314 = vunpack.c.l.b16 %v169
    %v1315 = vunpack.c.h.b16 %v169
    %v1316 = vunpack.c.l.b16 %v170
    %v1317 = vunpack.c.h.b16 %v170
    %v1318 = vunpack.c.l.b16 %v171
    %v1319 = vunpack.c.h.b16 %v171
    %v1320 = vunpack.c.l.b16 %v172
    %v1321 = vunpack.c.h.b16 %v172
    %v1322 = vunpack.c.l.b16 %v173
    %v1323 = vunpack.c.h.b16 %v173
    %v1324 = vunpack.c.l.b16 %v174
    %v1325 = vunpack.c.h.b16 %v174
    %v1326 = vunpack.c.l.b16 %v175
    %v1327 = vunpack.c.h.b16 %v175
    %v1328 = vunpack.c.l.b16 %v176
    %v1329 = vunpack.c.h.b16 %v176
    %v1330 = vunpack.c.l.b16 %v177
    %v1331 = vunpack.c.h.b16 %v177
    %v1332 = vunpack.c.l.b16 %v178
    %v1333 = vunpack.c.h.b16 %v178
    %v1334 = vunpack.c.l.b16 %v179
    %v1335 = vunpack.c.h.b16 %v179
    %v1336 = vunpack.c.l.b16 %v180
    %v1337 = vunpack.c.h.b16 %v180
    %v1338 = vunpack.c.l.b16 %v181
    %v1339 = vunpack.c.h.b16 %v181
    %v1340 = vunpack.c.l.b16 %v182
    %v1341 = vunpack.c.h.b16 %v182
    %v1342 = vunpack.c.l.b16 %v183
    %v1343 = vunpack.c.h.b16 %v183
    %v1344 = vunpack.c.l.b16 %v184
    %v1345 = vunpack.c.h.b16 %v184
    %v1346 = vunpack.c.l.b16 %v185
    %v1347 = vunpack.c.h.b16 %v185
    %v1348 = vunpack.c.l.b16 %v186
    %v1349 = vunpack.c.h.b16 %v186
    %v1350 = vunpack.c.l.b16 %v187
    %v1351 = vunpack.c.h.b16 %v187
    %v1352 = vunpack.c.l.b16 %v188
    %v1353 = vunpack.c.h.b16 %v188
    %v1354 = vunpack.c.l.b16 %v189
    %v1355 = vunpack.c.h.b16 %v189
    %v1356 = vunpack.c.l.b16 %v190
    %v1357 = vunpack.c.h.b16 %v190
    %v1358 = vunpack.c.l.b16 %v191
    %v1359 = vunpack.c.h.b16 %v191
    %v1360 = vunpack.c.l.b16 %v192
    %v1361 = vunpack.c.h.b16 %v192
    %v1362 = vunpack.c.l.b16 %v193
    %v1363 = vunpack.c.h.b16 %v193
    %v1364 = vunpack.c.l.b16 %v194
    %v1365 = vunpack.c.h.b16 %v194
    %v1366 = vunpack.c.l.b16 %v195
    %v1367 = vunpack.c.h.b16 %v195
    %v1368 = vunpack.c.l.b16 %v196
    %v1369 = vunpack.c.h.b16 %v196
    %v1370 = vunpack.c.l.b16 %v197
    %v1371 = vunpack.c.h.b16 %v197
    %v1372 = vunpack.c.l.b16 %v198
    %v1373 = vunpack.c.h.b16 %v198
    %v1374 = vunpack.c.l.b16 %v199
    %v1375 = vunpack.c.h.b16 %v199
    %v1376 = vunpack.c.l.b16 %v200
    %v1377 = vunpack.c.h.b16 %v200
    %v1378 = vunpack.c.l.b16 %v201
    %v1379 = vunpack.c.h.b16 %v201
    %v1380 = vunpack.c.l.b16 %v202
    %v1381 = vunpack.c.h.b16 %v202
    %v1382 = vunpack.c.l.b16 %v203
    %v1383 = vunpack.c.h.b16 %v203
    %v1384 = vunpack.c.l.b16 %v204
    %v1385 = vunpack.c.h.b16 %v204
    %v1386 = vunpack.c.l.b16 %v205
    %v1387 = vunpack.c.h.b16 %v205
    %v1388 = vunpack.c.l.b16 %v206
    %v1389 = vunpack.c.h.b16 %v206
    %v1390 = vunpack.c.l.b16 %v207
    %v1391 = vunpack.c.h.b16 %v207
    %v1392 = vunpack.c.l.b16 %v208
    %v1393 = vunpack.c.h.b16 %v208
    %v1394 = vunpack.c.l.b16 %v209
    %v1395 = vunpack.c.h.b16 %v209
    %v1396 = vunpack.c.l.b16 %v210
    %v1397 = vunpack.c.h.b16 %v210
    %v1398 = vunpack.c.l.b16 %v211
    %v1399 = vunpack.c.h.b16 %v211
    %v1400 = vunpack.c.l.b16 %v212
    %v1401 = vunpack.c.h.b16 %v212
    %v1402 = vunpack.c.l.b16 %v213
    %v1403 = vunpack.c.h.b16 %v213
    %v1404 = vunpack.c.l.b16 %v214
    %v1405 = vunpack.c.h.b16 %v214
    %v1406 = vunpack.c.l.b16 %v215
    %v1407 = vunpack.c.h.b16 %v215
    %v1408 = vunpack.c.l.b16 %v216
    %v1409 = vunpack.c.h.b16 %v216
    %v1410 = vunpack.c.l.b16 %v217
    %v1411 = vunpack.c.h.b16 %v217
    %v1412 = vunpack.c.l.b16 %v218
    %v1413 = vunpack.c.h.b16 %v218
    %v1414 = vunpack.c.l.b16 %v219
    %v1415 = vunpack.c.h.b16 %v219
    %v1416 = vunpack.c.l.b16 %v220
    %v1417 = vunpack.c.h.b16 %v220
    %v1418 = vunpack.c.l.b16 %v221
    %v1419 = vunpack.c.h.b16 %v221
    %v1420 = vunpack.c.l.b16 %v222
    %v1421 = vunpack.c.h.b16 %v222
    %v1422 = vunpack.c.l.b16 %v223
    %v1423 = vunpack.c.h.b16 %v223
    %v1424 = vunpack.c.l.b16 %v224
    %v1425 = vunpack.c.h.b16 %v224
    %v1426 = vunpack.c.l.b16 %v225
    %v1427 = vunpack.c.h.b16 %v225
    %v1428 = vunpack.c.l.b16 %v226
    %v1429 = vunpack.c.h.b16 %v226
    %v1430 = vunpack.c.l.b16 %v227
    %v1431 = vunpack.c.h.b16 %v227
    %v1432 = vunpack.c.l.b16 %v228
    %v1433 = vunpack.c.h.b16 %v228
    %v1434 = vunpack.c.l.b16 %v229
    %v1435 = vunpack.c.h.b16 %v229
    %v1436 = vunpack.c.l.b16 %v230
    %v1437 = vunpack.c.h.b16 %v230
    %v1438 = vunpack.c.l.b16 %v231
    %v1439 = vunpack.c.h.b16 %v231
    %v1440 = vunpack.c.l.b16 %v232
    %v1441 = vunpack.c.h.b16 %v232
    %v1442 = vunpack.c.l.b16 %v233
    %v1443 = vunpack.c.h.b16 %v233
    %v1444 = vunpack.c.l.b16 %v234
    %v1445 = vunpack.c.h.b16 %v234
    %v1446 = vunpack.c.l.b16 %v235
    %v1447 = vunpack.c.h.b16 %v235
    %v1448 = vunpack.c.l.b16 %v236
    %v1449 = vunpack.c.h.b16 %v236
    %v1450 = vunpack.c.l.b16 %v237
    %v1451 = vunpack.c.h.b16 %v237
    %v1452 = vunpack.c.l.b16 %v238
    %v1453 = vunpack.c.h.b16 %v238
    %v1454 = vunpack.c.l.b16 %v239
    %v1455 = vunpack.c.h.b16 %v239
    %v1456 = vunpack.c.l.b16 %v240
    %v1457 = vunpack.c.h.b16 %v240
    %v1458 = vunpack.c.l.b16 %v241
    %v1459 = vunpack.c.h.b16 %v241
    %v1460 = vunpack.c.l.b16 %v242
    %v1461 = vunpack.c.h.b16 %v242
    %v1462 = vunpack.c.l.b16 %v243
    %v1463 = vunpack.c.h.b16 %v243
    %v1464 = vunpack.c.l.b16 %v244
    %v1465 = vunpack.c.h.b16 %v244
    %v1466 = vunpack.c.l.b16 %v245
    %v1467 = vunpack.c.h.b16 %v245
    %v1468 = vunpack.c.l.b16 %v246
    %v1469 = vunpack.c.h.b16 %v246
    %v1470 = vunpack.c.l.b16 %v247
    %v1471 = vunpack.c.h.b16 %v247
    %v1472 = vunpack.c.l.b16 %v248
    %v1473 = vunpack.c.h.b16 %v248
    %v1474 = vunpack.c.l.b16 %v249
    %v1475 = vunpack.c.h.b16 %v249
    %v1476 = vunpack.c.l.b16 %v250
    %v1477 = vunpack.c.h.b16 %v250
    %v1478 = vunpack.c.l.b16 %v251
    %v1479 = vunpack.c.h.b16 %v251
    %v1480 = vunpack.c.l.b16 %v252
    %v1481 = vunpack.c.h.b16 %v252
    %v1482 = vunpack.c.l.b16 %v253
    %v1483 = vunpack.c.h.b16 %v253
    %v1484 = vunpack.c.l.b16 %v254
    %v1485 = vunpack.c.h.b16 %v254
    %v1486 = vunpack.c.l.b16 %v255
    %v1487 = vunpack.c.h.b16 %v255
    %v1488 = vunpack.c.l.b16 %v256
    %v1489 = vunpack.c.h.b16 %v256
    %v1490 = vunpack.c.l.b16 %v257
    %v1491 = vunpack.c.h.b16 %v257
    %v1492 = vunpack.c.l.b16 %v258
    %v1493 = vunpack.c.h.b16 %v258
    %v1494 = vunpack.c.l.b16 %v259
    %v1495 = vunpack.c.h.b16 %v259
    %v1496 = vunpack.c.l.b16 %v260
    %v1497 = vunpack.c.h.b16 %v260
    %v1498 = vunpack.c.l.b16 %v261
    %v1499 = vunpack.c.h.b16 %v261
    %v1500 = vunpack.c.l.b16 %v262
    %v1501 = vunpack.c.h.b16 %v262
    %v1502 = vunpack.c.l.b16 %v263
    %v1503 = vunpack.c.h.b16 %v263
    %v1504 = vunpack.c.l.b16 %v264
    %v1505 = vunpack.c.h.b16 %v264
    %v1506 = vunpack.c.l.b16 %v265
    %v1507 = vunpack.c.h.b16 %v265
    %v1508 = vunpack.c.l.b16 %v266
    %v1509 = vunpack.c.h.b16 %v266
    %v1510 = vunpack.c.l.b16 %v267
    %v1511 = vunpack.c.h.b16 %v267
    %v1512 = vunpack.c.l.b16 %v268
    %v1513 = vunpack.c.h.b16 %v268
    %v1514 = vunpack.c.l.b16 %v269
    %v1515 = vunpack.c.h.b16 %v269
    %v1516 = vunpack.c.l.b16 %v270
    %v1517 = vunpack.c.h.b16 %v270
    %v1518 = vunpack.c.l.b16 %v271
    %v1519 = vunpack.c.h.b16 %v271
    %v1520 = vunpack.c.l.b16 %v272
    %v1521 = vunpack.c.h.b16 %v272
    %v1522 = vunpack.c.l.b16 %v273
    %v1523 = vunpack.c.h.b16 %v273
    %v1524 = vunpack.c.l.b16 %v274
    %v1525 = vunpack.c.h.b16 %v274
    %v1526 = vunpack.c.l.b16 %v275
    %v1527 = vunpack.c.h.b16 %v275
    %v1528 = vunpack.c.l.b16 %v276
    %v1529 = vunpack.c.h.b16 %v276
    %v1530 = vunpack.c.l.b16 %v277
    %v1531 = vunpack.c.h.b16 %v277
    %v1532 = vunpack.c.l.b16 %v278
    %v1533 = vunpack.c.h.b16 %v278
    %v1534 = vunpack.c.l.b16 %v279
    %v1535 = vunpack.c.h.b16 %v279
    %v1536 = vunpack.c.l.b16 %v280
    %v1537 = vunpack.c.h.b16 %v280
    %v1538 = vunpack.c.l.b16 %v281
    %v1539 = vunpack.c.h.b16 %v281
    %v1540 = vunpack.c.l.b16 %v282
    %v1541 = vunpack.c.h.b16 %v282
    %v1542 = vunpack.c.l.b16 %v283
    %v1543 = vunpack.c.h.b16 %v283
    %v1544 = vunpack.c.l.b16 %v284
    %v1545 = vunpack.c.h.b16 %v284
    %v1546 = vunpack.c.l.b16 %v285
    %v1547 = vunpack.c.h.b16 %v285
    %v1548 = vunpack.c.l.b16 %v286
    %v1549 = vunpack.c.h.b16 %v286
    %v1550 = vunpack.c.l.b16 %v287
    %v1551 = vunpack.c.h.b16 %v287
    %v1552 = vunpack.c.l.b16 %v288
    %v1553 = vunpack.c.h.b16 %v288
    %v1554 = vunpack.c.l.b16 %v289
    %v1555 = vunpack.c.h.b16 %v289
    %v1556 = vunpack.c.l.b16 %v290
    %v1557 = vunpack.c.h.b16 %v290
    %v1558 = vunpack.c.l.b16 %v291
    %v1559 = vunpack.c.h.b16 %v291
    %v1560 = vunpack.c.l.b16 %v292
    %v1561 = vunpack.c.h.b16 %v292
    %v1562 = vunpack.c.l.b16 %v293
    %v1563 = vunpack.c.h.b16 %v293
    %v1564 = vunpack.c.l.b16 %v294
    %v1565 = vunpack.c.h.b16 %v294
    %v1566 = vunpack.c.l.b16 %v295
    %v1567 = vunpack.c.h.b16 %v295
    %v1568 = vunpack.c.l.b16 %v296
    %v1569 = vunpack.c.h.b16 %v296
    %v1570 = vunpack.c.l.b16 %v297
    %v1571 = vunpack.c.h.b16 %v297
    %v1572 = vunpack.c.l.b16 %v298
    %v1573 = vunpack.c.h.b16 %v298
    %v1574 = vunpack.c.l.b16 %v299
    %v1575 = vunpack.c.h.b16 %v299
    %v1576 = vunpack.c.l.b16 %v300
    %v1577 = vunpack.c.h.b16 %v300
    %v1578 = vunpack.c.l.b16 %v301
    %v1579 = vunpack.c.h.b16 %v301
    %v1580 = vunpack.c.l.b16 %v302
    %v1581 = vunpack.c.h.b16 %v302
    %v1582 = vunpack.c.l.b16 %v303
    %v1583 = vunpack.c.h.b16 %v303
    %v1584 = vunpack.c.l.b16 %v304
    %v1585 = vunpack.c.h.b16 %v304
    %v1586 = vunpack.c.l.b16 %v305
    %v1587 = vunpack.c.h.b16 %v305
    %v1588 = vunpack.c.l.b16 %v306
    %v1589 = vunpack.c.h.b16 %v306
    %v1590 = vunpack.c.l.b16 %v307
    %v1591 = vunpack.c.h.b16 %v307
    %v1592 = vunpack.c.l.b16 %v308
    %v1593 = vunpack.c.h.b16 %v308
    %v1594 = vunpack.c.l.b16 %v309
    %v1595 = vunpack.c.h.b16 %v309
    %v1596 = vunpack.c.l.b16 %v310
    %v1597 = vunpack.c.h.b16 %v310
    %v1598 = vunpack.c.l.b16 %v311
    %v1599 = vunpack.c.h.b16 %v311
    %v1600 = vunpack.c.l.b16 %v312
    %v1601 = vunpack.c.h.b16 %v312
    %v1602 = vunpack.c.l.b16 %v313
    %v1603 = vunpack.c.h.b16 %v313
    %v1604 = vunpack.c.l.b16 %v314
    %v1605 = vunpack.c.h.b16 %v314
    %v1606 = vunpack.c.l.b16 %v315
    %v1607 = vunpack.c.h.b16 %v315
    %v1608 = vunpack.c.l.b16 %v316
    %v1609 = vunpack.c.h.b16 %v316
    %v1610 = vunpack.c.l.b16 %v317
    %v1611 = vunpack.c.h.b16 %v317
    %v1612 = vunpack.c.l.b16 %v318
    %v1613 = vunpack.c.h.b16 %v318
    %v1614 = vunpack.c.l.b16 %v319
    %v1615 = vunpack.c.h.b16 %v319
    %v1616 = vunpack.c.l.b16 %v320
    %v1617 = vunpack.c.h.b16 %v320
    %v1618 = vunpack.c.l.b16 %v321
    %v1619 = vunpack.c.h.b16 %v321
    %v1620 = vunpack.c.l.b16 %v322
    %v1621 = vunpack.c.h.b16 %v322
    %v1622 = vunpack.c.l.b16 %v323
    %v1623 = vunpack.c.h.b16 %v323
    %v1624 = vunpack.c.l.b16 %v324
    %v1625 = vunpack.c.h.b16 %v324
    %v1626 = vunpack.c.l.b16 %v325
    %v1627 = vunpack.c.h.b16 %v325
    %v1628 = vunpack.c.l.b16 %v326
    %v1629 = vunpack.c.h.b16 %v326
    %v1630 = vunpack.c.l.b16 %v327
    %v1631 = vunpack.c.h.b16 %v327
    %v1632 = vunpack.c.l.b16 %v328
    %v1633 = vunpack.c.h.b16 %v328
    %v1634 = vunpack.c.l.b16 %v329
    %v1635 = vunpack.c.h.b16 %v329
    %v1636 = vunpack.c.l.b16 %v330
    %v1637 = vunpack.c.h.b16 %v330
    %v1638 = vunpack.c.l.b16 %v331
    %v1639 = vunpack.c.h.b16 %v331
    %v1640 = vunpack.c.l.b16 %v332
    %v1641 = vunpack.c.h.b16 %v332
    %v1642 = vunpack.c.l.b16 %v333
    %v1643 = vunpack.c.h.b16 %v333
    %v1644 = vunpack.c.l.b16 %v334
    %v1645 = vunpack.c.h.b16 %v334
    %v1646 = vunpack.c.l.b16 %v335
    %v1647 = vunpack.c.h.b16 %v335
    %v1648 = vunpack.c.l.b16 %v336
    %v1649 = vunpack.c.h.b16 %v336
    %v1650 = vunpack.c.l.b16 %v337
    %v1651 = vunpack.c.h.b16 %v337
    %v1652 = vunpack.c.l.b16 %v338
    %v1653 = vunpack.c.h.b16 %v338
    %v1654 = vunpack.c.l.b16 %v339
    %v1655 = vunpack.c.h.b16 %v339
    %v1656 = vunpack.c.l.b16 %v340
    %v1657 = vunpack.c.h.b16 %v340
    %v1658 = vunpack.c.l.b16 %v341
    %v1659 = vunpack.c.h.b16 %v341
    %v1660 = vunpack.c.l.b16 %v342
    %v1661 = vunpack.c.h.b16 %v342
    %v1662 = vunpack.c.l.b16 %v343
    %v1663 = vunpack.c.h.b16 %v343
    %v1664 = vunpack.c.l.b16 %v344
    %v1665 = vunpack.c.h.b16 %v344
    %v1666 = vunpack.c.l.b16 %v345
    %v1667 = vunpack.c.h.b16 %v345
    %v1668 = vunpack.c.l.b16 %v346
    %v1669 = vunpack.c.h.b16 %v346
    %v1670 = vunpack.c.l.b16 %v347
    %v1671 = vunpack.c.h.b16 %v347
    %v1672 = vunpack.c.l.b16 %v348
    %v1673 = vunpack.c.h.b16 %v348
    %v1674 = vunpack.c.l.b16 %v349
    %v1675 = vunpack.c.h.b16 %v349
    %v1676 = vunpack.c.l.b16 %v350
    %v1677 = vunpack.c.h.b16 %v350
    %v1678 = vunpack.c.l.b16 %v351
    %v1679 = vunpack.c.h.b16 %v351
    %v1680 = vunpack.c.l.b16 %v352
    %v1681 = vunpack.c.h.b16 %v352
    %v1682 = vunpack.c.l.b16 %v353
    %v1683 = vunpack.c.h.b16 %v353
    %v1684 = vunpack.c.l.b16 %v354
    %v1685 = vunpack.c.h.b16 %v354
    %v1686 = vunpack.c.l.b16 %v355
    %v1687 = vunpack.c.h.b16 %v355
    %v1688 = vunpack.c.l.b16 %v356
    %v1689 = vunpack.c.h.b16 %v356
    %v1690 = vunpack.c.l.b16 %v357
    %v1691 = vunpack.c.h.b16 %v357
    %v1692 = vunpack.c.l.b16 %v358
    %v1693 = vunpack.c.h.b16 %v358
    %v1694 = vunpack.c.l.b16 %v359
    %v1695 = vunpack.c.h.b16 %v359
    %v1696 = vunpack.c.l.b16 %v360
    %v1697 = vunpack.c.h.b16 %v360
    %v1698 = vunpack.c.l.b16 %v361
    %v1699 = vunpack.c.h.b16 %v361
    %v1700 = vunpack.c.l.b16 %v362
    %v1701 = vunpack.c.h.b16 %v362
    %v1702 = vunpack.c.l.b16 %v363
    %v1703 = vunpack.c.h.b16 %v363
    %v1704 = vunpack.c.l.b16 %v364
    %v1705 = vunpack.c.h.b16 %v364
    %v1706 = vunpack.c.l.b16 %v365
    %v1707 = vunpack.c.h.b16 %v365
    %v1708 = vunpack.c.l.b16 %v366
    %v1709 = vunpack.c.h.b16 %v366
    %v1710 = vunpack.c.l.b16 %v367
    %v1711 = vunpack.c.h.b16 %v367
    %v1712 = vunpack.c.l.b16 %v368
    %v1713 = vunpack.c.h.b16 %v368
    %v1714 = vunpack.c.l.b16 %v369
    %v1715 = vunpack.c.h.b16 %v369
    %v1716 = vunpack.c.l.b16 %v370
    %v1717 = vunpack.c.h.b16 %v370
    %v1718 = vunpack.c.l.b16 %v371
    %v1719 = vunpack.c.h.b16 %v371
    %v1720 = vunpack.c.l.b16 %v372
    %v1721 = vunpack.c.h.b16 %v372
    %v1722 = vunpack.c.l.b16 %v373
    %v1723 = vunpack.c.h.b16 %v373
    %v1724 = vunpack.c.l.b16 %v374
    %v1725 = vunpack.c.h.b16 %v374
    %v1726 = vunpack.c.l.b16 %v375
    %v1727 = vunpack.c.h.b16 %v375
    %v1728 = vunpack.c.l.b16 %v376
    %v1729 = vunpack.c.h.b16 %v376
    %v1730 = vunpack.c.l.b16 %v377
    %v1731 = vunpack.c.h.b16 %v377
    %v1732 = vunpack.c.l.b16 %v378
    %v1733 = vunpack.c.h.b16 %v378
    %v1734 = vunpack.c.l.b16 %v379
    %v1735 = vunpack.c.h.b16 %v379
    %v1736 = vunpack.c.l.b16 %v380
    %v1737 = vunpack.c.h.b16 %v380
    %v1738 = vunpack.c.l.b16 %v381
    %v1739 = vunpack.c.h.b16 %v381
    %v1740 = vunpack.c.l.b16 %v382
    %v1741 = vunpack.c.h.b16 %v382
    %v1742 = vunpack.c.l.b16 %v383
    %v1743 = vunpack.c.h.b16 %v383
    %v1744 = vunpack.c.l.b16 %v384
    %v1745 = vunpack.c.h.b16 %v384
    %v1746 = vunpack.c.l.b16 %v385
    %v1747 = vunpack.c.h.b16 %v385
    %v1748 = vunpack.c.l.b16 %v386
    %v1749 = vunpack.c.h.b16 %v386
    %v1750 = vunpack.c.l.b16 %v387
    %v1751 = vunpack.c.h.b16 %v387
    %v1752 = vunpack.c.l.b16 %v388
    %v1753 = vunpack.c.h.b16 %v388
    %v1754 = vunpack.c.l.b16 %v389
    %v1755 = vunpack.c.h.b16 %v389
    %v1756 = vunpack.c.l.b16 %v390
    %v1757 = vunpack.c.h.b16 %v390
    %v1758 = vunpack.c.l.b16 %v391
    %v1759 = vunpack.c.h.b16 %v391
    %v1760 = vunpack.c.l.b16 %v392
    %v1761 = vunpack.c.h.b16 %v392
    %v1762 = vunpack.c.l.b16 %v393
    %v1763 = vunpack.c.h.b16 %v393
    %v1764 = vunpack.c.l.b16 %v394
    %v1765 = vunpack.c.h.b16 %v394
    %v1766 = vunpack.c.l.b16 %v395
    %v1767 = vunpack.c.h.b16 %v395
    %v1768 = vunpack.c.l.b16 %v396
    %v1769 = vunpack.c.h.b16 %v396
    %v1770 = vunpack.c.l.b16 %v397
    %v1771 = vunpack.c.h.b16 %v397
    %v1772 = vunpack.c.l.b16 %v398
    %v1773 = vunpack.c.h.b16 %v398
    %v1774 = vunpack.c.l.b16 %v399
    %v1775 = vunpack.c.h.b16 %v399
    %v1776 = vunpack.c.l.b16 %v400
    %v1777 = vunpack.c.h.b16 %v400
    %v1778 = vunpack.c.l.b16 %v401
    %v1779 = vunpack.c.h.b16 %v401
    %v1780 = vunpack.c.l.b16 %v402
    %v1781 = vunpack.c.h.b16 %v402
    %v1782 = vunpack.c.l.b16 %v403
    %v1783 = vunpack.c.h.b16 %v403
    %v1784 = vunpack.c.l.b16 %v404
    %v1785 = vunpack.c.h.b16 %v404
    %v1786 = vunpack.c.l.b16 %v405
    %v1787 = vunpack.c.h.b16 %v405
    %v1788 = vunpack.c.l.b16 %v406
    %v1789 = vunpack.c.h.b16 %v406
    %v1790 = vunpack.c.l.b16 %v407
    %v1791 = vunpack.c.h.b16 %v407
    %v1792 = vunpack.c.l.b16 %v408
    %v1793 = vunpack.c.h.b16 %v408
    %v1794 = vunpack.c.l.b16 %v409
    %v1795 = vunpack.c.h.b16 %v409
    %v1796 = vunpack.c.l.b16 %v410
    %v1797 = vunpack.c.h.b16 %v410
    %v1798 = vunpack.c.l.b16 %v411
    %v1799 = vunpack.c.h.b16 %v411
    %v1800 = vunpack.c.l.b16 %v412
    %v1801 = vunpack.c.h.b16 %v412
    %v1802 = vunpack.c.l.b16 %v413
    %v1803 = vunpack.c.h.b16 %v413
    %v1804 = vunpack.c.l.b16 %v414
    %v1805 = vunpack.c.h.b16 %v414
    %v1806 = vunpack.c.l.b16 %v415
    %v1807 = vunpack.c.h.b16 %v415
    %v1808 = vunpack.c.l.b16 %v416
    %v1809 = vunpack.c.h.b16 %v416
    %v1810 = vunpack.c.l.b16 %v417
    %v1811 = vunpack.c.h.b16 %v417
    %v1812 = vunpack.c.l.b16 %v418
    %v1813 = vunpack.c.h.b16 %v418
    %v1814 = vunpack.c.l.b16 %v419
    %v1815 = vunpack.c.h.b16 %v419
    %v1816 = vunpack.c.l.b16 %v420
    %v1817 = vunpack.c.h.b16 %v420
    %v1818 = vunpack.c.l.b16 %v421
    %v1819 = vunpack.c.h.b16 %v421
    %v1820 = vunpack.c.l.b16 %v422
    %v1821 = vunpack.c.h.b16 %v422
    %v1822 = vunpack.c.l.b16 %v423
    %v1823 = vunpack.c.h.b16 %v423
    %v1824 = vunpack.c.l.b16 %v424
    %v1825 = vunpack.c.h.b16 %v424
    %v1826 = vunpack.c.l.b16 %v425
    %v1827 = vunpack.c.h.b16 %v425
    %v1828 = vunpack.c.l.b16 %v426
    %v1829 = vunpack.c.h.b16 %v426
    %v1830 = vunpack.c.l.b16 %v427
    %v1831 = vunpack.c.h.b16 %v427
    %v1832 = vunpack.c.l.b16 %v428
    %v1833 = vunpack.c.h.b16 %v428
    %v1834 = vunpack.c.l.b16 %v429
    %v1835 = vunpack.c.h.b16 %v429
    %v1836 = vunpack.c.l.b16 %v430
    %v1837 = vunpack.c.h.b16 %v430
    %v1838 = vunpack.c.l.b16 %v431
    %v1839 = vunpack.c.h.b16 %v431
    %v1840 = vunpack.c.l.b16 %v432
    %v1841 = vunpack.c.h.b16 %v432
    %v1842 = vunpack.c.l.b16 %v433
    %v1843 = vunpack.c.h.b16 %v433
    %v1844 = vunpack.c.l.b16 %v434
    %v1845 = vunpack.c.h.b16 %v434
    %v1846 = vunpack.c.l.b16 %v435
    %v1847 = vunpack.c.h.b16 %v435
    %v1848 = vunpack.c.l.b16 %v436
    %v1849 = vunpack.c.h.b16 %v436
    %v1850 = vunpack.c.l.b16 %v437
    %v1851 = vunpack.c.h.b16 %v437
    %v1852 = vunpack.c.l.b16 %v438
    %v1853 = vunpack.c.h.b16 %v438
    %v1854 = vunpack.c.l.b16 %v439
    %v1855 = vunpack.c.h.b16 %v439
    %v1856 = vunpack.c.l.b16 %v440
    %v1857 = vunpack.c.h.b16 %v440
    %v1858 = vunpack.c.l.b16 %v441
    %v1859 = vunpack.c.h.b16 %v441
    %v1860 = vunpack.c.l.b16 %v442
    %v1861 = vunpack.c.h.b16 %v442
    %v1862 = vunpack.c.l.b16 %v443
    %v1863 = vunpack.c.h.b16 %v443
    %v1864 = vunpack.c.l.b16 %v444
    %v1865 = vunpack.c.h.b16 %v444
    %v1866 = vunpack.c.l.b16 %v445
    %v1867 = vunpack.c.h.b16 %v445
    %v1868 = vunpack.c.l.b16 %v446
    %v1869 = vunpack.c.h.b16 %v446
    %v1870 = vunpack.c.l.b16 %v447
    %v1871 = vunpack.c.h.b16 %v447
    %v1872 = vunpack.c.l.b16 %v448
    %v1873 = vunpack.c.h.b16 %v448
    %v1874 = vunpack.c.l.b16 %v449
    %v1875 = vunpack.c.h.b16 %v449
    %v1876 = vunpack.c.l.b16 %v450
    %v1877 = vunpack.c.h.b16 %v450
    %v1878 = vunpack.c.l.b16 %v451
    %v1879 = vunpack.c.h.b16 %v451
    %v1880 = vunpack.c.l.b16 %v452
    %v1881 = vunpack.c.h.b16 %v452
    %v1882 = vunpack.c.l.b16 %v453
    %v1883 = vunpack.c.h.b16 %v453
    %v1884 = vunpack.c.l.b16 %v454
    %v1885 = vunpack.c.h.b16 %v454
    %v1886 = vunpack.c.l.b16 %v455
    %v1887 = vunpack.c.h.b16 %v455
    %v1888 = vunpack.c.l.b16 %v456
    %v1889 = vunpack.c.h.b16 %v456
    %v1890 = vunpack.c.l.b16 %v457
    %v1891 = vunpack.c.h.b16 %v457
    %v1892 = vunpack.c.l.b16 %v458
    %v1893 = vunpack.c.h.b16 %v458
    %v1894 = vunpack.c.l.b16 %v459
    %v1895 = vunpack.c.h.b16 %v459
    %v1896 = vunpack.c.l.b16 %v460
    %v1897 = vunpack.c.h.b16 %v460
    %v1898 = vunpack.c.l.b16 %v461
    %v1899 = vunpack.c.h.b16 %v461
    %v1900 = vunpack.c.l.b16 %v462
    %v1901 = vunpack.c.h.b16 %v462
    %v1902 = vunpack.c.l.b16 %v463
    %v1903 = vunpack.c.h.b16 %v463
    %v1904 = vunpack.c.l.b16 %v464
    %v1905 = vunpack.c.h.b16 %v464
    %v1906 = vunpack.c.l.b16 %v465
    %v1907 = vunpack.c.h.b16 %v465
    %v1908 = vunpack.c.l.b16 %v466
    %v1909 = vunpack.c.h.b16 %v466
    %v1910 = vunpack.c.l.b16 %v467
    %v1911 = vunpack.c.h.b16 %v467
    %v1912 = vunpack.c.l.b16 %v468
    %v1913 = vunpack.c.h.b16 %v468
    %v1914 = vunpack.c.l.b16 %v469
    %v1915 = vunpack.c.h.b16 %v469
    %v1916 = vunpack.c.l.b16 %v470
    %v1917 = vunpack.c.h.b16 %v470
    %v1918 = vunpack.c.l.b16 %v471
    %v1919 = vunpack.c.h.b16 %v471
    %v1920 = vunpack.c.l.b16 %v472
    %v1921 = vunpack.c.h.b16 %v472
    %v1922 = vunpack.c.l.b16 %v473
    %v1923 = vunpack.c.h.b16 %v473
    %v1924 = vunpack.c.l.b16 %v474
    %v1925 = vunpack.c.h.b16 %v474
    %v1926 = vunpack.c.l.b16 %v475
    %v1927 = vunpack.c.h.b16 %v475
    %v1928 = vunpack.c.l.b16 %v476
    %v1929 = vunpack.c.h.b16 %v476
    %v1930 = vunpack.c.l.b16 %v477
    %v1931 = vunpack.c.h.b16 %v477
    %v1932 = vunpack.c.l.b16 %v478
    %v1933 = vunpack.c.h.b16 %v478
    %v1934 = vunpack.c.l.b16 %v479
    %v1935 = vunpack.c.h.b16 %v479
    %v1936 = vunpack.c.l.b16 %v480
    %v1937 = vunpack.c.h.b16 %v480
    %v1938 = vunpack.c.l.b16 %v481
    %v1939 = vunpack.c.h.b16 %v481
    %v1940 = vunpack.c.l.b16 %v482
    %v1941 = vunpack.c.h.b16 %v482
    %v1942 = vunpack.c.l.b16 %v483
    %v1943 = vunpack.c.h.b16 %v483
    %v1944 = vunpack.c.l.b16 %v484
    %v1945 = vunpack.c.h.b16 %v484
    %v1946 = vunpack.c.l.b16 %v485
    %v1947 = vunpack.c.h.b16 %v485
    %v1948 = vunpack.c.l.b16 %v486
    %v1949 = vunpack.c.h.b16 %v486
    %v1950 = vunpack.c.l.b16 %v487
    %v1951 = vunpack.c.h.b16 %v487
    %v1952 = vunpack.c.l.b16 %v488
    %v1953 = vunpack.c.h.b16 %v488
    %v1954 = vunpack.c.l.b16 %v489
    %v1955 = vunpack.c.h.b16 %v489
    %v1956 = vunpack.c.l.b16 %v490
    %v1957 = vunpack.c.h.b16 %v490
    %v1958 = vunpack.c.l.b16 %v491
    %v1959 = vunpack.c.h.b16 %v491
    %v1960 = vunpack.c.l.b16 %v492
    %v1961 = vunpack.c.h.b16 %v492
    %v1962 = vunpack.c.l.b16 %v493
    %v1963 = vunpack.c.h.b16 %v493
    %v1964 = vunpack.c.l.b16 %v494
    %v1965 = vunpack.c.h.b16 %v494
    %v1966 = vunpack.c.l.b16 %v495
    %v1967 = vunpack.c.h.b16 %v495
    %v1968 = vunpack.c.l.b16 %v496
    %v1969 = vunpack.c.h.b16 %v496
    %v1970 = vunpack.c.l.b16 %v497
    %v1971 = vunpack.c.h.b16 %v497
    %v1972 = vunpack.c.l.b16 %v498
    %v1973 = vunpack.c.h.b16 %v498
    %v1974 = vunpack.c.l.b16 %v499
    %v1975 = vunpack.c.h.b16 %v499
    %v1976 = vunpack.c.l.b16 %v500
    %v1977 = vunpack.c.h.b16 %v500
    %v1978 = vunpack.c.l.b16 %v501
    %v1979 = vunpack.c.h.b16 %v501
    %v1980 = vunpack.c.l.b16 %v502
    %v1981 = vunpack.c.h.b16 %v502
    %v1982 = vunpack.c.l.b16 %v503
    %v1983 = vunpack.c.h.b16 %v503
    %v1984 = vunpack.c.l.b16 %v504
    %v1985 = vunpack.c.h.b16 %v504
    %v1986 = vunpack.c.l.b16 %v505
    %v1987 = vunpack.c.h.b16 %v505
    %v1988 = vunpack.c.l.b16 %v506
    %v1989 = vunpack.c.h.b16 %v506
    %v1990 = vunpack.c.l.b16 %v507
    %v1991 = vunpack.c.h.b16 %v507
    %v1992 = vunpack.c.l.b16 %v508
    %v1993 = vunpack.c.h.b16 %v508
    %v1994 = vunpack.c.l.b16 %v509
    %v1995 = vunpack.c.h.b16 %v509
    %v1996 = vunpack.c.l.b16 %v510
    %v1997 = vunpack.c.h.b16 %v510
    %v1998 = vunpack.c.l.b16 %v511
    %v1999 = vunpack.c.h.b16 %v511
    %v2000 = vunpack.c.l.b16 %v512
    %v2001 = vunpack.c.h.b16 %v512
    %v2002 = vunpack.c.l.b16 %v513
    %v2003 = vunpack.c.h.b16 %v513
    %v2004 = vunpack.c.l.b16 %v514
    %v2005 = vunpack.c.h.b16 %v514
    %v2006 = vunpack.c.l.b16 %v515
    %v2007 = vunpack.c.h.b16 %v515
    %v2008 = vunpack.c.l.b16 %v516
    %v2009 = vunpack.c.h.b16 %v516
    %v2010 = vunpack.c.l.b16 %v517
    %v2011 = vunpack.c.h.b16 %v517
    %v2012 = vunpack.c.l.b16 %v518
    %v2013 = vunpack.c.h.b16 %v518
    %v2014 = vunpack.c.l.b16 %v519
    %v2015 = vunpack.c.h.b16 %v519
    %v2016 = vunpack.c.l.b16 %v520
    %v2017 = vunpack.c.h.b16 %v520
    %v2018 = vunpack.c.l.b16 %v521
    %v2019 = vunpack.c.h.b16 %v521
    %v2020 = vunpack.c.l.b16 %v522
    %v2021 = vunpack.c.h.b16 %v522
    %v2022 = vunpack.c.l.b16 %v523
    %v2023 = vunpack.c.h.b16 %v523
    %v2024 = vunpack.c.l.b16 %v524
    %v2025 = vunpack.c.h.b16 %v524
    %v2026 = vunpack.c.l.b16 %v525
    %v2027 = vunpack.c.h.b16 %v525
    %v2028 = vunpack.c.l.b16 %v526
    %v2029 = vunpack.c.h.b16 %v526
    %v2030 = vunpack.c.l.b16 %v527
    %v2031 = vunpack.c.h.b16 %v527
    %v2032 = vunpack.c.l.b16 %v528
    %v2033 = vunpack.c.h.b16 %v528
    %v2034 = vunpack.c.l.b16 %v529
    %v2035 = vunpack.c.h.b16 %v529
    %v2036 = vunpack.c.l.b16 %v530
    %v2037 = vunpack.c.h.b16 %v530
    %v2038 = vunpack.c.l.b16 %v531
    %v2039 = vunpack.c.h.b16 %v531
    %v2040 = vunpack.c.l.b16 %v532
    %v2041 = vunpack.c.h.b16 %v532
    %v2042 = vunpack.c.l.b16 %v533
    %v2043 = vunpack.c.h.b16 %v533
    %v2044 = vunpack.c.l.b16 %v534
    %v2045 = vunpack.c.h.b16 %v534
    %v2046 = vunpack.c.l.b16 %v535
    %v2047 = vunpack.c.h.b16 %v535
    %v2048 = vunpack.c.l.b16 %v536
    %v2049 = vunpack.c.h.b16 %v536
    %v2050 = vunpack.c.l.b16 %v537
    %v2051 = vunpack.c.h.b16 %v537
    %v2052 = vunpack.c.l.b16 %v538
    %v2053 = vunpack.c.h.b16 %v538
    %v2054 = vunpack.c.l.b16 %v539
    %v2055 = vunpack.c.h.b16 %v539
    %v2056 = vunpack.c.l.b16 %v540
    %v2057 = vunpack.c.h.b16 %v540
    %v2058 = vunpack.c.l.b16 %v541
    %v2059 = vunpack.c.h.b16 %v541
    %v2060 = vunpack.c.l.b16 %v542
    %v2061 = vunpack.c.h.b16 %v542
    %v2062 = vunpack.c.l.b16 %v543
    %v2063 = vunpack.c.h.b16 %v543
    %v2064 = vunpack.c.l.b16 %v544
    %v2065 = vunpack.c.h.b16 %v544
    %v2066 = vunpack.c.l.b16 %v545
    %v2067 = vunpack.c.h.b16 %v545
    %v2068 = vunpack.c.l.b16 %v546
    %v2069 = vunpack.c.h.b16 %v546
    %v2070 = vunpack.c.l.b16 %v547
    %v2071 = vunpack.c.h.b16 %v547
    %v2072 = vunpack.c.l.b16 %v548
    %v2073 = vunpack.c.h.b16 %v548
    %v2074 = vunpack.c.l.b16 %v549
    %v2075 = vunpack.c.h.b16 %v549
    %v2076 = vunpack.c.l.b16 %v550
    %v2077 = vunpack.c.h.b16 %v550
    %v2078 = vunpack.c.l.b16 %v551
    %v2079 = vunpack.c.h.b16 %v551
    %v2080 = vunpack.c.l.b16 %v552
    %v2081 = vunpack.c.h.b16 %v552
    %v2082 = vunpack.c.l.b16 %v553
    %v2083 = vunpack.c.h.b16 %v553
    %v2084 = vunpack.c.l.b16 %v554
    %v2085 = vunpack.c.h.b16 %v554
    %v2086 = vunpack.c.l.b16 %v555
    %v2087 = vunpack.c.h.b16 %v555
    %v2088 = vunpack.c.l.b16 %v556
    %v2089 = vunpack.c.h.b16 %v556
    %v2090 = vunpack.c.l.b16 %v557
    %v2091 = vunpack.c.h.b16 %v557
    %v2092 = vunpack.c.l.b16 %v558
    %v2093 = vunpack.c.h.b16 %v558
    %v2094 = vunpack.c.l.b16 %v559
    %v2095 = vunpack.c.h.b16 %v559
    %v2096 = vunpack.c.l.b16 %v560
    %v2097 = vunpack.c.h.b16 %v560
    %v2098 = vunpack.c.l.b16 %v561
    %v2099 = vunpack.c.h.b16 %v561
    %v2100 = vunpack.c.l.b16 %v562
    %v2101 = vunpack.c.h.b16 %v562
    %v2102 = vunpack.c.l.b16 %v563
    %v2103 = vunpack.c.h.b16 %v563
    %v2104 = vunpack.c.l.b16 %v564
    %v2105 = vunpack.c.h.b16 %v564
    %v2106 = vunpack.c.l.b16 %v565
    %v2107 = vunpack.c.h.b16 %v565
    %v2108 = vunpack.c.l.b16 %v566
    %v2109 = vunpack.c.h.b16 %v566
    %v2110 = vunpack.c.l.b16 %v567
    %v2111 = vunpack.c.h.b16 %v567
    %v2112 = vunpack.c.l.b16 %v568
    %v2113 = vunpack.c.h.b16 %v568
    %v2114 = vunpack.c.l.b16 %v569
    %v2115 = vunpack.c.h.b16 %v569
    %v2116 = vunpack.c.l.b16 %v570
    %v2117 = vunpack.c.h.b16 %v570
    %v2118 = vunpack.c.l.b16 %v571
    %v2119 = vunpack.c.h.b16 %v571
    %v2120 = vunpack.c.l.b16 %v572
    %v2121 = vunpack.c.h.b16 %v572
    %v2122 = vunpack.c.l.b16 %v573
    %v2123 = vunpack.c.h.b16 %v573
    %v2124 = vunpack.c.l.b16 %v574
    %v2125 = vunpack.c.h.b16 %v574
    %v2126 = vunpack.c.l.b16 %v575
    %v2127 = vunpack.c.h.b16 %v575
    %v2128 = vunpack.c.l.b16 %v576
    %v2129 = vunpack.c.h.b16 %v576
    %v2130 = vunpack.c.l.b16 %v577
    %v2131 = vunpack.c.h.b16 %v577
    %v2132 = vunpack.c.l.b16 %v578
    %v2133 = vunpack.c.h.b16 %v578
    %v2134 = vunpack.c.l.b16 %v579
    %v2135 = vunpack.c.h.b16 %v579
    %v2136 = vunpack.c.l.b16 %v580
    %v2137 = vunpack.c.h.b16 %v580
    %v2138 = vunpack.c.l.b16 %v581
    %v2139 = vunpack.c.h.b16 %v581
    %v2140 = vunpack.c.l.b16 %v582
    %v2141 = vunpack.c.h.b16 %v582
    %v2142 = vunpack.c.l.b16 %v583
    %v2143 = vunpack.c.h.b16 %v583
    %v2144 = vunpack.c.l.b16 %v584
    %v2145 = vunpack.c.h.b16 %v584
    %v2146 = vunpack.c.l.b16 %v585
    %v2147 = vunpack.c.h.b16 %v585
    %v2148 = vunpack.c.l.b16 %v586
    %v2149 = vunpack.c.h.b16 %v586
    %v2150 = vunpack.c.l.b16 %v587
    %v2151 = vunpack.c.h.b16 %v587
    %v2152 = vunpack.c.l.b16 %v588
    %v2153 = vunpack.c.h.b16 %v588
    %v2154 = vunpack.c.l.b16 %v589
    %v2155 = vunpack.c.h.b16 %v589
    %v2156 = vunpack.c.l.b16 %v590
    %v2157 = vunpack.c.h.b16 %v590
    %v2158 = vunpack.c.l.b16 %v591
    %v2159 = vunpack.c.h.b16 %v591
    %v2160 = vunpack.c.l.b16 %v592
    %v2161 = vunpack.c.h.b16 %v592
    %v2162 = vunpack.c.l.b16 %v593
    %v2163 = vunpack.c.h.b16 %v593
    %v2164 = vunpack.c.l.b16 %v594
    %v2165 = vunpack.c.h.b16 %v594
    %v2166 = vunpack.c.l.b16 %v595
    %v2167 = vunpack.c.h.b16 %v595
    %v2168 = vunpack.c.l.b16 %v596
    %v2169 = vunpack.c.h.b16 %v596
    %v2170 = vunpack.c.l.b16 %v597
    %v2171 = vunpack.c.h.b16 %v597
    %v2172 = vunpack.c.l.b16 %v598
    %v2173 = vunpack.c.h.b16 %v598
    %v2174 = vunpack.c.l.b16 %v599
    %v2175 = vunpack.c.h.b16 %v599
    %v2176 = vunpack.c.l.b16 %v600
    %v2177 = vunpack.c.h.b16 %v600
    %v2178 = vunpack.c.l.b16 %v601
    %v2179 = vunpack.c.h.b16 %v601
    %v2180 = vunpack.c.l.b16 %v602
    %v2181 = vunpack.c.h.b16 %v602
    %v2182 = vunpack.c.l.b16 %v603
    %v2183 = vunpack.c.h.b16 %v603
    %v2184 = vunpack.c.l.b16 %v604
    %v2185 = vunpack.c.h.b16 %v604
    %v2186 = vunpack.c.l.b16 %v605
    %v2187 = vunpack.c.h.b16 %v605
    %v2188 = vunpack.c.l.b16 %v606
    %v2189 = vunpack.c.h.b16 %v606
    %v2190 = vunpack.c.l.b16 %v607
    %v2191 = vunpack.c.h.b16 %v607
    %v2192 = vunpack.c.l.b16 %v608
    %v2193 = vunpack.c.h.b16 %v608
    %v2194 = vunpack.c.l.b16 %v609
    %v2195 = vunpack.c.h.b16 %v609
    %v2196 = vunpack.c.l.b16 %v610
    %v2197 = vunpack.c.h.b16 %v610
    %v2198 = vunpack.c.l.b16 %v611
    %v2199 = vunpack.c.h.b16 %v611
    %v2200 = vunpack.c.l.b16 %v612
    %v2201 = vunpack.c.h.b16 %v612
    %v2202 = vunpack.c.l.b16 %v613
    %v2203 = vunpack.c.h.b16 %v613
    %v2204 = vunpack.c.l.b16 %v614
    %v2205 = vunpack.c.h.b16 %v614
    %v2206 = vunpack.c.l.b16 %v615
    %v2207 = vunpack.c.h.b16 %v615
    %v2208 = vunpack.c.l.b16 %v616
    %v2209 = vunpack.c.h.b16 %v616
    %v2210 = vunpack.c.l.b16 %v617
    %v2211 = vunpack.c.h.b16 %v617
    %v2212 = vunpack.c.l.b16 %v618
    %v2213 = vunpack.c.h.b16 %v618
    %v2214 = vunpack.c.l.b16 %v619
    %v2215 = vunpack.c.h.b16 %v619
    %v2216 = vunpack.c.l.b16 %v620
    %v2217 = vunpack.c.h.b16 %v620
    %v2218 = vunpack.c.l.b16 %v621
    %v2219 = vunpack.c.h.b16 %v621
    %v2220 = vunpack.c.l.b16 %v622
    %v2221 = vunpack.c.h.b16 %v622
    %v2222 = vunpack.c.l.b16 %v623
    %v2223 = vunpack.c.h.b16 %v623
    %v2224 = vunpack.c.l.b16 %v624
    %v2225 = vunpack.c.h.b16 %v624
    %v2226 = vunpack.c.l.b16 %v625
    %v2227 = vunpack.c.h.b16 %v625
    %v2228 = vunpack.c.l.b16 %v626
    %v2229 = vunpack.c.h.b16 %v626
    %v2230 = vunpack.c.l.b16 %v627
    %v2231 = vunpack.c.h.b16 %v627
    %v2232 = vunpack.c.l.b16 %v628
    %v2233 = vunpack.c.h.b16 %v628
    %v2234 = vunpack.c.l.b16 %v629
    %v2235 = vunpack.c.h.b16 %v629
    %v2236 = vunpack.c.l.b16 %v630
    %v2237 = vunpack.c.h.b16 %v630
    %v2238 = vunpack.c.l.b16 %v631
    %v2239 = vunpack.c.h.b16 %v631
    %v2240 = vunpack.c.l.b16 %v632
    %v2241 = vunpack.c.h.b16 %v632
    %v2242 = vunpack.c.l.b16 %v633
    %v2243 = vunpack.c.h.b16 %v633
    %v2244 = vunpack.c.l.b16 %v634
    %v2245 = vunpack.c.h.b16 %v634
    %v2246 = vunpack.c.l.b16 %v635
    %v2247 = vunpack.c.h.b16 %v635
    %v2248 = vunpack.c.l.b16 %v636
    %v2249 = vunpack.c.h.b16 %v636
    %v2250 = vunpack.c.l.b16 %v637
    %v2251 = vunpack.c.h.b16 %v637
    %v2252 = vunpack.c.l.b16 %v638
    %v2253 = vunpack.c.h.b16 %v638
    %v2254 = vunpack.c.l.b16 %v639
    %v2255 = vunpack.c.h.b16 %v639
    %v2256 = vunpack.c.l.b16 %v640
    %v2257 = vunpack.c.h.b16 %v640
    %v2258 = vunpack.c.l.b16 %v641
    %v2259 = vunpack.c.h.b16 %v641
    %v2260 = vunpack.c.l.b16 %v642
    %v2261 = vunpack.c.h.b16 %v642
    %v2262 = vunpack.c.l.b16 %v643
    %v2263 = vunpack.c.h.b16 %v643
    %v2264 = vunpack.c.l.b16 %v644
    %v2265 = vunpack.c.h.b16 %v644
    %v2266 = vunpack.c.l.b16 %v645
    %v2267 = vunpack.c.h.b16 %v645
    %v2268 = vunpack.c.l.b16 %v646
    %v2269 = vunpack.c.h.b16 %v646
    %v2270 = vunpack.c.l.b16 %v647
    %v2271 = vunpack.c.h.b16 %v647
    %v2272 = vunpack.c.l.b16 %v648
    %v2273 = vunpack.c.h.b16 %v648
    %v2274 = vunpack.c.l.b16 %v649
    %v2275 = vunpack.c.h.b16 %v649
    %v2276 = vunpack.c.l.b16 %v650
    %v2277 = vunpack.c.h.b16 %v650
    %v2278 = vunpack.c.l.b16 %v651
    %v2279 = vunpack.c.h.b16 %v651
    %v2280 = vunpack.c.l.b16 %v652
    %v2281 = vunpack.c.h.b16 %v652
    %v2282 = vunpack.c.l.b16 %v653
    %v2283 = vunpack.c.h.b16 %v653
    %v2284 = vunpack.c.l.b16 %v654
    %v2285 = vunpack.c.h.b16 %v654
    %v2286 = vunpack.c.l.b16 %v655
    %v2287 = vunpack.c.h.b16 %v655
    %v2288 = vunpack.c.l.b16 %v656
    %v2289 = vunpack.c.h.b16 %v656
    %v2290 = vunpack.c.l.b16 %v657
    %v2291 = vunpack.c.h.b16 %v657
    %v2292 = vunpack.c.l.b16 %v658
    %v2293 = vunpack.c.h.b16 %v658
    %v2294 = vunpack.c.l.b16 %v659
    %v2295 = vunpack.c.h.b16 %v659
    %v2296 = vunpack.c.l.b16 %v660
    %v2297 = vunpack.c.h.b16 %v660
    %v2298 = vunpack.c.l.b16 %v661
    %v2299 = vunpack.c.h.b16 %v661
    %v2300 = vpack.c.b16 %v1280, %v1276
    %v2301 = vpack.c.b16 %v1281, %v1277
    %v2302 = vpack.c.b16 %v1282, %v1278
    %v2303 = vpack.c.b16 %v1283, %v1279
    %v2304 = vpack.c.b16 %v1288, %v1284
    %v2305 = vpack.c.b16 %v1289, %v1285
    %v2306 = vpack.c.b16 %v1290, %v1286
    %v2307 = vpack.c.b16 %v1291, %v1287
    %v2308 = vpack.c.b16 %v1296, %v1292
    %v2309 = vpack.c.b16 %v1297, %v1293
    %v2310 = vpack.c.b16 %v1298, %v1294
    %v2311 = vpack.c.b16 %v1299, %v1295
    %v2312 = vpack.c.b16 %v1304, %v1300
    %v2313 = vpack.c.b16 %v1305, %v1301
    %v2314 = vpack.c.b16 %v1306, %v1302
    %v2315 = vpack.c.b16 %v1307, %v1303
    %v2316 = vpack.c.b16 %v1312, %v1308
    %v2317 = vpack.c.b16 %v1313, %v1309
    %v2318 = vpack.c.b16 %v1314, %v1310
    %v2319 = vpack.c.b16 %v1315, %v1311
    %v2320 = vpack.c.b16 %v1320, %v1316
    %v2321 = vpack.c.b16 %v1321, %v1317
    %v2322 = vpack.c.b16 %v1322, %v1318
    %v2323 = vpack.c.b16 %v1323, %v1319
    %v2324 = vpack.c.b16 %v1328, %v1324
    %v2325 = vpack.c.b16 %v1329, %v1325
    %v2326 = vpack.c.b16 %v1330, %v1326
    %v2327 = vpack.c.b16 %v1331, %v1327
    %v2328 = vpack.c.b16 %v1336, %v1332
    %v2329 = vpack.c.b16 %v1337, %v1333
    %v2330 = vpack.c.b16 %v1338, %v1334
    %v2331 = vpack.c.b16 %v1339, %v1335
    %v2332 = vpack.c.b16 %v1344, %v1340
    %v2333 = vpack.c.b16 %v1345, %v1341
    %v2334 = vpack.c.b16 %v1346, %v1342
    %v2335 = vpack.c.b16 %v1347, %v1343
    %v2336 = vpack.c.b16 %v1352, %v1348
    %v2337 = vpack.c.b16 %v1353, %v1349
    %v2338 = vpack.c.b16 %v1354, %v1350
    %v2339 = vpack.c.b16 %v1355, %v1351
    %v2340 = vpack.c.b16 %v1360, %v1356
    %v2341 = vpack.c.b16 %v1361, %v1357
    %v2342 = vpack.c.b16 %v1362, %v1358
    %v2343 = vpack.c.b16 %v1363, %v1359
    %v2344 = vpack.c.b16 %v1368, %v1364
    %v2345 = vpack.c.b16 %v1369, %v1365
    %v2346 = vpack.c.b16 %v1370, %v1366
    %v2347 = vpack.c.b16 %v1371, %v1367
    %v2348 = vpack.c.b16 %v1376, %v1372
    %v2349 = vpack.c.b16 %v1377, %v1373
    %v2350 = vpack.c.b16 %v1378, %v1374
    %v2351 = vpack.c.b16 %v1379, %v1375
    %v2352 = vpack.c.b16 %v1384, %v1380
    %v2353 = vpack.c.b16 %v1385, %v1381
    %v2354 = vpack.c.b16 %v1386, %v1382
    %v2355 = vpack.c.b16 %v1387, %v1383
    %v2356 = vpack.c.b16 %v1392, %v1388
    %v2357 = vpack.c.b16 %v1393, %v1389
    %v2358 = vpack.c.b16 %v1394, %v1390
    %v2359 = vpack.c.b16 %v1395, %v1391
    %v2360 = vpack.c.b16 %v1400, %v1396
    %v2361 = vpack.c.b16 %v1401, %v1397
    %v2362 = vpack.c.b16 %v1402, %v1398
    %v2363 = vpack.c.b16 %v1403, %v1399
    %v2364 = vpack.c.b16 %v1408, %v1404
    %v2365 = vpack.c.b16 %v1409, %v1405
    %v2366 = vpack.c.b16 %v1410, %v1406
    %v2367 = vpack.c.b16 %v1411, %v1407
    %v2368 = vpack.c.b16 %v1416, %v1412
    %v2369 = vpack.c.b16 %v1417, %v1413
    %v2370 = vpack.c.b16 %v1418, %v1414
    %v2371 = vpack.c.b16 %v1419, %v1415
    %v2372 = vpack.c.b16 %v1424, %v1420
    %v2373 = vpack.c.b16 %v1425, %v1421
    %v2374 = vpack.c.b16 %v1426, %v1422
    %v2375 = vpack.c.b16 %v1427, %v1423
    %v2376 = vpack.c.b16 %v1432, %v1428
    %v2377 = vpack.c.b16 %v1433, %v1429
    %v2378 = vpack.c.b16 %v1434, %v1430
    %v2379 = vpack.c.b16 %v1435, %v1431
    %v2380 = vpack.c.b16 %v1440, %v1436
    %v2381 = vpack.c.b16 %v1441, %v1437
    %v2382 = vpack.c.b16 %v1442, %v1438
    %v2383 = vpack.c.b16 %v1443, %v1439
    %v2384 = vpack.c.b16 %v1448, %v1444
    %v2385 = vpack.c.b16 %v1449, %v1445
    %v2386 = vpack.c.b16 %v1450, %v1446
    %v2387 = vpack.c.b16 %v1451, %v1447
    %v2388 = vpack.c.b16 %v1456, %v1452
    %v2389 = vpack.c.b16 %v1457, %v1453
    %v2390 = vpack.c.b16 %v1458, %v1454
    %v2391 = vpack.c.b16 %v1459, %v1455
    %v2392 = vpack.c.b16 %v1464, %v1460
    %v2393 = vpack.c.b16 %v1465, %v1461
    %v2394 = vpack.c.b16 %v1466, %v1462
    %v2395 = vpack.c.b16 %v1467, %v1463
    %v2396 = vpack.c.b16 %v1472, %v1468
    %v2397 = vpack.c.b16 %v1473, %v1469
    %v2398 = vpack.c.b16 %v1474, %v1470
    %v2399 = vpack.c.b16 %v1475, %v1471
    %v2400 = vpack.c.b16 %v1480, %v1476
    %v2401 = vpack.c.b16 %v1481, %v1477
    %v2402 = vpack.c.b16 %v1482, %v1478
    %v2403 = vpack.c.b16 %v1483, %v1479
    %v2404 = vpack.c.b16 %v1488, %v1484
    %v2405 = vpack.c.b16 %v1489, %v1485
    %v2406 = vpack.c.b16 %v1490, %v1486
    %v2407 = vpack.c.b16 %v1491, %v1487
    %v2408 = vpack.c.b16 %v1496, %v1492
    %v2409 = vpack.c.b16 %v1497, %v1493
    %v2410 = vpack.c.b16 %v1498, %v1494
    %v2411 = vpack.c.b16 %v1499, %v1495
    %v2412 = vpack.c.b16 %v1504, %v1500
    %v2413 = vpack.c.b16 %v1505, %v1501
    %v2414 = vpack.c.b16 %v1506, %v1502
    %v2415 = vpack.c.b16 %v1507, %v1503
    %v2416 = vpack.c.b16 %v1512, %v1508
    %v2417 = vpack.c.b16 %v1513, %v1509
    %v2418 = vpack.c.b16 %v1514, %v1510
    %v2419 = vpack.c.b16 %v1515, %v1511
    %v2420 = vpack.c.b16 %v1520, %v1516
    %v2421 = vpack.c.b16 %v1521, %v1517
    %v2422 = vpack.c.b16 %v1522, %v1518
    %v2423 = vpack.c.b16 %v1523, %v1519
    %v2424 = vpack.c.b16 %v1528, %v1524
    %v2425 = vpack.c.b16 %v1529, %v1525
    %v2426 = vpack.c.b16 %v1530, %v1526
    %v2427 = vpack.c.b16 %v1531, %v1527
    %v2428 = vpack.c.b16 %v1536, %v1532
    %v2429 = vpack.c.b16 %v1537, %v1533
    %v2430 = vpack.c.b16 %v1538, %v1534
    %v2431 = vpack.c.b16 %v1539, %v1535
    %v2432 = vpack.c.b16 %v1544, %v1540
    %v2433 = vpack.c.b16 %v1545, %v1541
    %v2434 = vpack.c.b16 %v1546, %v1542
    %v2435 = vpack.c.b16 %v1547, %v1543
    %v2436 = vpack.c.b16 %v1552, %v1548
    %v2437 = vpack.c.b16 %v1553, %v1549
    %v2438 = vpack.c.b16 %v1554, %v1550
    %v2439 = vpack.c.b16 %v1555, %v1551
    %v2440 = vpack.c.b16 %v1560, %v1556
    %v2441 = vpack.c.b16 %v1561, %v1557
    %v2442 = vpack.c.b16 %v1562, %v1558
    %v2443 = vpack.c.b16 %v1563, %v1559
    %v2444 = vpack.c.b16 %v1568, %v1564
    %v2445 = vpack.c.b16 %v1569, %v1565
    %v2446 = vpack.c.b16 %v1570, %v1566
    %v2447 = vpack.c.b16 %v1571, %v1567
    %v2448 = vpack.c.b16 %v1576, %v1572
    %v2449 = vpack.c.b16 %v1577, %v1573
    %v2450 = vpack.c.b16 %v1578, %v1574
    %v2451 = vpack.c.b16 %v1579, %v1575
    %v2452 = vpack.c.b16 %v1584, %v1580
    %v2453 = vpack.c.b16 %v1585, %v1581
    %v2454 = vpack.c.b16 %v1586, %v1582
    %v2455 = vpack.c.b16 %v1587, %v1583
    %v2456 = vpack.c.b16 %v1592, %v1588
    %v2457 = vpack.c.b16 %v1593, %v1589
    %v2458 = vpack.c.b16 %v1594, %v1590
    %v2459 = vpack.c.b16 %v1595, %v1591
    %v2460 = vpack.c.b16 %v1600, %v1596
    %v2461 = vpack.c.b16 %v1601, %v1597
    %v2462 = vpack.c.b16 %v1602, %v1598
    %v2463 = vpack.c.b16 %v1603, %v1599
    %v2464 = vpack.c.b16 %v1608, %v1604
    %v2465 = vpack.c.b16 %v1609, %v1605
    %v2466 = vpack.c.b16 %v1610, %v1606
    %v2467 = vpack.c.b16 %v1611, %v1607
    %v2468 = vpack.c.b16 %v1616, %v1612
    %v2469 = vpack.c.b16 %v1617, %v1613
    %v2470 = vpack.c.b16 %v1618, %v1614
    %v2471 = vpack.c.b16 %v1619, %v1615
    %v2472 = vpack.c.b16 %v1624, %v1620
    %v2473 = vpack.c.b16 %v1625, %v1621
    %v2474 = vpack.c.b16 %v1626, %v1622
    %v2475 = vpack.c.b16 %v1627, %v1623
    %v2476 = vpack.c.b16 %v1632, %v1628
    %v2477 = vpack.c.b16 %v1633, %v1629
    %v2478 = vpack.c.b16 %v1634, %v1630
    %v2479 = vpack.c.b16 %v1635, %v1631
    %v2480 = vpack.c.b16 %v1640, %v1636
    %v2481 = vpack.c.b16 %v1641, %v1637
    %v2482 = vpack.c.b16 %v1642, %v1638
    %v2483 = vpack.c.b16 %v1643, %v1639
    %v2484 = vpack.c.b16 %v1648, %v1644
    %v2485 = vpack.c.b16 %v1649, %v1645
    %v2486 = vpack.c.b16 %v1650, %v1646
    %v2487 = vpack.c.b16 %v1651, %v1647
    %v2488 = vpack.c.b16 %v1656, %v1652
    %v2489 = vpack.c.b16 %v1657, %v1653
    %v2490 = vpack.c.b16 %v1658, %v1654
    %v2491 = vpack.c.b16 %v1659, %v1655
    %v2492 = vpack.c.b16 %v1664, %v1660
    %v2493 = vpack.c.b16 %v1665, %v1661
    %v2494 = vpack.c.b16 %v1666, %v1662
    %v2495 = vpack.c.b16 %v1667, %v1663
    %v2496 = vpack.c.b16 %v1672, %v1668
    %v2497 = vpack.c.b16 %v1673, %v1669
    %v2498 = vpack.c.b16 %v1674, %v1670
    %v2499 = vpack.c.b16 %v1675, %v1671
    %v2500 = vpack.c.b16 %v1680, %v1676
    %v2501 = vpack.c.b16 %v1681, %v1677
    %v2502 = vpack.c.b16 %v1682, %v1678
    %v2503 = vpack.c.b16 %v1683, %v1679
    %v2504 = vpack.c.b16 %v1688, %v1684
    %v2505 = vpack.c.b16 %v1689, %v1685
    %v2506 = vpack.c.b16 %v1690, %v1686
    %v2507 = vpack.c.b16 %v1691, %v1687
    %v2508 = vpack.c.b16 %v1696, %v1692
    %v2509 = vpack.c.b16 %v1697, %v1693
    %v2510 = vpack.c.b16 %v1698, %v1694
    %v2511 = vpack.c.b16 %v1699, %v1695
    %v2512 = vpack.c.b16 %v1704, %v1700
    %v2513 = vpack.c.b16 %v1705, %v1701
    %v2514 = vpack.c.b16 %v1706, %v1702
    %v2515 = vpack.c.b16 %v1707, %v1703
    %v2516 = vpack.c.b16 %v1712, %v1708
    %v2517 = vpack.c.b16 %v1713, %v1709
    %v2518 = vpack.c.b16 %v1714, %v1710
    %v2519 = vpack.c.b16 %v1715, %v1711
    %v2520 = vpack.c.b16 %v1720, %v1716
    %v2521 = vpack.c.b16 %v1721, %v1717
    %v2522 = vpack.c.b16 %v1722, %v1718
    %v2523 = vpack.c.b16 %v1723, %v1719
    %v2524 = vpack.c.b16 %v1728, %v1724
    %v2525 = vpack.c.b16 %v1729, %v1725
    %v2526 = vpack.c.b16 %v1730, %v1726
    %v2527 = vpack.c.b16 %v1731, %v1727
    %v2528 = vpack.c.b16 %v1736, %v1732
    %v2529 = vpack.c.b16 %v1737, %v1733
    %v2530 = vpack.c.b16 %v1738, %v1734
    %v2531 = vpack.c.b16 %v1739, %v1735
    %v2532 = vpack.c.b16 %v1744, %v1740
    %v2533 = vpack.c.b16 %v1745, %v1741
    %v2534 = vpack.c.b16 %v1746, %v1742
    %v2535 = vpack.c.b16 %v1747, %v1743
    %v2536 = vpack.c.b16 %v1752, %v1748
    %v2537 = vpack.c.b16 %v1753, %v1749
    %v2538 = vpack.c.b16 %v1754, %v1750
    %v2539 = vpack.c.b16 %v1755, %v1751
    %v2540 = vpack.c.b16 %v1760, %v1756
    %v2541 = vpack.c.b16 %v1761, %v1757
    %v2542 = vpack.c.b16 %v1762, %v1758
    %v2543 = vpack.c.b16 %v1763, %v1759
    %v2544 = vpack.c.b16 %v1768, %v1764
    %v2545 = vpack.c.b16 %v1769, %v1765
    %v2546 = vpack.c.b16 %v1770, %v1766
    %v2547 = vpack.c.b16 %v1771, %v1767
    %v2548 = vpack.c.b16 %v1776, %v1772
    %v2549 = vpack.c.b16 %v1777, %v1773
    %v2550 = vpack.c.b16 %v1778, %v1774
    %v2551 = vpack.c.b16 %v1779, %v1775
    %v2552 = vpack.c.b16 %v1784, %v1780
    %v2553 = vpack.c.b16 %v1785, %v1781
    %v2554 = vpack.c.b16 %v1786, %v1782
    %v2555 = vpack.c.b16 %v1787, %v1783
    %v2556 = vpack.c.b16 %v1792, %v1788
    %v2557 = vpack.c.b16 %v1793, %v1789
    %v2558 = vpack.c.b16 %v1794, %v1790
    %v2559 = vpack.c.b16 %v1795, %v1791
    %v2560 = vpack.c.b16 %v1800, %v1796
    %v2561 = vpack.c.b16 %v1801, %v1797
    %v2562 = vpack.c.b16 %v1802, %v1798
    %v2563 = vpack.c.b16 %v1803, %v1799
    %v2564 = vpack.c.b16 %v1808, %v1804
    %v2565 = vpack.c.b16 %v1809, %v1805
    %v2566 = vpack.c.b16 %v1810, %v1806
    %v2567 = vpack.c.b16 %v1811, %v1807
    %v2568 = vpack.c.b16 %v1816, %v1812
    %v2569 = vpack.c.b16 %v1817, %v1813
    %v2570 = vpack.c.b16 %v1818, %v1814
    %v2571 = vpack.c.b16 %v1819, %v1815
    %v2572 = vpack.c.b16 %v1824, %v1820
    %v2573 = vpack.c.b16 %v1825, %v1821
    %v2574 = vpack.c.b16 %v1826, %v1822
    %v2575 = vpack.c.b16 %v1827, %v1823
    %v2576 = vpack.c.b16 %v1832, %v1828
    %v2577 = vpack.c.b16 %v1833, %v1829
    %v2578 = vpack.c.b16 %v1834, %v1830
    %v2579 = vpack.c.b16 %v1835, %v1831
    %v2580 = vpack.c.b16 %v1840, %v1836
    %v2581 = vpack.c.b16 %v1841, %v1837
    %v2582 = vpack.c.b16 %v1842, %v1838
    %v2583 = vpack.c.b16 %v1843, %v1839
    %v2584 = vpack.c.b16 %v1848, %v1844
    %v2585 = vpack.c.b16 %v1849, %v1845
    %v2586 = vpack.c.b16 %v1850, %v1846
    %v2587 = vpack.c.b16 %v1851, %v1847
    %v2588 = vpack.c.b16 %v1856, %v1852
    %v2589 = vpack.c.b16 %v1857, %v1853
    %v2590 = vpack.c.b16 %v1858, %v1854
    %v2591 = vpack.c.b16 %v1859, %v1855
    %v2592 = vpack.c.b16 %v1864, %v1860
    %v2593 = vpack.c.b16 %v1865, %v1861
    %v2594 = vpack.c.b16 %v1866, %v1862
    %v2595 = vpack.c.b16 %v1867, %v1863
    %v2596 = vpack.c.b16 %v1872, %v1868
    %v2597 = vpack.c.b16 %v1873, %v1869
    %v2598 = vpack.c.b16 %v1874, %v1870
    %v2599 = vpack.c.b16 %v1875, %v1871
    %v2600 = vpack.c.b16 %v1880, %v1876
    %v2601 = vpack.c.b16 %v1881, %v1877
    %v2602 = vpack.c.b16 %v1882, %v1878
    %v2603 = vpack.c.b16 %v1883, %v1879
    %v2604 = vpack.c.b16 %v1888, %v1884
    %v2605 = vpack.c.b16 %v1889, %v1885
    %v2606 = vpack.c.b16 %v1890, %v1886
    %v2607 = vpack.c.b16 %v1891, %v1887
    %v2608 = vpack.c.b16 %v1896, %v1892
    %v2609 = vpack.c.b16 %v1897, %v1893
    %v2610 = vpack.c.b16 %v1898, %v1894
    %v2611 = vpack.c.b16 %v1899, %v1895
    %v2612 = vpack.c.b16 %v1904, %v1900
    %v2613 = vpack.c.b16 %v1905, %v1901
    %v2614 = vpack.c.b16 %v1906, %v1902
    %v2615 = vpack.c.b16 %v1907, %v1903
    %v2616 = vpack.c.b16 %v1912, %v1908
    %v2617 = vpack.c.b16 %v1913, %v1909
    %v2618 = vpack.c.b16 %v1914, %v1910
    %v2619 = vpack.c.b16 %v1915, %v1911
    %v2620 = vpack.c.b16 %v1920, %v1916
    %v2621 = vpack.c.b16 %v1921, %v1917
    %v2622 = vpack.c.b16 %v1922, %v1918
    %v2623 = vpack.c.b16 %v1923, %v1919
    %v2624 = vpack.c.b16 %v1928, %v1924
    %v2625 = vpack.c.b16 %v1929, %v1925
    %v2626 = vpack.c.b16 %v1930, %v1926
    %v2627 = vpack.c.b16 %v1931, %v1927
    %v2628 = vpack.c.b16 %v1936, %v1932
    %v2629 = vpack.c.b16 %v1937, %v1933
    %v2630 = vpack.c.b16 %v1938, %v1934
    %v2631 = vpack.c.b16 %v1939, %v1935
    %v2632 = vpack.c.b16 %v1944, %v1940
    %v2633 = vpack.c.b16 %v1945, %v1941
    %v2634 = vpack.c.b16 %v1946, %v1942
    %v2635 = vpack.c.b16 %v1947, %v1943
    %v2636 = vpack.c.b16 %v1952, %v1948
    %v2637 = vpack.c.b16 %v1953, %v1949
    %v2638 = vpack.c.b16 %v1954, %v1950
    %v2639 = vpack.c.b16 %v1955, %v1951
    %v2640 = vpack.c.b16 %v1960, %v1956
    %v2641 = vpack.c.b16 %v1961, %v1957
    %v2642 = vpack.c.b16 %v1962, %v1958
    %v2643 = vpack.c.b16 %v1963, %v1959
    %v2644 = vpack.c.b16 %v1968, %v1964
    %v2645 = vpack.c.b16 %v1969, %v1965
    %v2646 = vpack.c.b16 %v1970, %v1966
    %v2647 = vpack.c.b16 %v1971, %v1967
    %v2648 = vpack.c.b16 %v1976, %v1972
    %v2649 = vpack.c.b16 %v1977, %v1973
    %v2650 = vpack.c.b16 %v1978, %v1974
    %v2651 = vpack.c.b16 %v1979, %v1975
    %v2652 = vpack.c.b16 %v1984, %v1980
    %v2653 = vpack.c.b16 %v1985, %v1981
    %v2654 = vpack.c.b16 %v1986, %v1982
    %v2655 = vpack.c.b16 %v1987, %v1983
    %v2656 = vpack.c.b16 %v1992, %v1988
    %v2657 = vpack.c.b16 %v1993, %v1989
    %v2658 = vpack.c.b16 %v1994, %v1990
    %v2659 = vpack.c.b16 %v1995, %v1991
    %v2660 = vpack.c.b16 %v2000, %v1996
    %v2661 = vpack.c.b16 %v2001, %v1997
    %v2662 = vpack.c.b16 %v2002, %v1998
    %v2663 = vpack.c.b16 %v2003, %v1999
    %v2664 = vpack.c.b16 %v2008, %v2004
    %v2665 = vpack.c.b16 %v2009, %v2005
    %v2666 = vpack.c.b16 %v2010, %v2006
    %v2667 = vpack.c.b16 %v2011, %v2007
    %v2668 = vpack.c.b16 %v2016, %v2012
    %v2669 = vpack.c.b16 %v2017, %v2013
    %v2670 = vpack.c.b16 %v2018, %v2014
    %v2671 = vpack.c.b16 %v2019, %v2015
    %v2672 = vpack.c.b16 %v2024, %v2020
    %v2673 = vpack.c.b16 %v2025, %v2021
    %v2674 = vpack.c.b16 %v2026, %v2022
    %v2675 = vpack.c.b16 %v2027, %v2023
    %v2676 = vpack.c.b16 %v2032, %v2028
    %v2677 = vpack.c.b16 %v2033, %v2029
    %v2678 = vpack.c.b16 %v2034, %v2030
    %v2679 = vpack.c.b16 %v2035, %v2031
    %v2680 = vpack.c.b16 %v2040, %v2036
    %v2681 = vpack.c.b16 %v2041, %v2037
    %v2682 = vpack.c.b16 %v2042, %v2038
    %v2683 = vpack.c.b16 %v2043, %v2039
    %v2684 = vpack.c.b16 %v2048, %v2044
    %v2685 = vpack.c.b16 %v2049, %v2045
    %v2686 = vpack.c.b16 %v2050, %v2046
    %v2687 = vpack.c.b16 %v2051, %v2047
    %v2688 = vpack.c.b16 %v2056, %v2052
    %v2689 = vpack.c.b16 %v2057, %v2053
    %v2690 = vpack.c.b16 %v2058, %v2054
    %v2691 = vpack.c.b16 %v2059, %v2055
    %v2692 = vpack.c.b16 %v2064, %v2060
    %v2693 = vpack.c.b16 %v2065, %v2061
    %v2694 = vpack.c.b16 %v2066, %v2062
    %v2695 = vpack.c.b16 %v2067, %v2063
    %v2696 = vpack.c.b16 %v2072, %v2068
    %v2697 = vpack.c.b16 %v2073, %v2069
    %v2698 = vpack.c.b16 %v2074, %v2070
    %v2699 = vpack.c.b16 %v2075, %v2071
    %v2700 = vpack.c.b16 %v2080, %v2076
    %v2701 = vpack.c.b16 %v2081, %v2077
    %v2702 = vpack.c.b16 %v2082, %v2078
    %v2703 = vpack.c.b16 %v2083, %v2079
    %v2704 = vpack.c.b16 %v2088, %v2084
    %v2705 = vpack.c.b16 %v2089, %v2085
    %v2706 = vpack.c.b16 %v2090, %v2086
    %v2707 = vpack.c.b16 %v2091, %v2087
    %v2708 = vpack.c.b16 %v2096, %v2092
    %v2709 = vpack.c.b16 %v2097, %v2093
    %v2710 = vpack.c.b16 %v2098, %v2094
    %v2711 = vpack.c.b16 %v2099, %v2095
    %v2712 = vpack.c.b16 %v2104, %v2100
    %v2713 = vpack.c.b16 %v2105, %v2101
    %v2714 = vpack.c.b16 %v2106, %v2102
    %v2715 = vpack.c.b16 %v2107, %v2103
    %v2716 = vpack.c.b16 %v2112, %v2108
    %v2717 = vpack.c.b16 %v2113, %v2109
    %v2718 = vpack.c.b16 %v2114, %v2110
    %v2719 = vpack.c.b16 %v2115, %v2111
    %v2720 = vpack.c.b16 %v2120, %v2116
    %v2721 = vpack.c.b16 %v2121, %v2117
    %v2722 = vpack.c.b16 %v2122, %v2118
    %v2723 = vpack.c.b16 %v2123, %v2119
    %v2724 = vpack.c.b16 %v2128, %v2124
    %v2725 = vpack.c.b16 %v2129, %v2125
    %v2726 = vpack.c.b16 %v2130, %v2126
    %v2727 = vpack.c.b16 %v2131, %v2127
    %v2728 = vpack.c.b16 %v2136, %v2132
    %v2729 = vpack.c.b16 %v2137, %v2133
    %v2730 = vpack.c.b16 %v2138, %v2134
    %v2731 = vpack.c.b16 %v2139, %v2135
    %v2732 = vpack.c.b16 %v2144, %v2140
    %v2733 = vpack.c.b16 %v2145, %v2141
    %v2734 = vpack.c.b16 %v2146, %v2142
    %v2735 = vpack.c.b16 %v2147, %v2143
    %v2736 = vpack.c.b16 %v2152, %v2148
    %v2737 = vpack.c.b16 %v2153, %v2149
    %v2738 = vpack.c.b16 %v2154, %v2150
    %v2739 = vpack.c.b16 %v2155, %v2151
    %v2740 = vpack.c.b16 %v2160, %v2156
    %v2741 = vpack.c.b16 %v2161, %v2157
    %v2742 = vpack.c.b16 %v2162, %v2158
    %v2743 = vpack.c.b16 %v2163, %v2159
    %v2744 = vpack.c.b16 %v2168, %v2164
    %v2745 = vpack.c.b16 %v2169, %v2165
    %v2746 = vpack.c.b16 %v2170, %v2166
    %v2747 = vpack.c.b16 %v2171, %v2167
    %v2748 = vpack.c.b16 %v2176, %v2172
    %v2749 = vpack.c.b16 %v2177, %v2173
    %v2750 = vpack.c.b16 %v2178, %v2174
    %v2751 = vpack.c.b16 %v2179, %v2175
    %v2752 = vpack.c.b16 %v2184, %v2180
    %v2753 = vpack.c.b16 %v2185, %v2181
    %v2754 = vpack.c.b16 %v2186, %v2182
    %v2755 = vpack.c.b16 %v2187, %v2183
    %v2756 = vpack.c.b16 %v2192, %v2188
    %v2757 = vpack.c.b16 %v2193, %v2189
    %v2758 = vpack.c.b16 %v2194, %v2190
    %v2759 = vpack.c.b16 %v2195, %v2191
    %v2760 = vpack.c.b16 %v2200, %v2196
    %v2761 = vpack.c.b16 %v2201, %v2197
    %v2762 = vpack.c.b16 %v2202, %v2198
    %v2763 = vpack.c.b16 %v2203, %v2199
    %v2764 = vpack.c.b16 %v2208, %v2204
    %v2765 = vpack.c.b16 %v2209, %v2205
    %v2766 = vpack.c.b16 %v2210, %v2206
    %v2767 = vpack.c.b16 %v2211, %v2207
    %v2768 = vpack.c.b16 %v2216, %v2212
    %v2769 = vpack.c.b16 %v2217, %v2213
    %v2770 = vpack.c.b16 %v2218, %v2214
    %v2771 = vpack.c.b16 %v2219, %v2215
    %v2772 = vpack.c.b16 %v2224, %v2220
    %v2773 = vpack.c.b16 %v2225, %v2221
    %v2774 = vpack.c.b16 %v2226, %v2222
    %v2775 = vpack.c.b16 %v2227, %v2223
    %v2776 = vpack.c.b16 %v2232, %v2228
    %v2777 = vpack.c.b16 %v2233, %v2229
    %v2778 = vpack.c.b16 %v2234, %v2230
    %v2779 = vpack.c.b16 %v2235, %v2231
    %v2780 = vpack.c.b16 %v2240, %v2236
    %v2781 = vpack.c.b16 %v2241, %v2237
    %v2782 = vpack.c.b16 %v2242, %v2238
    %v2783 = vpack.c.b16 %v2243, %v2239
    %v2784 = vpack.c.b16 %v2248, %v2244
    %v2785 = vpack.c.b16 %v2249, %v2245
    %v2786 = vpack.c.b16 %v2250, %v2246
    %v2787 = vpack.c.b16 %v2251, %v2247
    %v2788 = vpack.c.b16 %v2256, %v2252
    %v2789 = vpack.c.b16 %v2257, %v2253
    %v2790 = vpack.c.b16 %v2258, %v2254
    %v2791 = vpack.c.b16 %v2259, %v2255
    %v2792 = vpack.c.b16 %v2264, %v2260
    %v2793 = vpack.c.b16 %v2265, %v2261
    %v2794 = vpack.c.b16 %v2266, %v2262
    %v2795 = vpack.c.b16 %v2267, %v2263
    %v2796 = vpack.c.b16 %v2272, %v2268
    %v2797 = vpack.c.b16 %v2273, %v2269
    %v2798 = vpack.c.b16 %v2274, %v2270
    %v2799 = vpack.c.b16 %v2275, %v2271
    %v2800 = vpack.c.b16 %v2280, %v2276
    %v2801 = vpack.c.b16 %v2281, %v2277
    %v2802 = vpack.c.b16 %v2282, %v2278
    %v2803 = vpack.c.b16 %v2283, %v2279
    %v2804 = vpack.c.b16 %v2288, %v2284
    %v2805 = vpack.c.b16 %v2289, %v2285
    %v2806 = vpack.c.b16 %v2290, %v2286
    %v2807 = vpack.c.b16 %v2291, %v2287
    %v2808 = vpack.c.b16 %v2296, %v2292
    %v2809 = vpack.c.b16 %v2297, %v2293
    %v2810 = vpack.c.b16 %v2298, %v2294
    %v2811 = vpack.c.b16 %v2299, %v2295
    %3324 = vmatprep.subr.bf16.mxu0 %v2329
    %3325 = vmatpush1.bf16.msra.mxu0 %v2328
    %3326 = vmatprep.subr.bf16.mxu0 %v2325
    %3327 = vmatpush1.bf16.msra.mxu0 %v2324
    %3328 = vmatprep.subr.bf16.mxu0 %v2321
    %3329 = vmatpush1.bf16.msra.mxu0 %v2320
    %3330 = vmatprep.subr.bf16.mxu0 %v2317
    %3331 = vmatpush1.bf16.msra.mxu0 %v2316
    %3332 = vmatprep.subr.bf16.mxu0 %v2313
    %3333 = vmatpush1.bf16.msra.mxu0 %v2312
    %3334 = vmatprep.subr.bf16.mxu0 %v2309
    %3335 = vmatpush1.bf16.msra.mxu0 %v2308
    %3336 = vmatprep.subr.bf16.mxu0 %v2305
    %3337 = vmatpush1.bf16.msra.mxu0 %v2304
    %3338 = vmatprep.subr.bf16.mxu0 %v2301
    %3339 = vmatpush1.bf16.msra.mxu0 %v2300
    %3340 = vmatprep.subr.bf16.mxu0 %v2361
    %3341 = vmatpush2.bf16.msra.mxu0 %v2360
    %3342 = vmatprep.subr.bf16.mxu0 %v2357
    %3343 = vmatpush2.bf16.msra.mxu0 %v2356
    %3344 = vmatprep.subr.bf16.mxu0 %v2353
    %3345 = vmatpush2.bf16.msra.mxu0 %v2352
    %3346 = vmatprep.subr.bf16.mxu0 %v2349
    %3347 = vmatpush2.bf16.msra.mxu0 %v2348
    %3348 = vmatprep.subr.bf16.mxu0 %v2345
    %3349 = vmatpush2.bf16.msra.mxu0 %v2344
    %3350 = vmatprep.subr.bf16.mxu0 %v2341
    %3351 = vmatpush2.bf16.msra.mxu0 %v2340
    %3352 = vmatprep.subr.bf16.mxu0 %v2337
    %3353 = vmatpush2.bf16.msra.mxu0 %v2336
    %3354 = vmatprep.subr.bf16.mxu0 %v2333
    %3355 = vmatpush2.bf16.msra.mxu0 %v2332
    %3356 = vmatprep.mubr.bf16.mxu0 %v733
    %3357 = vmatmul.mubr.bf16.gmra.mxu0 %v732
    %v3358 = vpop.f32.mrf.mxu0
    %v3359 = vadd.f32 %v667, %v3358
    %v3360 = vpop.f32.mrf.mxu0
    %v3361 = vadd.f32 %v671, %v3360
    %v3362 = vpop.f32.mrf.mxu0
    %v3363 = vadd.f32 %v667, %v3362
    %v3364 = vpop.f32.mrf.mxu0
    %v3365 = vadd.f32 %v671, %v3364
    %3366 = vdwg.mxu0
    %3367 = vmatprep.subr.bf16.mxu0 %v2393
    %3368 = vmatpush1.bf16.msra.mxu0 %v2392
    %3369 = vmatprep.subr.bf16.mxu0 %v2389
    %3370 = vmatpush1.bf16.msra.mxu0 %v2388
    %3371 = vmatprep.subr.bf16.mxu0 %v2385
    %3372 = vmatpush1.bf16.msra.mxu0 %v2384
    %3373 = vmatprep.subr.bf16.mxu0 %v2381
    %3374 = vmatpush1.bf16.msra.mxu0 %v2380
    %3375 = vmatprep.subr.bf16.mxu0 %v2377
    %3376 = vmatpush1.bf16.msra.mxu0 %v2376
    %3377 = vmatprep.subr.bf16.mxu0 %v2373
    %3378 = vmatpush1.bf16.msra.mxu0 %v2372
    %3379 = vmatprep.subr.bf16.mxu0 %v2369
    %3380 = vmatpush1.bf16.msra.mxu0 %v2368
    %3381 = vmatprep.subr.bf16.mxu0 %v2365
    %3382 = vmatpush1.bf16.msra.mxu0 %v2364
    %3383 = vmatprep.subr.bf16.mxu0 %v2425
    %3384 = vmatpush2.bf16.msra.mxu0 %v2424
    %3385 = vmatprep.subr.bf16.mxu0 %v2421
    %3386 = vmatpush2.bf16.msra.mxu0 %v2420
    %3387 = vmatprep.subr.bf16.mxu0 %v2417
    %3388 = vmatpush2.bf16.msra.mxu0 %v2416
    %3389 = vmatprep.subr.bf16.mxu0 %v2413
    %3390 = vmatpush2.bf16.msra.mxu0 %v2412
    %3391 = vmatprep.subr.bf16.mxu0 %v2409
    %3392 = vmatpush2.bf16.msra.mxu0 %v2408
    %3393 = vmatprep.subr.bf16.mxu0 %v2405
    %3394 = vmatpush2.bf16.msra.mxu0 %v2404
    %3395 = vmatprep.subr.bf16.mxu0 %v2401
    %3396 = vmatpush2.bf16.msra.mxu0 %v2400
    %3397 = vmatprep.subr.bf16.mxu0 %v2397
    %3398 = vmatpush2.bf16.msra.mxu0 %v2396
    %3399 = vmatprep.mubr.bf16.mxu0 %v735
    %3400 = vmatmul.mubr.bf16.gmra.mxu0 %v734
    %v3401 = vpop.f32.mrf.mxu0
    %v3402 = vadd.f32 %v3359, %v3401
    %v3403 = vpop.f32.mrf.mxu0
    %v3404 = vadd.f32 %v3361, %v3403
    %v3405 = vpop.f32.mrf.mxu0
    %v3406 = vadd.f32 %v3363, %v3405
    %v3407 = vpop.f32.mrf.mxu0
    %v3408 = vadd.f32 %v3365, %v3407
    %3409 = vdwg.mxu0
    %3410 = vmatprep.subr.bf16.mxu0 %v2457
    %3411 = vmatpush1.bf16.msra.mxu0 %v2456
    %3412 = vmatprep.subr.bf16.mxu0 %v2453
    %3413 = vmatpush1.bf16.msra.mxu0 %v2452
    %3414 = vmatprep.subr.bf16.mxu0 %v2449
    %3415 = vmatpush1.bf16.msra.mxu0 %v2448
    %3416 = vmatprep.subr.bf16.mxu0 %v2445
    %3417 = vmatpush1.bf16.msra.mxu0 %v2444
    %3418 = vmatprep.subr.bf16.mxu0 %v2441
    %3419 = vmatpush1.bf16.msra.mxu0 %v2440
    %3420 = vmatprep.subr.bf16.mxu0 %v2437
    %3421 = vmatpush1.bf16.msra.mxu0 %v2436
    %3422 = vmatprep.subr.bf16.mxu0 %v2433
    %3423 = vmatpush1.bf16.msra.mxu0 %v2432
    %3424 = vmatprep.subr.bf16.mxu0 %v2429
    %3425 = vmatpush1.bf16.msra.mxu0 %v2428
    %3426 = vmatprep.subr.bf16.mxu0 %v2489
    %3427 = vmatpush2.bf16.msra.mxu0 %v2488
    %3428 = vmatprep.subr.bf16.mxu0 %v2485
    %3429 = vmatpush2.bf16.msra.mxu0 %v2484
    %3430 = vmatprep.subr.bf16.mxu0 %v2481
    %3431 = vmatpush2.bf16.msra.mxu0 %v2480
    %3432 = vmatprep.subr.bf16.mxu0 %v2477
    %3433 = vmatpush2.bf16.msra.mxu0 %v2476
    %3434 = vmatprep.subr.bf16.mxu0 %v2473
    %3435 = vmatpush2.bf16.msra.mxu0 %v2472
    %3436 = vmatprep.subr.bf16.mxu0 %v2469
    %3437 = vmatpush2.bf16.msra.mxu0 %v2468
    %3438 = vmatprep.subr.bf16.mxu0 %v2465
    %3439 = vmatpush2.bf16.msra.mxu0 %v2464
    %3440 = vmatprep.subr.bf16.mxu0 %v2461
    %3441 = vmatpush2.bf16.msra.mxu0 %v2460
    %3442 = vmatprep.mubr.bf16.mxu0 %v737
    %3443 = vmatmul.mubr.bf16.gmra.mxu0 %v736
    %v3444 = vpop.f32.mrf.mxu0
    %v3445 = vadd.f32 %v3402, %v3444
    %v3446 = vpop.f32.mrf.mxu0
    %v3447 = vadd.f32 %v3404, %v3446
    %v3448 = vpop.f32.mrf.mxu0
    %v3449 = vadd.f32 %v3406, %v3448
    %v3450 = vpop.f32.mrf.mxu0
    %v3451 = vadd.f32 %v3408, %v3450
    %3452 = vdwg.mxu0
    %3453 = vmatprep.subr.bf16.mxu0 %v2521
    %3454 = vmatpush1.bf16.msra.mxu0 %v2520
    %3455 = vmatprep.subr.bf16.mxu0 %v2517
    %3456 = vmatpush1.bf16.msra.mxu0 %v2516
    %3457 = vmatprep.subr.bf16.mxu0 %v2513
    %3458 = vmatpush1.bf16.msra.mxu0 %v2512
    %3459 = vmatprep.subr.bf16.mxu0 %v2509
    %3460 = vmatpush1.bf16.msra.mxu0 %v2508
    %3461 = vmatprep.subr.bf16.mxu0 %v2505
    %3462 = vmatpush1.bf16.msra.mxu0 %v2504
    %3463 = vmatprep.subr.bf16.mxu0 %v2501
    %3464 = vmatpush1.bf16.msra.mxu0 %v2500
    %3465 = vmatprep.subr.bf16.mxu0 %v2497
    %3466 = vmatpush1.bf16.msra.mxu0 %v2496
    %3467 = vmatprep.subr.bf16.mxu0 %v2493
    %3468 = vmatpush1.bf16.msra.mxu0 %v2492
    %3469 = vmatprep.subr.bf16.mxu0 %v2553
    %3470 = vmatpush2.bf16.msra.mxu0 %v2552
    %3471 = vmatprep.subr.bf16.mxu0 %v2549
    %3472 = vmatpush2.bf16.msra.mxu0 %v2548
    %3473 = vmatprep.subr.bf16.mxu0 %v2545
    %3474 = vmatpush2.bf16.msra.mxu0 %v2544
    %3475 = vmatprep.subr.bf16.mxu0 %v2541
    %3476 = vmatpush2.bf16.msra.mxu0 %v2540
    %3477 = vmatprep.subr.bf16.mxu0 %v2537
    %3478 = vmatpush2.bf16.msra.mxu0 %v2536
    %3479 = vmatprep.subr.bf16.mxu0 %v2533
    %3480 = vmatpush2.bf16.msra.mxu0 %v2532
    %3481 = vmatprep.subr.bf16.mxu0 %v2529
    %3482 = vmatpush2.bf16.msra.mxu0 %v2528
    %3483 = vmatprep.subr.bf16.mxu0 %v2525
    %3484 = vmatpush2.bf16.msra.mxu0 %v2524
    %3485 = vmatprep.mubr.bf16.mxu0 %v739
    %3486 = vmatmul.mubr.bf16.gmra.mxu0 %v738
    %v3487 = vpop.f32.mrf.mxu0
    %v3488 = vadd.f32 %v3445, %v3487
    %v3489 = vpop.f32.mrf.mxu0
    %v3490 = vadd.f32 %v3447, %v3489
    %v3491 = vpop.f32.mrf.mxu0
    %v3492 = vadd.f32 %v3449, %v3491
    %v3493 = vpop.f32.mrf.mxu0
    %v3494 = vadd.f32 %v3451, %v3493
    %3495 = vdwg.mxu0
    %3496 = vmatprep.subr.bf16.mxu0 %v2585
    %3497 = vmatpush1.bf16.msra.mxu0 %v2584
    %3498 = vmatprep.subr.bf16.mxu0 %v2581
    %3499 = vmatpush1.bf16.msra.mxu0 %v2580
    %3500 = vmatprep.subr.bf16.mxu0 %v2577
    %3501 = vmatpush1.bf16.msra.mxu0 %v2576
    %3502 = vmatprep.subr.bf16.mxu0 %v2573
    %3503 = vmatpush1.bf16.msra.mxu0 %v2572
    %3504 = vmatprep.subr.bf16.mxu0 %v2569
    %3505 = vmatpush1.bf16.msra.mxu0 %v2568
    %3506 = vmatprep.subr.bf16.mxu0 %v2565
    %3507 = vmatpush1.bf16.msra.mxu0 %v2564
    %3508 = vmatprep.subr.bf16.mxu0 %v2561
    %3509 = vmatpush1.bf16.msra.mxu0 %v2560
    %3510 = vmatprep.subr.bf16.mxu0 %v2557
    %3511 = vmatpush1.bf16.msra.mxu0 %v2556
    %3512 = vmatprep.subr.bf16.mxu0 %v2617
    %3513 = vmatpush2.bf16.msra.mxu0 %v2616
    %3514 = vmatprep.subr.bf16.mxu0 %v2613
    %3515 = vmatpush2.bf16.msra.mxu0 %v2612
    %3516 = vmatprep.subr.bf16.mxu0 %v2609
    %3517 = vmatpush2.bf16.msra.mxu0 %v2608
    %3518 = vmatprep.subr.bf16.mxu0 %v2605
    %3519 = vmatpush2.bf16.msra.mxu0 %v2604
    %3520 = vmatprep.subr.bf16.mxu0 %v2601
    %3521 = vmatpush2.bf16.msra.mxu0 %v2600
    %3522 = vmatprep.subr.bf16.mxu0 %v2597
    %3523 = vmatpush2.bf16.msra.mxu0 %v2596
    %3524 = vmatprep.subr.bf16.mxu0 %v2593
    %3525 = vmatpush2.bf16.msra.mxu0 %v2592
    %3526 = vmatprep.subr.bf16.mxu0 %v2589
    %3527 = vmatpush2.bf16.msra.mxu0 %v2588
    %3528 = vmatprep.mubr.bf16.mxu0 %v741
    %3529 = vmatmul.mubr.bf16.gmra.mxu0 %v740
    %v3530 = vpop.f32.mrf.mxu0
    %v3531 = vadd.f32 %v3488, %v3530
    %v3532 = vpop.f32.mrf.mxu0
    %v3533 = vadd.f32 %v3490, %v3532
    %v3534 = vpop.f32.mrf.mxu0
    %v3535 = vadd.f32 %v3492, %v3534
    %v3536 = vpop.f32.mrf.mxu0
    %v3537 = vadd.f32 %v3494, %v3536
    %3538 = vdwg.mxu0
    %3539 = vmatprep.subr.bf16.mxu0 %v2649
    %3540 = vmatpush1.bf16.msra.mxu0 %v2648
    %3541 = vmatprep.subr.bf16.mxu0 %v2645
    %3542 = vmatpush1.bf16.msra.mxu0 %v2644
    %3543 = vmatprep.subr.bf16.mxu0 %v2641
    %3544 = vmatpush1.bf16.msra.mxu0 %v2640
    %3545 = vmatprep.subr.bf16.mxu0 %v2637
    %3546 = vmatpush1.bf16.msra.mxu0 %v2636
    %3547 = vmatprep.subr.bf16.mxu0 %v2633
    %3548 = vmatpush1.bf16.msra.mxu0 %v2632
    %3549 = vmatprep.subr.bf16.mxu0 %v2629
    %3550 = vmatpush1.bf16.msra.mxu0 %v2628
    %3551 = vmatprep.subr.bf16.mxu0 %v2625
    %3552 = vmatpush1.bf16.msra.mxu0 %v2624
    %3553 = vmatprep.subr.bf16.mxu0 %v2621
    %3554 = vmatpush1.bf16.msra.mxu0 %v2620
    %3555 = vmatprep.subr.bf16.mxu0 %v2681
    %3556 = vmatpush2.bf16.msra.mxu0 %v2680
    %3557 = vmatprep.subr.bf16.mxu0 %v2677
    %3558 = vmatpush2.bf16.msra.mxu0 %v2676
    %3559 = vmatprep.subr.bf16.mxu0 %v2673
    %3560 = vmatpush2.bf16.msra.mxu0 %v2672
    %3561 = vmatprep.subr.bf16.mxu0 %v2669
    %3562 = vmatpush2.bf16.msra.mxu0 %v2668
    %3563 = vmatprep.subr.bf16.mxu0 %v2665
    %3564 = vmatpush2.bf16.msra.mxu0 %v2664
    %3565 = vmatprep.subr.bf16.mxu0 %v2661
    %3566 = vmatpush2.bf16.msra.mxu0 %v2660
    %3567 = vmatprep.subr.bf16.mxu0 %v2657
    %3568 = vmatpush2.bf16.msra.mxu0 %v2656
    %3569 = vmatprep.subr.bf16.mxu0 %v2653
    %3570 = vmatpush2.bf16.msra.mxu0 %v2652
    %3571 = vmatprep.mubr.bf16.mxu0 %v743
    %3572 = vmatmul.mubr.bf16.gmra.mxu0 %v742
    %v3573 = vpop.f32.mrf.mxu0
    %v3574 = vadd.f32 %v3531, %v3573
    %v3575 = vpop.f32.mrf.mxu0
    %v3576 = vadd.f32 %v3533, %v3575
    %v3577 = vpop.f32.mrf.mxu0
    %v3578 = vadd.f32 %v3535, %v3577
    %v3579 = vpop.f32.mrf.mxu0
    %v3580 = vadd.f32 %v3537, %v3579
    %3581 = vdwg.mxu0
    %3582 = vmatprep.subr.bf16.mxu0 %v2713
    %3583 = vmatpush1.bf16.msra.mxu0 %v2712
    %3584 = vmatprep.subr.bf16.mxu0 %v2709
    %3585 = vmatpush1.bf16.msra.mxu0 %v2708
    %3586 = vmatprep.subr.bf16.mxu0 %v2705
    %3587 = vmatpush1.bf16.msra.mxu0 %v2704
    %3588 = vmatprep.subr.bf16.mxu0 %v2701
    %3589 = vmatpush1.bf16.msra.mxu0 %v2700
    %3590 = vmatprep.subr.bf16.mxu0 %v2697
    %3591 = vmatpush1.bf16.msra.mxu0 %v2696
    %3592 = vmatprep.subr.bf16.mxu0 %v2693
    %3593 = vmatpush1.bf16.msra.mxu0 %v2692
    %3594 = vmatprep.subr.bf16.mxu0 %v2689
    %3595 = vmatpush1.bf16.msra.mxu0 %v2688
    %3596 = vmatprep.subr.bf16.mxu0 %v2685
    %3597 = vmatpush1.bf16.msra.mxu0 %v2684
    %3598 = vmatprep.subr.bf16.mxu0 %v2745
    %3599 = vmatpush2.bf16.msra.mxu0 %v2744
    %3600 = vmatprep.subr.bf16.mxu0 %v2741
    %3601 = vmatpush2.bf16.msra.mxu0 %v2740
    %3602 = vmatprep.subr.bf16.mxu0 %v2737
    %3603 = vmatpush2.bf16.msra.mxu0 %v2736
    %3604 = vmatprep.subr.bf16.mxu0 %v2733
    %3605 = vmatpush2.bf16.msra.mxu0 %v2732
    %3606 = vmatprep.subr.bf16.mxu0 %v2729
    %3607 = vmatpush2.bf16.msra.mxu0 %v2728
    %3608 = vmatprep.subr.bf16.mxu0 %v2725
    %3609 = vmatpush2.bf16.msra.mxu0 %v2724
    %3610 = vmatprep.subr.bf16.mxu0 %v2721
    %3611 = vmatpush2.bf16.msra.mxu0 %v2720
    %3612 = vmatprep.subr.bf16.mxu0 %v2717
    %3613 = vmatpush2.bf16.msra.mxu0 %v2716
    %3614 = vmatprep.mubr.bf16.mxu0 %v745
    %3615 = vmatmul.mubr.bf16.gmra.mxu0 %v744
    %v3616 = vpop.f32.mrf.mxu0
    %v3617 = vadd.f32 %v3574, %v3616
    %v3618 = vpop.f32.mrf.mxu0
    %v3619 = vadd.f32 %v3576, %v3618
    %v3620 = vpop.f32.mrf.mxu0
    %v3621 = vadd.f32 %v3578, %v3620
    %v3622 = vpop.f32.mrf.mxu0
    %v3623 = vadd.f32 %v3580, %v3622
    %3624 = vdwg.mxu0
    %3625 = vmatprep.subr.bf16.mxu0 %v2777
    %3626 = vmatpush1.bf16.msra.mxu0 %v2776
    %3627 = vmatprep.subr.bf16.mxu0 %v2773
    %3628 = vmatpush1.bf16.msra.mxu0 %v2772
    %3629 = vmatprep.subr.bf16.mxu0 %v2769
    %3630 = vmatpush1.bf16.msra.mxu0 %v2768
    %3631 = vmatprep.subr.bf16.mxu0 %v2765
    %3632 = vmatpush1.bf16.msra.mxu0 %v2764
    %3633 = vmatprep.subr.bf16.mxu0 %v2761
    %3634 = vmatpush1.bf16.msra.mxu0 %v2760
    %3635 = vmatprep.subr.bf16.mxu0 %v2757
    %3636 = vmatpush1.bf16.msra.mxu0 %v2756
    %3637 = vmatprep.subr.bf16.mxu0 %v2753
    %3638 = vmatpush1.bf16.msra.mxu0 %v2752
    %3639 = vmatprep.subr.bf16.mxu0 %v2749
    %3640 = vmatpush1.bf16.msra.mxu0 %v2748
    %3641 = vmatprep.subr.bf16.mxu0 %v2809
    %3642 = vmatpush2.bf16.msra.mxu0 %v2808
    %3643 = vmatprep.subr.bf16.mxu0 %v2805
    %3644 = vmatpush2.bf16.msra.mxu0 %v2804
    %3645 = vmatprep.subr.bf16.mxu0 %v2801
    %3646 = vmatpush2.bf16.msra.mxu0 %v2800
    %3647 = vmatprep.subr.bf16.mxu0 %v2797
    %3648 = vmatpush2.bf16.msra.mxu0 %v2796
    %3649 = vmatprep.subr.bf16.mxu0 %v2793
    %3650 = vmatpush2.bf16.msra.mxu0 %v2792
    %3651 = vmatprep.subr.bf16.mxu0 %v2789
    %3652 = vmatpush2.bf16.msra.mxu0 %v2788
    %3653 = vmatprep.subr.bf16.mxu0 %v2785
    %3654 = vmatpush2.bf16.msra.mxu0 %v2784
    %3655 = vmatprep.subr.bf16.mxu0 %v2781
    %3656 = vmatpush2.bf16.msra.mxu0 %v2780
    %3657 = vmatprep.mubr.bf16.mxu0 %v747
    %3658 = vmatmul.mubr.bf16.gmra.mxu0 %v746
    %v3659 = vpop.f32.mrf.mxu0
    %v3660 = vadd.f32 %v3617, %v3659
    %v3661 = vpop.f32.mrf.mxu0
    %v3662 = vadd.f32 %v3619, %v3661
    %v3663 = vpop.f32.mrf.mxu0
    %v3664 = vadd.f32 %v3621, %v3663
    %v3665 = vpop.f32.mrf.mxu0
    %v3666 = vadd.f32 %v3623, %v3665
    %3667 = vdwg.mxu0
    %3668 = vmatprep.subr.bf16.mxu0 %v2331
    %3669 = vmatpush1.bf16.msra.mxu0 %v2330
    %3670 = vmatprep.subr.bf16.mxu0 %v2327
    %3671 = vmatpush1.bf16.msra.mxu0 %v2326
    %3672 = vmatprep.subr.bf16.mxu0 %v2323
    %3673 = vmatpush1.bf16.msra.mxu0 %v2322
    %3674 = vmatprep.subr.bf16.mxu0 %v2319
    %3675 = vmatpush1.bf16.msra.mxu0 %v2318
    %3676 = vmatprep.subr.bf16.mxu0 %v2315
    %3677 = vmatpush1.bf16.msra.mxu0 %v2314
    %3678 = vmatprep.subr.bf16.mxu0 %v2311
    %3679 = vmatpush1.bf16.msra.mxu0 %v2310
    %3680 = vmatprep.subr.bf16.mxu0 %v2307
    %3681 = vmatpush1.bf16.msra.mxu0 %v2306
    %3682 = vmatprep.subr.bf16.mxu0 %v2303
    %3683 = vmatpush1.bf16.msra.mxu0 %v2302
    %3684 = vmatprep.subr.bf16.mxu0 %v2363
    %3685 = vmatpush2.bf16.msra.mxu0 %v2362
    %3686 = vmatprep.subr.bf16.mxu0 %v2359
    %3687 = vmatpush2.bf16.msra.mxu0 %v2358
    %3688 = vmatprep.subr.bf16.mxu0 %v2355
    %3689 = vmatpush2.bf16.msra.mxu0 %v2354
    %3690 = vmatprep.subr.bf16.mxu0 %v2351
    %3691 = vmatpush2.bf16.msra.mxu0 %v2350
    %3692 = vmatprep.subr.bf16.mxu0 %v2347
    %3693 = vmatpush2.bf16.msra.mxu0 %v2346
    %3694 = vmatprep.subr.bf16.mxu0 %v2343
    %3695 = vmatpush2.bf16.msra.mxu0 %v2342
    %3696 = vmatprep.subr.bf16.mxu0 %v2339
    %3697 = vmatpush2.bf16.msra.mxu0 %v2338
    %3698 = vmatprep.subr.bf16.mxu0 %v2335
    %3699 = vmatpush2.bf16.msra.mxu0 %v2334
    %3700 = vmatprep.mubr.bf16.mxu0 %v733
    %3701 = vmatmul.mubr.bf16.gmra.mxu0 %v732
    %v3702 = vpop.f32.mrf.mxu0
    %v3703 = vadd.f32 %v675, %v3702
    %v3704 = vpop.f32.mrf.mxu0
    %v3705 = vadd.f32 %v679, %v3704
    %v3706 = vpop.f32.mrf.mxu0
    %v3707 = vadd.f32 %v675, %v3706
    %v3708 = vpop.f32.mrf.mxu0
    %v3709 = vadd.f32 %v679, %v3708
    %3710 = vdwg.mxu0
    %3711 = vmatprep.subr.bf16.mxu0 %v2395
    %3712 = vmatpush1.bf16.msra.mxu0 %v2394
    %3713 = vmatprep.subr.bf16.mxu0 %v2391
    %3714 = vmatpush1.bf16.msra.mxu0 %v2390
    %3715 = vmatprep.subr.bf16.mxu0 %v2387
    %3716 = vmatpush1.bf16.msra.mxu0 %v2386
    %3717 = vmatprep.subr.bf16.mxu0 %v2383
    %3718 = vmatpush1.bf16.msra.mxu0 %v2382
    %3719 = vmatprep.subr.bf16.mxu0 %v2379
    %3720 = vmatpush1.bf16.msra.mxu0 %v2378
    %3721 = vmatprep.subr.bf16.mxu0 %v2375
    %3722 = vmatpush1.bf16.msra.mxu0 %v2374
    %3723 = vmatprep.subr.bf16.mxu0 %v2371
    %3724 = vmatpush1.bf16.msra.mxu0 %v2370
    %3725 = vmatprep.subr.bf16.mxu0 %v2367
    %3726 = vmatpush1.bf16.msra.mxu0 %v2366
    %3727 = vmatprep.subr.bf16.mxu0 %v2427
    %3728 = vmatpush2.bf16.msra.mxu0 %v2426
    %3729 = vmatprep.subr.bf16.mxu0 %v2423
    %3730 = vmatpush2.bf16.msra.mxu0 %v2422
    %3731 = vmatprep.subr.bf16.mxu0 %v2419
    %3732 = vmatpush2.bf16.msra.mxu0 %v2418
    %3733 = vmatprep.subr.bf16.mxu0 %v2415
    %3734 = vmatpush2.bf16.msra.mxu0 %v2414
    %3735 = vmatprep.subr.bf16.mxu0 %v2411
    %3736 = vmatpush2.bf16.msra.mxu0 %v2410
    %3737 = vmatprep.subr.bf16.mxu0 %v2407
    %3738 = vmatpush2.bf16.msra.mxu0 %v2406
    %3739 = vmatprep.subr.bf16.mxu0 %v2403
    %3740 = vmatpush2.bf16.msra.mxu0 %v2402
    %3741 = vmatprep.subr.bf16.mxu0 %v2399
    %3742 = vmatpush2.bf16.msra.mxu0 %v2398
    %3743 = vmatprep.mubr.bf16.mxu0 %v735
    %3744 = vmatmul.mubr.bf16.gmra.mxu0 %v734
    %v3745 = vpop.f32.mrf.mxu0
    %v3746 = vadd.f32 %v3703, %v3745
    %v3747 = vpop.f32.mrf.mxu0
    %v3748 = vadd.f32 %v3705, %v3747
    %v3749 = vpop.f32.mrf.mxu0
    %v3750 = vadd.f32 %v3707, %v3749
    %v3751 = vpop.f32.mrf.mxu0
    %v3752 = vadd.f32 %v3709, %v3751
    %3753 = vdwg.mxu0
    %3754 = vmatprep.subr.bf16.mxu0 %v2459
    %3755 = vmatpush1.bf16.msra.mxu0 %v2458
    %3756 = vmatprep.subr.bf16.mxu0 %v2455
    %3757 = vmatpush1.bf16.msra.mxu0 %v2454
    %3758 = vmatprep.subr.bf16.mxu0 %v2451
    %3759 = vmatpush1.bf16.msra.mxu0 %v2450
    %3760 = vmatprep.subr.bf16.mxu0 %v2447
    %3761 = vmatpush1.bf16.msra.mxu0 %v2446
    %3762 = vmatprep.subr.bf16.mxu0 %v2443
    %3763 = vmatpush1.bf16.msra.mxu0 %v2442
    %3764 = vmatprep.subr.bf16.mxu0 %v2439
    %3765 = vmatpush1.bf16.msra.mxu0 %v2438
    %3766 = vmatprep.subr.bf16.mxu0 %v2435
    %3767 = vmatpush1.bf16.msra.mxu0 %v2434
    %3768 = vmatprep.subr.bf16.mxu0 %v2431
    %3769 = vmatpush1.bf16.msra.mxu0 %v2430
    %3770 = vmatprep.subr.bf16.mxu0 %v2491
    %3771 = vmatpush2.bf16.msra.mxu0 %v2490
    %3772 = vmatprep.subr.bf16.mxu0 %v2487
    %3773 = vmatpush2.bf16.msra.mxu0 %v2486
    %3774 = vmatprep.subr.bf16.mxu0 %v2483
    %3775 = vmatpush2.bf16.msra.mxu0 %v2482
    %3776 = vmatprep.subr.bf16.mxu0 %v2479
    %3777 = vmatpush2.bf16.msra.mxu0 %v2478
    %3778 = vmatprep.subr.bf16.mxu0 %v2475
    %3779 = vmatpush2.bf16.msra.mxu0 %v2474
    %3780 = vmatprep.subr.bf16.mxu0 %v2471
    %3781 = vmatpush2.bf16.msra.mxu0 %v2470
    %3782 = vmatprep.subr.bf16.mxu0 %v2467
    %3783 = vmatpush2.bf16.msra.mxu0 %v2466
    %3784 = vmatprep.subr.bf16.mxu0 %v2463
    %3785 = vmatpush2.bf16.msra.mxu0 %v2462
    %3786 = vmatprep.mubr.bf16.mxu0 %v737
    %3787 = vmatmul.mubr.bf16.gmra.mxu0 %v736
    %v3788 = vpop.f32.mrf.mxu0
    %v3789 = vadd.f32 %v3746, %v3788
    %v3790 = vpop.f32.mrf.mxu0
    %v3791 = vadd.f32 %v3748, %v3790
    %v3792 = vpop.f32.mrf.mxu0
    %v3793 = vadd.f32 %v3750, %v3792
    %v3794 = vpop.f32.mrf.mxu0
    %v3795 = vadd.f32 %v3752, %v3794
    %3796 = vdwg.mxu0
    %3797 = vmatprep.subr.bf16.mxu0 %v2523
    %3798 = vmatpush1.bf16.msra.mxu0 %v2522
    %3799 = vmatprep.subr.bf16.mxu0 %v2519
    %3800 = vmatpush1.bf16.msra.mxu0 %v2518
    %3801 = vmatprep.subr.bf16.mxu0 %v2515
    %3802 = vmatpush1.bf16.msra.mxu0 %v2514
    %3803 = vmatprep.subr.bf16.mxu0 %v2511
    %3804 = vmatpush1.bf16.msra.mxu0 %v2510
    %3805 = vmatprep.subr.bf16.mxu0 %v2507
    %3806 = vmatpush1.bf16.msra.mxu0 %v2506
    %3807 = vmatprep.subr.bf16.mxu0 %v2503
    %3808 = vmatpush1.bf16.msra.mxu0 %v2502
    %3809 = vmatprep.subr.bf16.mxu0 %v2499
    %3810 = vmatpush1.bf16.msra.mxu0 %v2498
    %3811 = vmatprep.subr.bf16.mxu0 %v2495
    %3812 = vmatpush1.bf16.msra.mxu0 %v2494
    %3813 = vmatprep.subr.bf16.mxu0 %v2555
    %3814 = vmatpush2.bf16.msra.mxu0 %v2554
    %3815 = vmatprep.subr.bf16.mxu0 %v2551
    %3816 = vmatpush2.bf16.msra.mxu0 %v2550
    %3817 = vmatprep.subr.bf16.mxu0 %v2547
    %3818 = vmatpush2.bf16.msra.mxu0 %v2546
    %3819 = vmatprep.subr.bf16.mxu0 %v2543
    %3820 = vmatpush2.bf16.msra.mxu0 %v2542
    %3821 = vmatprep.subr.bf16.mxu0 %v2539
    %3822 = vmatpush2.bf16.msra.mxu0 %v2538
    %3823 = vmatprep.subr.bf16.mxu0 %v2535
    %3824 = vmatpush2.bf16.msra.mxu0 %v2534
    %3825 = vmatprep.subr.bf16.mxu0 %v2531
    %3826 = vmatpush2.bf16.msra.mxu0 %v2530
    %3827 = vmatprep.subr.bf16.mxu0 %v2527
    %3828 = vmatpush2.bf16.msra.mxu0 %v2526
    %3829 = vmatprep.mubr.bf16.mxu0 %v739
    %3830 = vmatmul.mubr.bf16.gmra.mxu0 %v738
    %v3831 = vpop.f32.mrf.mxu0
    %v3832 = vadd.f32 %v3789, %v3831
    %v3833 = vpop.f32.mrf.mxu0
    %v3834 = vadd.f32 %v3791, %v3833
    %v3835 = vpop.f32.mrf.mxu0
    %v3836 = vadd.f32 %v3793, %v3835
    %v3837 = vpop.f32.mrf.mxu0
    %v3838 = vadd.f32 %v3795, %v3837
    %3839 = vdwg.mxu0
    %3840 = vmatprep.subr.bf16.mxu0 %v2587
    %3841 = vmatpush1.bf16.msra.mxu0 %v2586
    %3842 = vmatprep.subr.bf16.mxu0 %v2583
    %3843 = vmatpush1.bf16.msra.mxu0 %v2582
    %3844 = vmatprep.subr.bf16.mxu0 %v2579
    %3845 = vmatpush1.bf16.msra.mxu0 %v2578
    %3846 = vmatprep.subr.bf16.mxu0 %v2575
    %3847 = vmatpush1.bf16.msra.mxu0 %v2574
    %3848 = vmatprep.subr.bf16.mxu0 %v2571
    %3849 = vmatpush1.bf16.msra.mxu0 %v2570
    %3850 = vmatprep.subr.bf16.mxu0 %v2567
    %3851 = vmatpush1.bf16.msra.mxu0 %v2566
    %3852 = vmatprep.subr.bf16.mxu0 %v2563
    %3853 = vmatpush1.bf16.msra.mxu0 %v2562
    %3854 = vmatprep.subr.bf16.mxu0 %v2559
    %3855 = vmatpush1.bf16.msra.mxu0 %v2558
    %3856 = vmatprep.subr.bf16.mxu0 %v2619
    %3857 = vmatpush2.bf16.msra.mxu0 %v2618
    %3858 = vmatprep.subr.bf16.mxu0 %v2615
    %3859 = vmatpush2.bf16.msra.mxu0 %v2614
    %3860 = vmatprep.subr.bf16.mxu0 %v2611
    %3861 = vmatpush2.bf16.msra.mxu0 %v2610
    %3862 = vmatprep.subr.bf16.mxu0 %v2607
    %3863 = vmatpush2.bf16.msra.mxu0 %v2606
    %3864 = vmatprep.subr.bf16.mxu0 %v2603
    %3865 = vmatpush2.bf16.msra.mxu0 %v2602
    %3866 = vmatprep.subr.bf16.mxu0 %v2599
    %3867 = vmatpush2.bf16.msra.mxu0 %v2598
    %3868 = vmatprep.subr.bf16.mxu0 %v2595
    %3869 = vmatpush2.bf16.msra.mxu0 %v2594
    %3870 = vmatprep.subr.bf16.mxu0 %v2591
    %3871 = vmatpush2.bf16.msra.mxu0 %v2590
    %3872 = vmatprep.mubr.bf16.mxu0 %v741
    %3873 = vmatmul.mubr.bf16.gmra.mxu0 %v740
    %v3874 = vpop.f32.mrf.mxu0
    %v3875 = vadd.f32 %v3832, %v3874
    %v3876 = vpop.f32.mrf.mxu0
    %v3877 = vadd.f32 %v3834, %v3876
    %v3878 = vpop.f32.mrf.mxu0
    %v3879 = vadd.f32 %v3836, %v3878
    %v3880 = vpop.f32.mrf.mxu0
    %v3881 = vadd.f32 %v3838, %v3880
    %3882 = vdwg.mxu0
    %3883 = vmatprep.subr.bf16.mxu0 %v2651
    %3884 = vmatpush1.bf16.msra.mxu0 %v2650
    %3885 = vmatprep.subr.bf16.mxu0 %v2647
    %3886 = vmatpush1.bf16.msra.mxu0 %v2646
    %3887 = vmatprep.subr.bf16.mxu0 %v2643
    %3888 = vmatpush1.bf16.msra.mxu0 %v2642
    %3889 = vmatprep.subr.bf16.mxu0 %v2639
    %3890 = vmatpush1.bf16.msra.mxu0 %v2638
    %3891 = vmatprep.subr.bf16.mxu0 %v2635
    %3892 = vmatpush1.bf16.msra.mxu0 %v2634
    %3893 = vmatprep.subr.bf16.mxu0 %v2631
    %3894 = vmatpush1.bf16.msra.mxu0 %v2630
    %3895 = vmatprep.subr.bf16.mxu0 %v2627
    %3896 = vmatpush1.bf16.msra.mxu0 %v2626
    %3897 = vmatprep.subr.bf16.mxu0 %v2623
    %3898 = vmatpush1.bf16.msra.mxu0 %v2622
    %3899 = vmatprep.subr.bf16.mxu0 %v2683
    %3900 = vmatpush2.bf16.msra.mxu0 %v2682
    %3901 = vmatprep.subr.bf16.mxu0 %v2679
    %3902 = vmatpush2.bf16.msra.mxu0 %v2678
    %3903 = vmatprep.subr.bf16.mxu0 %v2675
    %3904 = vmatpush2.bf16.msra.mxu0 %v2674
    %3905 = vmatprep.subr.bf16.mxu0 %v2671
    %3906 = vmatpush2.bf16.msra.mxu0 %v2670
    %3907 = vmatprep.subr.bf16.mxu0 %v2667
    %3908 = vmatpush2.bf16.msra.mxu0 %v2666
    %3909 = vmatprep.subr.bf16.mxu0 %v2663
    %3910 = vmatpush2.bf16.msra.mxu0 %v2662
    %3911 = vmatprep.subr.bf16.mxu0 %v2659
    %3912 = vmatpush2.bf16.msra.mxu0 %v2658
    %3913 = vmatprep.subr.bf16.mxu0 %v2655
    %3914 = vmatpush2.bf16.msra.mxu0 %v2654
    %3915 = vmatprep.mubr.bf16.mxu0 %v743
    %3916 = vmatmul.mubr.bf16.gmra.mxu0 %v742
    %v3917 = vpop.f32.mrf.mxu0
    %v3918 = vadd.f32 %v3875, %v3917
    %v3919 = vpop.f32.mrf.mxu0
    %v3920 = vadd.f32 %v3877, %v3919
    %v3921 = vpop.f32.mrf.mxu0
    %v3922 = vadd.f32 %v3879, %v3921
    %v3923 = vpop.f32.mrf.mxu0
    %v3924 = vadd.f32 %v3881, %v3923
    %3925 = vdwg.mxu0
    %3926 = vmatprep.subr.bf16.mxu0 %v2715
    %3927 = vmatpush1.bf16.msra.mxu0 %v2714
    %3928 = vmatprep.subr.bf16.mxu0 %v2711
    %3929 = vmatpush1.bf16.msra.mxu0 %v2710
    %3930 = vmatprep.subr.bf16.mxu0 %v2707
    %3931 = vmatpush1.bf16.msra.mxu0 %v2706
    %3932 = vmatprep.subr.bf16.mxu0 %v2703
    %3933 = vmatpush1.bf16.msra.mxu0 %v2702
    %3934 = vmatprep.subr.bf16.mxu0 %v2699
    %3935 = vmatpush1.bf16.msra.mxu0 %v2698
    %3936 = vmatprep.subr.bf16.mxu0 %v2695
    %3937 = vmatpush1.bf16.msra.mxu0 %v2694
    %3938 = vmatprep.subr.bf16.mxu0 %v2691
    %3939 = vmatpush1.bf16.msra.mxu0 %v2690
    %3940 = vmatprep.subr.bf16.mxu0 %v2687
    %3941 = vmatpush1.bf16.msra.mxu0 %v2686
    %3942 = vmatprep.subr.bf16.mxu0 %v2747
    %3943 = vmatpush2.bf16.msra.mxu0 %v2746
    %3944 = vmatprep.subr.bf16.mxu0 %v2743
    %3945 = vmatpush2.bf16.msra.mxu0 %v2742
    %3946 = vmatprep.subr.bf16.mxu0 %v2739
    %3947 = vmatpush2.bf16.msra.mxu0 %v2738
    %3948 = vmatprep.subr.bf16.mxu0 %v2735
    %3949 = vmatpush2.bf16.msra.mxu0 %v2734
    %3950 = vmatprep.subr.bf16.mxu0 %v2731
    %3951 = vmatpush2.bf16.msra.mxu0 %v2730
    %3952 = vmatprep.subr.bf16.mxu0 %v2727
    %3953 = vmatpush2.bf16.msra.mxu0 %v2726
    %3954 = vmatprep.subr.bf16.mxu0 %v2723
    %3955 = vmatpush2.bf16.msra.mxu0 %v2722
    %3956 = vmatprep.subr.bf16.mxu0 %v2719
    %3957 = vmatpush2.bf16.msra.mxu0 %v2718
    %3958 = vmatprep.mubr.bf16.mxu0 %v745
    %3959 = vmatmul.mubr.bf16.gmra.mxu0 %v744
    %v3960 = vpop.f32.mrf.mxu0
    %v3961 = vadd.f32 %v3918, %v3960
    %v3962 = vpop.f32.mrf.mxu0
    %v3963 = vadd.f32 %v3920, %v3962
    %v3964 = vpop.f32.mrf.mxu0
    %v3965 = vadd.f32 %v3922, %v3964
    %v3966 = vpop.f32.mrf.mxu0
    %v3967 = vadd.f32 %v3924, %v3966
    %3968 = vdwg.mxu0
    %3969 = vmatprep.subr.bf16.mxu0 %v2779
    %3970 = vmatpush1.bf16.msra.mxu0 %v2778
    %3971 = vmatprep.subr.bf16.mxu0 %v2775
    %3972 = vmatpush1.bf16.msra.mxu0 %v2774
    %3973 = vmatprep.subr.bf16.mxu0 %v2771
    %3974 = vmatpush1.bf16.msra.mxu0 %v2770
    %3975 = vmatprep.subr.bf16.mxu0 %v2767
    %3976 = vmatpush1.bf16.msra.mxu0 %v2766
    %3977 = vmatprep.subr.bf16.mxu0 %v2763
    %3978 = vmatpush1.bf16.msra.mxu0 %v2762
    %3979 = vmatprep.subr.bf16.mxu0 %v2759
    %3980 = vmatpush1.bf16.msra.mxu0 %v2758
    %3981 = vmatprep.subr.bf16.mxu0 %v2755
    %3982 = vmatpush1.bf16.msra.mxu0 %v2754
    %3983 = vmatprep.subr.bf16.mxu0 %v2751
    %3984 = vmatpush1.bf16.msra.mxu0 %v2750
    %3985 = vmatprep.subr.bf16.mxu0 %v2811
    %3986 = vmatpush2.bf16.msra.mxu0 %v2810
    %3987 = vmatprep.subr.bf16.mxu0 %v2807
    %3988 = vmatpush2.bf16.msra.mxu0 %v2806
    %3989 = vmatprep.subr.bf16.mxu0 %v2803
    %3990 = vmatpush2.bf16.msra.mxu0 %v2802
    %3991 = vmatprep.subr.bf16.mxu0 %v2799
    %3992 = vmatpush2.bf16.msra.mxu0 %v2798
    %3993 = vmatprep.subr.bf16.mxu0 %v2795
    %3994 = vmatpush2.bf16.msra.mxu0 %v2794
    %3995 = vmatprep.subr.bf16.mxu0 %v2791
    %3996 = vmatpush2.bf16.msra.mxu0 %v2790
    %3997 = vmatprep.subr.bf16.mxu0 %v2787
    %3998 = vmatpush2.bf16.msra.mxu0 %v2786
    %3999 = vmatprep.subr.bf16.mxu0 %v2783
    %4000 = vmatpush2.bf16.msra.mxu0 %v2782
    %4001 = vmatprep.mubr.bf16.mxu0 %v747
    %4002 = vmatmul.mubr.bf16.gmra.mxu0 %v746
    %v4003 = vpop.f32.mrf.mxu0
    %v4004 = vadd.f32 %v3961, %v4003
    %v4005 = vpop.f32.mrf.mxu0
    %v4006 = vadd.f32 %v3963, %v4005
    %v4007 = vpop.f32.mrf.mxu0
    %v4008 = vadd.f32 %v3965, %v4007
    %v4009 = vpop.f32.mrf.mxu0
    %v4010 = vadd.f32 %v3967, %v4009
    %4011 = vdwg.mxu0
    %v4012 = vmax.f32 %v3660, 0.0
    %v4013 = vmax.f32 %v3662, 0.0
    %v4014 = vmax.f32 %v4004, 0.0
    %v4015 = vmax.f32 %v4006, 0.0
    %v4016 = vmax.f32 %v3664, 0.0
    %v4017 = vmax.f32 %v3666, 0.0
    %v4018 = vmax.f32 %v4008, 0.0
    %v4019 = vmax.f32 %v4010, 0.0
    %v4020 = vpack.c.bf16 %v4016, %v4012
    %v4021 = vpack.c.bf16 %v4017, %v4013
    %v4022 = vpack.c.bf16 %v4018, %v4014
    %v4023 = vpack.c.bf16 %v4019, %v4015
    %v4024 = vld [vmem:[#allocation6] sm:$0xf]
    %v4025 = vld [vmem:[#allocation6 + $0x4] sm:$0xf]
    %v4026 = vld [vmem:[#allocation6 + $0x8] sm:$0xf]
    %v4027 = vld [vmem:[#allocation6 + $0xc] sm:$0xf]
    %v4028 = vld [vmem:[#allocation6 + $0x10] sm:$0xf]
    %v4029 = vld [vmem:[#allocation6 + $0x14] sm:$0xf]
    %v4030 = vld [vmem:[#allocation6 + $0x18] sm:$0xf]
    %v4031 = vld [vmem:[#allocation6 + $0x1c] sm:$0xf]
    %v4032 = vld [vmem:[#allocation6 + $0x20] sm:$0xf]
    %v4033 = vld [vmem:[#allocation6 + $0x24] sm:$0xf]
    %v4034 = vld [vmem:[#allocation6 + $0x28] sm:$0xf]
    %v4035 = vld [vmem:[#allocation6 + $0x2c] sm:$0xf]
    %v4036 = vld [vmem:[#allocation6 + $0x30] sm:$0xf]
    %v4037 = vld [vmem:[#allocation6 + $0x34] sm:$0xf]
    %v4038 = vld [vmem:[#allocation6 + $0x38] sm:$0xf]
    %v4039 = vld [vmem:[#allocation6 + $0x3c] sm:$0xf]
    %v4040 = vld [vmem:[#allocation6 + $0x40] sm:$0xf]
    %v4041 = vld [vmem:[#allocation6 + $0x44] sm:$0xf]
    %v4042 = vld [vmem:[#allocation6 + $0x48] sm:$0xf]
    %v4043 = vld [vmem:[#allocation6 + $0x4c] sm:$0xf]
    %v4044 = vld [vmem:[#allocation6 + $0x50] sm:$0xf]
    %v4045 = vld [vmem:[#allocation6 + $0x54] sm:$0xf]
    %v4046 = vld [vmem:[#allocation6 + $0x58] sm:$0xf]
    %v4047 = vld [vmem:[#allocation6 + $0x5c] sm:$0xf]
    %v4048 = vld [vmem:[#allocation6 + $0x60] sm:$0xf]
    %v4049 = vld [vmem:[#allocation6 + $0x64] sm:$0xf]
    %v4050 = vld [vmem:[#allocation6 + $0x68] sm:$0xf]
    %v4051 = vld [vmem:[#allocation6 + $0x6c] sm:$0xf]
    %v4052 = vld [vmem:[#allocation6 + $0x70] sm:$0xf]
    %v4053 = vld [vmem:[#allocation6 + $0x74] sm:$0xf]
    %v4054 = vld [vmem:[#allocation6 + $0x78] sm:$0xf]
    %v4055 = vld [vmem:[#allocation6 + $0x7c] sm:$0xf]
    %v4056 = vld [vmem:[#allocation6 + $0x80] sm:$0xf]
    %v4057 = vld [vmem:[#allocation6 + $0x84] sm:$0xf]
    %v4058 = vld [vmem:[#allocation6 + $0x88] sm:$0xf]
    %v4059 = vld [vmem:[#allocation6 + $0x8c] sm:$0xf]
    %v4060 = vld [vmem:[#allocation6 + $0x90] sm:$0xf]
    %v4061 = vld [vmem:[#allocation6 + $0x94] sm:$0xf]
    %v4062 = vld [vmem:[#allocation6 + $0x98] sm:$0xf]
    %v4063 = vld [vmem:[#allocation6 + $0x9c] sm:$0xf]
    %v4064 = vld [vmem:[#allocation6 + $0xa0] sm:$0xf]
    %v4065 = vld [vmem:[#allocation6 + $0xa4] sm:$0xf]
    %v4066 = vld [vmem:[#allocation6 + $0xa8] sm:$0xf]
    %v4067 = vld [vmem:[#allocation6 + $0xac] sm:$0xf]
    %v4068 = vld [vmem:[#allocation6 + $0xb0] sm:$0xf]
    %v4069 = vld [vmem:[#allocation6 + $0xb4] sm:$0xf]
    %v4070 = vld [vmem:[#allocation6 + $0xb8] sm:$0xf]
    %v4071 = vld [vmem:[#allocation6 + $0xbc] sm:$0xf]
    %v4072 = vld [vmem:[#allocation6 + $0xc0] sm:$0xf]
    %v4073 = vld [vmem:[#allocation6 + $0xc4] sm:$0xf]
    %v4074 = vld [vmem:[#allocation6 + $0xc8] sm:$0xf]
    %v4075 = vld [vmem:[#allocation6 + $0xcc] sm:$0xf]
    %v4076 = vld [vmem:[#allocation6 + $0xd0] sm:$0xf]
    %v4077 = vld [vmem:[#allocation6 + $0xd4] sm:$0xf]
    %v4078 = vld [vmem:[#allocation6 + $0xd8] sm:$0xf]
    %v4079 = vld [vmem:[#allocation6 + $0xdc] sm:$0xf]
    %v4080 = vld [vmem:[#allocation6 + $0xe0] sm:$0xf]
    %v4081 = vld [vmem:[#allocation6 + $0xe4] sm:$0xf]
    %v4082 = vld [vmem:[#allocation6 + $0xe8] sm:$0xf]
    %v4083 = vld [vmem:[#allocation6 + $0xec] sm:$0xf]
    %v4084 = vld [vmem:[#allocation6 + $0xf0] sm:$0xf]
    %v4085 = vld [vmem:[#allocation6 + $0xf4] sm:$0xf]
    %v4086 = vld [vmem:[#allocation6 + $0xf8] sm:$0xf]
    %v4087 = vld [vmem:[#allocation6 + $0xfc] sm:$0xf]
    %v4088 = vld [vmem:[#allocation7] sm:$0x1]
    %v4090 = vlaneseq
    %v4091 = vshrl.u32 %v4090, 7
    %v4092 = vsub.s32 0, %v4091
    %v4093 = vrot.slane %v4088, %v4092
    %v4159 = vunpack.c.l.b16 %v4024
    %v4160 = vunpack.c.l.b16 %v4025
    %v4161 = vunpack.c.l.b16 %v4026
    %v4162 = vunpack.c.l.b16 %v4027
    %v4163 = vunpack.c.l.b16 %v4028
    %v4164 = vunpack.c.l.b16 %v4029
    %v4165 = vunpack.c.l.b16 %v4030
    %v4166 = vunpack.c.l.b16 %v4031
    %v4167 = vunpack.c.l.b16 %v4032
    %v4168 = vunpack.c.l.b16 %v4033
    %v4169 = vunpack.c.l.b16 %v4034
    %v4170 = vunpack.c.l.b16 %v4035
    %v4171 = vunpack.c.l.b16 %v4036
    %v4172 = vunpack.c.l.b16 %v4037
    %v4173 = vunpack.c.l.b16 %v4038
    %v4174 = vunpack.c.l.b16 %v4039
    %v4175 = vunpack.c.l.b16 %v4040
    %v4176 = vunpack.c.l.b16 %v4041
    %v4177 = vunpack.c.l.b16 %v4042
    %v4178 = vunpack.c.l.b16 %v4043
    %v4179 = vunpack.c.l.b16 %v4044
    %v4180 = vunpack.c.l.b16 %v4045
    %v4181 = vunpack.c.l.b16 %v4046
    %v4182 = vunpack.c.l.b16 %v4047
    %v4183 = vunpack.c.l.b16 %v4048
    %v4184 = vunpack.c.l.b16 %v4049
    %v4185 = vunpack.c.l.b16 %v4050
    %v4186 = vunpack.c.l.b16 %v4051
    %v4187 = vunpack.c.l.b16 %v4052
    %v4188 = vunpack.c.l.b16 %v4053
    %v4189 = vunpack.c.l.b16 %v4054
    %v4190 = vunpack.c.l.b16 %v4055
    %v4191 = vunpack.c.l.b16 %v4056
    %v4192 = vunpack.c.l.b16 %v4057
    %v4193 = vunpack.c.l.b16 %v4058
    %v4194 = vunpack.c.l.b16 %v4059
    %v4195 = vunpack.c.l.b16 %v4060
    %v4196 = vunpack.c.l.b16 %v4061
    %v4197 = vunpack.c.l.b16 %v4062
    %v4198 = vunpack.c.l.b16 %v4063
    %v4199 = vunpack.c.l.b16 %v4064
    %v4200 = vunpack.c.l.b16 %v4065
    %v4201 = vunpack.c.l.b16 %v4066
    %v4202 = vunpack.c.l.b16 %v4067
    %v4203 = vunpack.c.l.b16 %v4068
    %v4204 = vunpack.c.l.b16 %v4069
    %v4205 = vunpack.c.l.b16 %v4070
    %v4206 = vunpack.c.l.b16 %v4071
    %v4207 = vunpack.c.l.b16 %v4072
    %v4208 = vunpack.c.l.b16 %v4073
    %v4209 = vunpack.c.l.b16 %v4074
    %v4210 = vunpack.c.l.b16 %v4075
    %v4211 = vunpack.c.l.b16 %v4076
    %v4212 = vunpack.c.l.b16 %v4077
    %v4213 = vunpack.c.l.b16 %v4078
    %v4214 = vunpack.c.l.b16 %v4079
    %v4215 = vunpack.c.l.b16 %v4080
    %v4216 = vunpack.c.l.b16 %v4081
    %v4217 = vunpack.c.l.b16 %v4082
    %v4218 = vunpack.c.l.b16 %v4083
    %v4219 = vunpack.c.l.b16 %v4084
    %v4220 = vunpack.c.l.b16 %v4085
    %v4221 = vunpack.c.l.b16 %v4086
    %v4222 = vunpack.c.l.b16 %v4087
    %v4223 = vpack.c.b16 %v4160, %v4159
    %v4224 = vpack.c.b16 %v4162, %v4161
    %v4225 = vpack.c.b16 %v4164, %v4163
    %v4226 = vpack.c.b16 %v4166, %v4165
    %v4227 = vpack.c.b16 %v4168, %v4167
    %v4228 = vpack.c.b16 %v4170, %v4169
    %v4229 = vpack.c.b16 %v4172, %v4171
    %v4230 = vpack.c.b16 %v4174, %v4173
    %v4231 = vpack.c.b16 %v4176, %v4175
    %v4232 = vpack.c.b16 %v4178, %v4177
    %v4233 = vpack.c.b16 %v4180, %v4179
    %v4234 = vpack.c.b16 %v4182, %v4181
    %v4235 = vpack.c.b16 %v4184, %v4183
    %v4236 = vpack.c.b16 %v4186, %v4185
    %v4237 = vpack.c.b16 %v4188, %v4187
    %v4238 = vpack.c.b16 %v4190, %v4189
    %v4239 = vpack.c.b16 %v4192, %v4191
    %v4240 = vpack.c.b16 %v4194, %v4193
    %v4241 = vpack.c.b16 %v4196, %v4195
    %v4242 = vpack.c.b16 %v4198, %v4197
    %v4243 = vpack.c.b16 %v4200, %v4199
    %v4244 = vpack.c.b16 %v4202, %v4201
    %v4245 = vpack.c.b16 %v4204, %v4203
    %v4246 = vpack.c.b16 %v4206, %v4205
    %v4247 = vpack.c.b16 %v4208, %v4207
    %v4248 = vpack.c.b16 %v4210, %v4209
    %v4249 = vpack.c.b16 %v4212, %v4211
    %v4250 = vpack.c.b16 %v4214, %v4213
    %v4251 = vpack.c.b16 %v4216, %v4215
    %v4252 = vpack.c.b16 %v4218, %v4217
    %v4253 = vpack.c.b16 %v4220, %v4219
    %v4254 = vpack.c.b16 %v4222, %v4221
    %4287 = vmatprep.subr.bf16.mxu0 0
    %4288 = vmatpush1.bf16.msra.mxu0 %v4230
    %4289 = vmatprep.subr.bf16.mxu0 0
    %4290 = vmatpush1.bf16.msra.mxu0 %v4229
    %4291 = vmatprep.subr.bf16.mxu0 0
    %4292 = vmatpush1.bf16.msra.mxu0 %v4228
    %4293 = vmatprep.subr.bf16.mxu0 0
    %4294 = vmatpush1.bf16.msra.mxu0 %v4227
    %4295 = vmatprep.subr.bf16.mxu0 0
    %4296 = vmatpush1.bf16.msra.mxu0 %v4226
    %4297 = vmatprep.subr.bf16.mxu0 0
    %4298 = vmatpush1.bf16.msra.mxu0 %v4225
    %4299 = vmatprep.subr.bf16.mxu0 0
    %4300 = vmatpush1.bf16.msra.mxu0 %v4224
    %4301 = vmatprep.subr.bf16.mxu0 0
    %4302 = vmatpush1.bf16.msra.mxu0 %v4223
    %4303 = vmatprep.subr.bf16.mxu0 0
    %4304 = vmatpush2.bf16.msra.mxu0 %v4238
    %4305 = vmatprep.subr.bf16.mxu0 0
    %4306 = vmatpush2.bf16.msra.mxu0 %v4237
    %4307 = vmatprep.subr.bf16.mxu0 0
    %4308 = vmatpush2.bf16.msra.mxu0 %v4236
    %4309 = vmatprep.subr.bf16.mxu0 0
    %4310 = vmatpush2.bf16.msra.mxu0 %v4235
    %4311 = vmatprep.subr.bf16.mxu0 0
    %4312 = vmatpush2.bf16.msra.mxu0 %v4234
    %4313 = vmatprep.subr.bf16.mxu0 0
    %4314 = vmatpush2.bf16.msra.mxu0 %v4233
    %4315 = vmatprep.subr.bf16.mxu0 0
    %4316 = vmatpush2.bf16.msra.mxu0 %v4232
    %4317 = vmatprep.subr.bf16.mxu0 0
    %4318 = vmatpush2.bf16.msra.mxu0 %v4231
    %4319 = vmatprep.mubr.bf16.mxu0 %v4021
    %4320 = vmatmul.mubr.bf16.gmra.mxu0 %v4020
    %v4321 = vpop.f32.mrf.mxu0
    %v4322 = vadd.f32 %v4093, %v4321
    %v4323 = vpop.f32.mrf.mxu0
    %v4324 = vpop.f32.mrf.mxu0
    %v4325 = vadd.f32 %v4093, %v4324
    %v4326 = vpop.f32.mrf.mxu0
    %4327 = vdwg.mxu0
    %4328 = vmatprep.subr.bf16.mxu0 0
    %4329 = vmatpush1.bf16.msra.mxu0 %v4246
    %4330 = vmatprep.subr.bf16.mxu0 0
    %4331 = vmatpush1.bf16.msra.mxu0 %v4245
    %4332 = vmatprep.subr.bf16.mxu0 0
    %4333 = vmatpush1.bf16.msra.mxu0 %v4244
    %4334 = vmatprep.subr.bf16.mxu0 0
    %4335 = vmatpush1.bf16.msra.mxu0 %v4243
    %4336 = vmatprep.subr.bf16.mxu0 0
    %4337 = vmatpush1.bf16.msra.mxu0 %v4242
    %4338 = vmatprep.subr.bf16.mxu0 0
    %4339 = vmatpush1.bf16.msra.mxu0 %v4241
    %4340 = vmatprep.subr.bf16.mxu0 0
    %4341 = vmatpush1.bf16.msra.mxu0 %v4240
    %4342 = vmatprep.subr.bf16.mxu0 0
    %4343 = vmatpush1.bf16.msra.mxu0 %v4239
    %4344 = vmatprep.subr.bf16.mxu0 0
    %4345 = vmatpush2.bf16.msra.mxu0 %v4254
    %4346 = vmatprep.subr.bf16.mxu0 0
    %4347 = vmatpush2.bf16.msra.mxu0 %v4253
    %4348 = vmatprep.subr.bf16.mxu0 0
    %4349 = vmatpush2.bf16.msra.mxu0 %v4252
    %4350 = vmatprep.subr.bf16.mxu0 0
    %4351 = vmatpush2.bf16.msra.mxu0 %v4251
    %4352 = vmatprep.subr.bf16.mxu0 0
    %4353 = vmatpush2.bf16.msra.mxu0 %v4250
    %4354 = vmatprep.subr.bf16.mxu0 0
    %4355 = vmatpush2.bf16.msra.mxu0 %v4249
    %4356 = vmatprep.subr.bf16.mxu0 0
    %4357 = vmatpush2.bf16.msra.mxu0 %v4248
    %4358 = vmatprep.subr.bf16.mxu0 0
    %4359 = vmatpush2.bf16.msra.mxu0 %v4247
    %4360 = vmatprep.mubr.bf16.mxu0 %v4023
    %4361 = vmatmul.mubr.bf16.gmra.mxu0 %v4022
    %v4362 = vpop.f32.mrf.mxu0
    %v4363 = vadd.f32 %v4322, %v4362
    %v4364 = vpop.f32.mrf.mxu0
    %v4365 = vpop.f32.mrf.mxu0
    %v4366 = vadd.f32 %v4325, %v4365
    %v4367 = vpop.f32.mrf.mxu0
    %4368 = vdwg.mxu0
    %v4369 = vmax.f32 %v4363, 0.0
    %v4370 = vmax.f32 %v4366, 0.0
    %v4371 = vpack.c.bf16 %v4370, %v4369
    %v4372 = vld [vmem:[#allocation9] sm:$0xf]
    %v4373 = vld [vmem:[#allocation9 + $0x4] sm:$0xf]
    %v4374 = vld [vmem:[#allocation9 + $0x8] sm:$0xf]
    %v4375 = vld [vmem:[#allocation9 + $0xc] sm:$0xf]
    %v4376 = vld [vmem:[#allocation9 + $0x10] sm:$0xf]
    %v4377 = vld [vmem:[#allocation9 + $0x14] sm:$0xf]
    %v4378 = vld [vmem:[#allocation9 + $0x18] sm:$0xf]
    %v4379 = vld [vmem:[#allocation9 + $0x1c] sm:$0xf]
    %v4380 = vld [vmem:[#allocation9 + $0x20] sm:$0xf]
    %v4381 = vld [vmem:[#allocation9 + $0x24] sm:$0xf]
    %v4382 = vld [vmem:[#allocation9 + $0x28] sm:$0xf]
    %v4383 = vld [vmem:[#allocation9 + $0x2c] sm:$0xf]
    %v4384 = vld [vmem:[#allocation9 + $0x30] sm:$0xf]
    %v4385 = vld [vmem:[#allocation9 + $0x34] sm:$0xf]
    %v4386 = vld [vmem:[#allocation9 + $0x38] sm:$0xf]
    %v4387 = vld [vmem:[#allocation9 + $0x3c] sm:$0xf]
    %v4388 = vld [vmem:[#allocation10] sm:$0x1]
    %v4390 = vlaneseq
    %v4391 = vshrl.u32 %v4390, 7
    %v4392 = vsub.s32 0, %v4391
    %v4393 = vrot.slane %v4388, %v4392
    %v4411 = vunpack.c.l.b16 %v4372
    %v4412 = vunpack.c.l.b16 %v4373
    %v4413 = vunpack.c.l.b16 %v4374
    %v4414 = vunpack.c.l.b16 %v4375
    %v4415 = vunpack.c.l.b16 %v4376
    %v4416 = vunpack.c.l.b16 %v4377
    %v4417 = vunpack.c.l.b16 %v4378
    %v4418 = vunpack.c.l.b16 %v4379
    %v4419 = vunpack.c.l.b16 %v4380
    %v4420 = vunpack.c.l.b16 %v4381
    %v4421 = vunpack.c.l.b16 %v4382
    %v4422 = vunpack.c.l.b16 %v4383
    %v4423 = vunpack.c.l.b16 %v4384
    %v4424 = vunpack.c.l.b16 %v4385
    %v4425 = vunpack.c.l.b16 %v4386
    %v4426 = vunpack.c.l.b16 %v4387
    %v4427 = vpack.c.b16 %v4412, %v4411
    %v4428 = vpack.c.b16 %v4414, %v4413
    %v4429 = vpack.c.b16 %v4416, %v4415
    %v4430 = vpack.c.b16 %v4418, %v4417
    %v4431 = vpack.c.b16 %v4420, %v4419
    %v4432 = vpack.c.b16 %v4422, %v4421
    %v4433 = vpack.c.b16 %v4424, %v4423
    %v4434 = vpack.c.b16 %v4426, %v4425
    %4443 = vmatprep.subr.bf16.mxu0 0
    %4444 = vmatpush1.bf16.msra.mxu0 %v4434
    %4445 = vmatprep.subr.bf16.mxu0 0
    %4446 = vmatpush1.bf16.msra.mxu0 %v4433
    %4447 = vmatprep.subr.bf16.mxu0 0
    %4448 = vmatpush1.bf16.msra.mxu0 %v4432
    %4449 = vmatprep.subr.bf16.mxu0 0
    %4450 = vmatpush1.bf16.msra.mxu0 %v4431
    %4451 = vmatprep.subr.bf16.mxu0 0
    %4452 = vmatpush1.bf16.msra.mxu0 %v4430
    %4453 = vmatprep.subr.bf16.mxu0 0
    %4454 = vmatpush1.bf16.msra.mxu0 %v4429
    %4455 = vmatprep.subr.bf16.mxu0 0
    %4456 = vmatpush1.bf16.msra.mxu0 %v4428
    %4457 = vmatprep.subr.bf16.mxu0 0
    %4458 = vmatpush1.bf16.msra.mxu0 %v4427
    %4459 = vmatprep.subr.bf16.mxu0 0
    %4460 = vmatpush2.bf16.msra.mxu0 0
    %4461 = vmatprep.subr.bf16.mxu0 0
    %4462 = vmatpush2.bf16.msra.mxu0 0
    %4463 = vmatprep.subr.bf16.mxu0 0
    %4464 = vmatpush2.bf16.msra.mxu0 0
    %4465 = vmatprep.subr.bf16.mxu0 0
    %4466 = vmatpush2.bf16.msra.mxu0 0
    %4467 = vmatprep.subr.bf16.mxu0 0
    %4468 = vmatpush2.bf16.msra.mxu0 0
    %4469 = vmatprep.subr.bf16.mxu0 0
    %4470 = vmatpush2.bf16.msra.mxu0 0
    %4471 = vmatprep.subr.bf16.mxu0 0
    %4472 = vmatpush2.bf16.msra.mxu0 0
    %4473 = vmatprep.subr.bf16.mxu0 0
    %4474 = vmatpush2.bf16.msra.mxu0 0
    %4475 = vmatprep.mubr.bf16.mxu0 0
    %4476 = vmatmul.mubr.bf16.gmra.mxu0 %v4371
    %v4477 = vpop.f32.mrf.mxu0
    %v4478 = vadd.f32 %v4393, %v4477
    %v4479 = vpop.f32.mrf.mxu0
    %v4480 = vpop.f32.mrf.mxu0
    %v4481 = vadd.f32 %v4393, %v4480
    %v4482 = vpop.f32.mrf.mxu0
    %4483 = vdwg.mxu0
    %v4484 = vmax.f32 %v4478, 0.0
    %v4485 = vmax.f32 %v4481, 0.0
    %v4486 = vpack.c.bf16 %v4485, %v4484
    %v4487 = vld [vmem:[#allocation12] sm:$0xf]
    %v4488 = vld [vmem:[#allocation12 + $0x4] sm:$0xf]
    %v4489 = vld [vmem:[#allocation12 + $0x8] sm:$0xf]
    %v4490 = vld [vmem:[#allocation12 + $0xc] sm:$0xf]
    %v4491 = vld [vmem:[#allocation12 + $0x10] sm:$0xf]
    %v4492 = vld [vmem:[#allocation12 + $0x14] sm:$0xf]
    %v4493 = vld [vmem:[#allocation12 + $0x18] sm:$0xf]
    %v4494 = vld [vmem:[#allocation12 + $0x1c] sm:$0xf]
    %v4495 = vld [vmem:[#allocation12 + $0x20] sm:$0xf]
    %v4496 = vld [vmem:[#allocation12 + $0x24] sm:$0xf]
    %v4497 = vld [vmem:[#allocation12 + $0x28] sm:$0xf]
    %v4498 = vld [vmem:[#allocation12 + $0x2c] sm:$0xf]
    %v4499 = vld [vmem:[#allocation12 + $0x30] sm:$0xf]
    %v4500 = vld [vmem:[#allocation12 + $0x34] sm:$0xf]
    %v4501 = vld [vmem:[#allocation12 + $0x38] sm:$0xf]
    %v4502 = vld [vmem:[#allocation12 + $0x3c] sm:$0xf]
    %v4503 = vld [vmem:[#allocation13] sm:$0x1]
    %v4505 = vlaneseq
    %v4506 = vshrl.u32 %v4505, 7
    %v4507 = vsub.s32 0, %v4506
    %v4508 = vrot.slane %v4503, %v4507
    %v4526 = vunpack.c.l.b16 %v4487
    %v4527 = vunpack.c.l.b16 %v4488
    %v4528 = vunpack.c.l.b16 %v4489
    %v4529 = vunpack.c.l.b16 %v4490
    %v4530 = vunpack.c.l.b16 %v4491
    %v4531 = vunpack.c.l.b16 %v4492
    %v4532 = vunpack.c.l.b16 %v4493
    %v4533 = vunpack.c.l.b16 %v4494
    %v4534 = vunpack.c.l.b16 %v4495
    %v4535 = vunpack.c.l.b16 %v4496
    %v4536 = vunpack.c.l.b16 %v4497
    %v4537 = vunpack.c.l.b16 %v4498
    %v4538 = vunpack.c.l.b16 %v4499
    %v4539 = vunpack.c.l.b16 %v4500
    %v4540 = vunpack.c.l.b16 %v4501
    %v4541 = vunpack.c.l.b16 %v4502
    %v4542 = vpack.c.b16 %v4527, %v4526
    %v4543 = vpack.c.b16 %v4529, %v4528
    %v4544 = vpack.c.b16 %v4531, %v4530
    %v4545 = vpack.c.b16 %v4533, %v4532
    %v4546 = vpack.c.b16 %v4535, %v4534
    %v4547 = vpack.c.b16 %v4537, %v4536
    %v4548 = vpack.c.b16 %v4539, %v4538
    %v4549 = vpack.c.b16 %v4541, %v4540
    %4558 = vmatprep.subr.bf16.mxu0 0
    %4559 = vmatpush1.bf16.msra.mxu0 %v4549
    %4560 = vmatprep.subr.bf16.mxu0 0
    %4561 = vmatpush1.bf16.msra.mxu0 %v4548
    %4562 = vmatprep.subr.bf16.mxu0 0
    %4563 = vmatpush1.bf16.msra.mxu0 %v4547
    %4564 = vmatprep.subr.bf16.mxu0 0
    %4565 = vmatpush1.bf16.msra.mxu0 %v4546
    %4566 = vmatprep.subr.bf16.mxu0 0
    %4567 = vmatpush1.bf16.msra.mxu0 %v4545
    %4568 = vmatprep.subr.bf16.mxu0 0
    %4569 = vmatpush1.bf16.msra.mxu0 %v4544
    %4570 = vmatprep.subr.bf16.mxu0 0
    %4571 = vmatpush1.bf16.msra.mxu0 %v4543
    %4572 = vmatprep.subr.bf16.mxu0 0
    %4573 = vmatpush1.bf16.msra.mxu0 %v4542
    %4574 = vmatprep.subr.bf16.mxu0 0
    %4575 = vmatpush2.bf16.msra.mxu0 0
    %4576 = vmatprep.subr.bf16.mxu0 0
    %4577 = vmatpush2.bf16.msra.mxu0 0
    %4578 = vmatprep.subr.bf16.mxu0 0
    %4579 = vmatpush2.bf16.msra.mxu0 0
    %4580 = vmatprep.subr.bf16.mxu0 0
    %4581 = vmatpush2.bf16.msra.mxu0 0
    %4582 = vmatprep.subr.bf16.mxu0 0
    %4583 = vmatpush2.bf16.msra.mxu0 0
    %4584 = vmatprep.subr.bf16.mxu0 0
    %4585 = vmatpush2.bf16.msra.mxu0 0
    %4586 = vmatprep.subr.bf16.mxu0 0
    %4587 = vmatpush2.bf16.msra.mxu0 0
    %4588 = vmatprep.subr.bf16.mxu0 0
    %4589 = vmatpush2.bf16.msra.mxu0 0
    %4590 = vmatprep.mubr.bf16.mxu0 0
    %4591 = vmatmul.mubr.bf16.gmra.mxu0 %v4486
    %v4592 = vpop.f32.mrf.mxu0
    %v4593 = vadd.f32 %v4508, %v4592
    %v4594 = vpop.f32.mrf.mxu0
    %v4595 = vpop.f32.mrf.mxu0
    %v4596 = vadd.f32 %v4508, %v4595
    %v4597 = vpop.f32.mrf.mxu0
    %4598 = vdwg.mxu0
    %4599 = vst [vmem:[%s9] sm:$0xff] %v4593
    %4600 = vst [vmem:[%s9 + $0x8] sm:$0xff] %v4596
    // Predicated region
    $region70: #{classifier_forward.1} parent=1 // pred_check
      _
    $region71: #{classifier_forward.1} parent=1 // pred_check_branch
      %4602 = sbr.rel (0) target = $region73
    $region72: #{classifier_forward.1} parent=1 // pred_region
      _
    $region73: #{classifier_forward.1} parent=1 // pred_fallthru
      _
    // Predicated region
    $region74: #{classifier_forward.1} parent=1 // pred_check
      _
    $region75: #{classifier_forward.1} parent=1 // pred_check_branch
      %4604 = sbr.rel (0) target = $region77
    $region76: #{classifier_forward.1} parent=1 // pred_region
      _
    $region77: #{classifier_forward.1} parent=1 // pred_fallthru
      _
    %4605 = vsyncpa [#allocation3], 1
    %4606 = vsyncpa [#allocation5], 1
    %4607 = vsyncpa [#allocation8], 1
    %4608 = vsyncpa [#allocation11], 1
    %4609 = vsyncpa [#allocation14], 1

</llo_original>
